<compile_context>
chip_gen: v7x
topology: tpu7x:2x2x1
jax: 0.10.0
libtpu: 0.0.40
codegen_flags: <defaults>
</compile_context>

<pallas_src>
import functools
import math

import jax
import jax.numpy as jnp
from jax import lax
from jax.experimental import pallas as pl
from jax.experimental.pallas import tpu as pltpu


# ----------------------------- config ---------------------------------------
class Cfg:
    block_size = 64        # T
    n_head = 4
    n_embd = 128           # C
    head_dim = 32          # C // n_head
    n_hidden = 256         # H
    norm_eps = 1e-5
    dtype = jnp.bfloat16


# ----------------------------- kernel ----------------------------------------
def _rmsnorm(x_bf16, w_f32, eps):
    xf = x_bf16.astype(jnp.float32)
    ms = jnp.mean(xf * xf, axis=-1, keepdims=True)
    return (xf * lax.rsqrt(ms + eps) * w_f32).astype(x_bf16.dtype)


def llama_block_kernel(x_ref, anw_ref, wqkvr_ref, wo_ref, fnw_ref, w13_ref,
                       w2_ref, cos_ref, sin_ref, bias_ref, o_ref,
                       *, cfg, b_blk):
    T, C = cfg.block_size, cfg.n_embd
    n_head, hd, H = cfg.n_head, cfg.head_dim, cfg.n_hidden
    dt = cfg.dtype
    rows = b_blk * T

    x = x_ref[...].reshape(rows, C)                       # (rows, C) bf16

    # ---------------- attention sub-block -----------------------------------
    xn = _rmsnorm(x, anw_ref[...], cfg.norm_eps)          # (rows, C) bf16

    # Single fused projection: [q | k | v | rot(q) | rot(k)]  -> (rows, 5C)
    qkvr = jnp.dot(xn, wqkvr_ref[...],
                   preferred_element_type=jnp.float32)
    q = qkvr[:, 0 * C:1 * C]
    k = qkvr[:, 1 * C:2 * C]
    v = qkvr[:, 2 * C:3 * C]
    q_rot = qkvr[:, 3 * C:4 * C]
    k_rot = qkvr[:, 4 * C:5 * C]

    # RoPE: rotation already materialized by the weight permutation; here it
    # is just two full-lane-width FMAs per tensor.
    cos = cos_ref[...]                                    # (rows, C) f32
    sin = sin_ref[...]
    qr = (q * cos + q_rot * sin).astype(dt)
    kr = (k * cos + k_rot * sin).astype(dt)
    vb = v.astype(dt)

    scale = 1.0 / math.sqrt(hd)
    bias = bias_ref[...]                                  # (T, T) f32 additive

    # Per (batch-row, head) causal attention (static, fully unrolled loops).
    batch_outs = []
    for b in range(b_blk):
        r0 = b * T
        head_outs = []
        for h in range(n_head):
            c0 = h * hd
            qh = qr[r0:r0 + T, c0:c0 + hd]                # (T, hd) bf16
            kh = kr[r0:r0 + T, c0:c0 + hd]
            vh = vb[r0:r0 + T, c0:c0 + hd]
            s = jnp.einsum('td,sd->ts', qh, kh,
                           preferred_element_type=jnp.float32)
            s = s * scale + bias                          # causal mask (finite)
            s = s - jnp.max(s, axis=-1, keepdims=True)
            p = jnp.exp(s)
            p = p * pl.reciprocal(jnp.sum(p, axis=-1, keepdims=True),
                                  approx=True)
            head_outs.append(
                jnp.dot(p.astype(dt), vh,
                        preferred_element_type=jnp.float32))
        batch_outs.append(jnp.concatenate(head_outs, axis=-1))   # (T, C) f32
    attn = jnp.concatenate(batch_outs, axis=0).astype(dt)        # (rows, C)

    x = x + jnp.dot(attn, wo_ref[...],
                    preferred_element_type=jnp.float32).astype(dt)

    # ---------------- SwiGLU FFN sub-block -----------------------------------
    xn2 = _rmsnorm(x, fnw_ref[...], cfg.norm_eps)
    g = jnp.dot(xn2, w13_ref[...], preferred_element_type=jnp.float32)
    x1 = g[:, :H]
    x3 = g[:, H:]
    hid = (x1 * jax.nn.sigmoid(x1) * x3).astype(dt)
    ffn = jnp.dot(hid, w2_ref[...],
                  preferred_element_type=jnp.float32).astype(dt)

    o_ref[...] = (x + ffn).reshape(b_blk, T, C)


# ----------------------------- wrapper ---------------------------------------
def _rotate_out_cols(w, n_head, head_dim):
    """RoPE rotate-half as a signed permutation of the OUTPUT columns of a
    (C_in, n_head*head_dim) projection weight (exact in bf16)."""
    c_in = w.shape[0]
    w3 = w.reshape(c_in, n_head, head_dim)
    w3r = jnp.concatenate([-w3[..., head_dim // 2:], w3[..., :head_dim // 2]],
                          axis=-1)
    return w3r.reshape(c_in, n_head * head_dim)


def _pick_b_blk(B, T):
    """Rows-per-step heuristic: fill the MXU M dimension (target ~256 rows,
    128 already saturates v5e) but keep >=2 'parallel' grid steps when B > 1
    so both v7x TensorCores receive work."""
    best = 1
    for cand in range(1, B + 1):
        if B % cand != 0:
            continue
        if B > 1 and B // cand < 2:
            continue
        if cand * T > 256:
            continue
        best = cand
    return best


def transformer_block(x, params, cfg):
    B, T, C = x.shape
    n, hd, H = cfg.n_head, cfg.head_dim, cfg.n_hidden
    b_blk = _pick_b_blk(B, T)
    rows = b_blk * T

    # ---- host-side (one-time) weight fusion & table prep --------------------
    wq, wk, wv = params["wq"], params["wk"], params["wv"]
    wqkvr = jnp.concatenate(
        [wq, wk, wv, _rotate_out_cols(wq, n, hd), _rotate_out_cols(wk, n, hd)],
        axis=1)                                                   # (C, 5C)
    w13 = jnp.concatenate([params["w1"], params["w3"]], axis=1)   # (C, 2H)

    sin, cos = params["sin"], params["cos"]                       # (T, hd) f32
    cos_full = jnp.tile(jnp.tile(cos, (1, n)), (b_blk, 1))        # (rows, C)
    sin_full = jnp.tile(jnp.tile(sin, (1, n)), (b_blk, 1))
    causal = jnp.tril(jnp.ones((T, T), dtype=jnp.bool_))
    bias = jnp.where(causal, 0.0, -1e30).astype(jnp.float32)      # (T, T)

    full = lambda shape: pl.BlockSpec(shape, lambda i: (0,) * len(shape))
    x_spec = pl.BlockSpec((b_blk, T, C), lambda i: (i, 0, 0))

    kernel = functools.partial(llama_block_kernel, cfg=cfg, b_blk=b_blk)
    return pl.pallas_call(
        kernel,
        out_shape=jax.ShapeDtypeStruct((B, T, C), cfg.dtype),
        grid_spec=pltpu.PrefetchScalarGridSpec(
            num_scalar_prefetch=0,
            grid=(B // b_blk,),
            in_specs=[x_spec,
                      full((1, C)),           # attention_norm weight (f32)
                      full((C, 5 * C)),       # fused Wq|Wk|Wv|rot(Wq)|rot(Wk)
                      full((C, C)),           # Wo
                      full((1, C)),           # ffn_norm weight (f32)
                      full((C, 2 * H)),       # fused W1|W3
                      full((H, C)),           # W2
                      full((rows, C)),        # cos table (pre-tiled)
                      full((rows, C)),        # sin table (pre-tiled)
                      full((T, T))],          # additive causal bias
            out_specs=x_spec,
        ),
        compiler_params=pltpu.CompilerParams(
            dimension_semantics=("parallel",),
            # Explicit VMEM budget (safe on v5e/v6e/v7x); total buffers here
            # are well under 2 MiB, headroom left for scaled-up configs.
            vmem_limit_bytes=32 * 1024 * 1024),
    )(x, params["attn_norm_w"], wqkvr, params["wo"], params["ffn_norm_w"],
      w13, params["w2"], cos_full, sin_full, bias)


# ----------------------------- reference (plain JAX) --------------------------
def reference_block(x, params, cfg):
    T, C, n, hd = cfg.block_size, cfg.n_embd, cfg.n_head, cfg.head_dim

    def rmsnorm(t, w):
        tf = t.astype(jnp.float32)
        ms = jnp.mean(tf * tf, axis=-1, keepdims=True)
        return (tf * lax.rsqrt(ms + cfg.norm_eps) * w).astype(t.dtype)

    def rope(t, sin, cos):  # t: (B, n, T, hd)
        rot = jnp.concatenate([-t[..., hd // 2:], t[..., :hd // 2]], axis=-1)
        return (t * cos + rot * sin).astype(cfg.dtype)

    B = x.shape[0]
    h = rmsnorm(x, params["attn_norm_w"][0])
    q = (h @ params["wq"]).reshape(B, T, n, hd).transpose(0, 2, 1, 3).astype(jnp.float32)
    k = (h @ params["wk"]).reshape(B, T, n, hd).transpose(0, 2, 1, 3).astype(jnp.float32)
    v = (h @ params["wv"]).reshape(B, T, n, hd).transpose(0, 2, 1, 3)
    q = rope(q, params["sin"], params["cos"])
    k = rope(k, params["sin"], params["cos"])
    s = jnp.einsum('bntd,bnsd->bnts', q, k,
                   preferred_element_type=jnp.float32) / math.sqrt(hd)
    mask = jnp.tril(jnp.ones((T, T), dtype=bool))
    s = jnp.where(mask[None, None], s, -jnp.inf)
    p = jax.nn.softmax(s, axis=-1).astype(cfg.dtype)
    a = jnp.einsum('bnts,bnsd->bntd', p, v,
                   preferred_element_type=jnp.float32)
    a = a.transpose(0, 2, 1, 3).reshape(B, T, C).astype(cfg.dtype)
    x = x + (a @ params["wo"]).astype(cfg.dtype)

    h = rmsnorm(x, params["ffn_norm_w"][0])
    x1 = (h @ params["w1"]).astype(jnp.float32)
    x1 = x1 * jax.nn.sigmoid(x1)
    x2 = (h @ params["w3"]).astype(jnp.float32)
    ff = ((x1 * x2).astype(cfg.dtype) @ params["w2"]).astype(cfg.dtype)
    return x + ff


# ----------------------------- setup / main -----------------------------------
def precompute_rope(cfg):
    T, hd = cfg.block_size, cfg.head_dim
    positions = jnp.arange(T, dtype=jnp.float32)
    thetas = 1.0 / (10000.0 ** (jnp.arange(0, hd, 2, dtype=jnp.float32) / hd))
    pt = jnp.outer(positions, thetas)
    pt = jnp.concatenate([pt, pt], axis=-1)        # (T, hd)
    return jnp.sin(pt), jnp.cos(pt)


def make_params(cfg, key):
    C, H = cfg.n_embd, cfg.n_hidden
    ks = jax.random.split(key, 7)
    scale_c = 1.0 / math.sqrt(C)
    scale_h = 1.0 / math.sqrt(H)
    sin, cos = precompute_rope(cfg)
    return {
        "wq": (jax.random.normal(ks[0], (C, C)) * scale_c).astype(cfg.dtype),
        "wk": (jax.random.normal(ks[1], (C, C)) * scale_c).astype(cfg.dtype),
        "wv": (jax.random.normal(ks[2], (C, C)) * scale_c).astype(cfg.dtype),
        "wo": (jax.random.normal(ks[3], (C, C)) * scale_c).astype(cfg.dtype),
        "w1": (jax.random.normal(ks[4], (C, H)) * scale_c).astype(cfg.dtype),
        "w3": (jax.random.normal(ks[5], (C, H)) * scale_c).astype(cfg.dtype),
        "w2": (jax.random.normal(ks[6], (H, C)) * scale_h).astype(cfg.dtype),
        "attn_norm_w": jnp.ones((1, C), dtype=jnp.float32),
        "ffn_norm_w": jnp.ones((1, C), dtype=jnp.float32),
        "sin": sin,
        "cos": cos,
    }


if __name__ == "__main__":
    cfg = Cfg()
    key = jax.random.PRNGKey(0)
    kx, kp = jax.random.split(key)
    B, T, C = 2, cfg.block_size, cfg.n_embd
    x = jax.random.normal(kx, (B, T, C)).astype(cfg.dtype)
    params = make_params(cfg, kp)

    out = jax.block_until_ready(transformer_block(x, params, cfg))
    ref = jax.block_until_ready(reference_block(x, params, cfg))

    diff = float(jnp.max(jnp.abs(out.astype(jnp.float32) -
                                 ref.astype(jnp.float32))))
    assert out.shape == (B, T, C) and out.dtype == cfg.dtype
    assert diff < 2e-1, f"mismatch vs reference: {diff}"
    print("KERNEL_OK")
</pallas_src>

<mosaic_0001>
module attributes {stable_mosaic.version = 11 : i64} {
  func.func @llama_block_kernel(%arg0: i32, %arg1: memref<1x64x128xbf16, #tpu.memory_space<vmem>>, %arg2: memref<1x128xf32, #tpu.memory_space<vmem>>, %arg3: memref<128x640xbf16, #tpu.memory_space<vmem>>, %arg4: memref<128x128xbf16, #tpu.memory_space<vmem>>, %arg5: memref<1x128xf32, #tpu.memory_space<vmem>>, %arg6: memref<128x512xbf16, #tpu.memory_space<vmem>>, %arg7: memref<256x128xbf16, #tpu.memory_space<vmem>>, %arg8: memref<64x128xf32, #tpu.memory_space<vmem>>, %arg9: memref<64x128xf32, #tpu.memory_space<vmem>>, %arg10: memref<64x64xf32, #tpu.memory_space<vmem>>, %arg11: memref<1x64x128xbf16, #tpu.memory_space<vmem>>) attributes {dimension_semantics = [#tpu.dimension_semantics<parallel>], iteration_bounds = array<i64: 2>, scalar_prefetch = 0 : i64, scratch_operands = 0 : i64, tpu.core_type = #tpu.core_type<tc>, window_params = [{transform_indices = @transform_0, window_bounds = array<i64: 1, 64, 128>}, {pipeline_mode = #tpu.pipeline_mode<synchronous>, transform_indices = @transform_1, window_bounds = array<i64: 1, 128>}, {pipeline_mode = #tpu.pipeline_mode<synchronous>, transform_indices = @transform_2, window_bounds = array<i64: 128, 640>}, {pipeline_mode = #tpu.pipeline_mode<synchronous>, transform_indices = @transform_3, window_bounds = array<i64: 128, 128>}, {pipeline_mode = #tpu.pipeline_mode<synchronous>, transform_indices = @transform_4, window_bounds = array<i64: 1, 128>}, {pipeline_mode = #tpu.pipeline_mode<synchronous>, transform_indices = @transform_5, window_bounds = array<i64: 128, 512>}, {pipeline_mode = #tpu.pipeline_mode<synchronous>, transform_indices = @transform_6, window_bounds = array<i64: 256, 128>}, {pipeline_mode = #tpu.pipeline_mode<synchronous>, transform_indices = @transform_7, window_bounds = array<i64: 64, 128>}, {pipeline_mode = #tpu.pipeline_mode<synchronous>, transform_indices = @transform_8, window_bounds = array<i64: 64, 128>}, {pipeline_mode = #tpu.pipeline_mode<synchronous>, transform_indices = @transform_9, window_bounds = array<i64: 64, 64>}, {transform_indices = @transform_10, window_bounds = array<i64: 1, 64, 128>}]} {
    %c0 = arith.constant 0 : index
    %c0_0 = arith.constant 0 : index
    %c0_1 = arith.constant 0 : index
    %0 = vector.load %arg1[%c0, %c0_0, %c0_1] : memref<1x64x128xbf16, #tpu.memory_space<vmem>>, vector<1x64x128xbf16>
    %1 = vector.shape_cast %0 : vector<1x64x128xbf16> to vector<64x128xbf16>
    %c0_2 = arith.constant 0 : index
    %c0_3 = arith.constant 0 : index
    %2 = vector.load %arg2[%c0_2, %c0_3] : memref<1x128xf32, #tpu.memory_space<vmem>>, vector<1x128xf32>
    %3 = arith.extf %1 : vector<64x128xbf16> to vector<64x128xf32>
    %4 = arith.mulf %3, %3 : vector<64x128xf32>
    %cst = arith.constant dense<0.000000e+00> : vector<64xf32>
    %5 = vector.multi_reduction <add>, %4, %cst [1] : vector<64x128xf32> to vector<64xf32>
    %6 = vector.shape_cast %5 : vector<64xf32> to vector<64x1xf32>
    %cst_4 = arith.constant 1.280000e+02 : f32
    %7 = vector.broadcast %cst_4 : f32 to vector<64x1xf32>
    %8 = arith.divf %6, %7 : vector<64x1xf32>
    %cst_5 = arith.constant 9.99999974E-6 : f32
    %9 = vector.broadcast %cst_5 : f32 to vector<64x1xf32>
    %10 = arith.addf %8, %9 : vector<64x1xf32>
    %11 = math.rsqrt %10 : vector<64x1xf32>
    %12 = vector.broadcast %11 : vector<64x1xf32> to vector<64x128xf32>
    %13 = arith.mulf %3, %12 : vector<64x128xf32>
    %14 = vector.broadcast %2 : vector<1x128xf32> to vector<64x128xf32>
    %15 = arith.mulf %13, %14 : vector<64x128xf32>
    %16 = arith.truncf %15 : vector<64x128xf32> to vector<64x128xbf16>
    %c0_6 = arith.constant 0 : index
    %c0_7 = arith.constant 0 : index
    %17 = vector.load %arg3[%c0_6, %c0_7] : memref<128x640xbf16, #tpu.memory_space<vmem>>, vector<128x640xbf16>
    %cst_8 = arith.constant dense<0.000000e+00> : vector<64x640xf32>
    %18 = tpu.matmul %16, %17, %cst_8 {dimension_numbers = #tpu.dot_dimension_numbers<[1], [0], [0], [1], [0, 0, 1, 1], [], []>} : vector<64x128xbf16>, vector<128x640xbf16>, vector<64x640xf32> -> vector<64x640xf32>
    %19 = vector.extract_strided_slice %18 {offsets = [0, 0], sizes = [64, 128], strides = [1, 1]} : vector<64x640xf32> to vector<64x128xf32>
    %20 = vector.extract_strided_slice %18 {offsets = [0, 128], sizes = [64, 128], strides = [1, 1]} : vector<64x640xf32> to vector<64x128xf32>
    %21 = vector.extract_strided_slice %18 {offsets = [0, 256], sizes = [64, 128], strides = [1, 1]} : vector<64x640xf32> to vector<64x128xf32>
    %22 = vector.extract_strided_slice %18 {offsets = [0, 384], sizes = [64, 128], strides = [1, 1]} : vector<64x640xf32> to vector<64x128xf32>
    %23 = vector.extract_strided_slice %18 {offsets = [0, 512], sizes = [64, 128], strides = [1, 1]} : vector<64x640xf32> to vector<64x128xf32>
    %c0_9 = arith.constant 0 : index
    %c0_10 = arith.constant 0 : index
    %24 = vector.load %arg8[%c0_9, %c0_10] : memref<64x128xf32, #tpu.memory_space<vmem>>, vector<64x128xf32>
    %c0_11 = arith.constant 0 : index
    %c0_12 = arith.constant 0 : index
    %25 = vector.load %arg9[%c0_11, %c0_12] : memref<64x128xf32, #tpu.memory_space<vmem>>, vector<64x128xf32>
    %26 = arith.mulf %19, %24 : vector<64x128xf32>
    %27 = arith.mulf %22, %25 : vector<64x128xf32>
    %28 = arith.addf %26, %27 : vector<64x128xf32>
    %29 = arith.truncf %28 : vector<64x128xf32> to vector<64x128xbf16>
    %30 = arith.mulf %20, %24 : vector<64x128xf32>
    %31 = arith.mulf %23, %25 : vector<64x128xf32>
    %32 = arith.addf %30, %31 : vector<64x128xf32>
    %33 = arith.truncf %32 : vector<64x128xf32> to vector<64x128xbf16>
    %34 = arith.truncf %21 : vector<64x128xf32> to vector<64x128xbf16>
    %c0_13 = arith.constant 0 : index
    %c0_14 = arith.constant 0 : index
    %35 = vector.load %arg10[%c0_13, %c0_14] : memref<64x64xf32, #tpu.memory_space<vmem>>, vector<64x64xf32>
    %36 = vector.extract_strided_slice %29 {offsets = [0, 0], sizes = [64, 32], strides = [1, 1]} : vector<64x128xbf16> to vector<64x32xbf16>
    %37 = vector.extract_strided_slice %33 {offsets = [0, 0], sizes = [64, 32], strides = [1, 1]} : vector<64x128xbf16> to vector<64x32xbf16>
    %38 = vector.extract_strided_slice %34 {offsets = [0, 0], sizes = [64, 32], strides = [1, 1]} : vector<64x128xbf16> to vector<64x32xbf16>
    "tpu.trace_start"() <{level = 10 : i32, message = "td,sd->ts"}> : () -> ()
    %cst_15 = arith.constant dense<0.000000e+00> : vector<64x64xf32>
    %39 = tpu.matmul %36, %37, %cst_15 {dimension_numbers = #tpu.dot_dimension_numbers<[1], [1], [0], [0], [0, 0, 1, 0], [], []>} : vector<64x32xbf16>, vector<64x32xbf16>, vector<64x64xf32> -> vector<64x64xf32>
    "tpu.trace_stop"() : () -> ()
    %cst_16 = arith.constant 0.176776692 : f32
    %40 = vector.broadcast %cst_16 : f32 to vector<64x64xf32>
    %41 = arith.mulf %39, %40 : vector<64x64xf32>
    %42 = arith.addf %41, %35 : vector<64x64xf32>
    %cst_17 = arith.constant dense<0xFF800000> : vector<64xf32>
    %43 = vector.multi_reduction <maximumf>, %42, %cst_17 [1] : vector<64x64xf32> to vector<64xf32>
    %44 = vector.shape_cast %43 : vector<64xf32> to vector<64x1xf32>
    %45 = vector.broadcast %44 : vector<64x1xf32> to vector<64x64xf32>
    %46 = arith.subf %42, %45 : vector<64x64xf32>
    %47 = math.exp %46 : vector<64x64xf32>
    %cst_18 = arith.constant dense<0.000000e+00> : vector<64xf32>
    %48 = vector.multi_reduction <add>, %47, %cst_18 [1] : vector<64x64xf32> to vector<64xf32>
    %49 = vector.shape_cast %48 : vector<64xf32> to vector<64x1xf32>
    %50 = tpu.reciprocal %49 {approx = true} : vector<64x1xf32> -> vector<64x1xf32>
    %51 = vector.broadcast %50 : vector<64x1xf32> to vector<64x64xf32>
    %52 = arith.mulf %47, %51 : vector<64x64xf32>
    %53 = arith.truncf %52 : vector<64x64xf32> to vector<64x64xbf16>
    %cst_19 = arith.constant dense<0.000000e+00> : vector<64x32xf32>
    %54 = tpu.matmul %53, %38, %cst_19 {dimension_numbers = #tpu.dot_dimension_numbers<[1], [0], [0], [1], [0, 0, 1, 1], [], []>} : vector<64x64xbf16>, vector<64x32xbf16>, vector<64x32xf32> -> vector<64x32xf32>
    %55 = vector.extract_strided_slice %29 {offsets = [0, 32], sizes = [64, 32], strides = [1, 1]} : vector<64x128xbf16> to vector<64x32xbf16>
    %56 = vector.extract_strided_slice %33 {offsets = [0, 32], sizes = [64, 32], strides = [1, 1]} : vector<64x128xbf16> to vector<64x32xbf16>
    %57 = vector.extract_strided_slice %34 {offsets = [0, 32], sizes = [64, 32], strides = [1, 1]} : vector<64x128xbf16> to vector<64x32xbf16>
    "tpu.trace_start"() <{level = 10 : i32, message = "td,sd->ts"}> : () -> ()
    %cst_20 = arith.constant dense<0.000000e+00> : vector<64x64xf32>
    %58 = tpu.matmul %55, %56, %cst_20 {dimension_numbers = #tpu.dot_dimension_numbers<[1], [1], [0], [0], [0, 0, 1, 0], [], []>} : vector<64x32xbf16>, vector<64x32xbf16>, vector<64x64xf32> -> vector<64x64xf32>
    "tpu.trace_stop"() : () -> ()
    %cst_21 = arith.constant 0.176776692 : f32
    %59 = vector.broadcast %cst_21 : f32 to vector<64x64xf32>
    %60 = arith.mulf %58, %59 : vector<64x64xf32>
    %61 = arith.addf %60, %35 : vector<64x64xf32>
    %cst_22 = arith.constant dense<0xFF800000> : vector<64xf32>
    %62 = vector.multi_reduction <maximumf>, %61, %cst_22 [1] : vector<64x64xf32> to vector<64xf32>
    %63 = vector.shape_cast %62 : vector<64xf32> to vector<64x1xf32>
    %64 = vector.broadcast %63 : vector<64x1xf32> to vector<64x64xf32>
    %65 = arith.subf %61, %64 : vector<64x64xf32>
    %66 = math.exp %65 : vector<64x64xf32>
    %cst_23 = arith.constant dense<0.000000e+00> : vector<64xf32>
    %67 = vector.multi_reduction <add>, %66, %cst_23 [1] : vector<64x64xf32> to vector<64xf32>
    %68 = vector.shape_cast %67 : vector<64xf32> to vector<64x1xf32>
    %69 = tpu.reciprocal %68 {approx = true} : vector<64x1xf32> -> vector<64x1xf32>
    %70 = vector.broadcast %69 : vector<64x1xf32> to vector<64x64xf32>
    %71 = arith.mulf %66, %70 : vector<64x64xf32>
    %72 = arith.truncf %71 : vector<64x64xf32> to vector<64x64xbf16>
    %cst_24 = arith.constant dense<0.000000e+00> : vector<64x32xf32>
    %73 = tpu.matmul %72, %57, %cst_24 {dimension_numbers = #tpu.dot_dimension_numbers<[1], [0], [0], [1], [0, 0, 1, 1], [], []>} : vector<64x64xbf16>, vector<64x32xbf16>, vector<64x32xf32> -> vector<64x32xf32>
    %74 = vector.extract_strided_slice %29 {offsets = [0, 64], sizes = [64, 32], strides = [1, 1]} : vector<64x128xbf16> to vector<64x32xbf16>
    %75 = vector.extract_strided_slice %33 {offsets = [0, 64], sizes = [64, 32], strides = [1, 1]} : vector<64x128xbf16> to vector<64x32xbf16>
    %76 = vector.extract_strided_slice %34 {offsets = [0, 64], sizes = [64, 32], strides = [1, 1]} : vector<64x128xbf16> to vector<64x32xbf16>
    "tpu.trace_start"() <{level = 10 : i32, message = "td,sd->ts"}> : () -> ()
    %cst_25 = arith.constant dense<0.000000e+00> : vector<64x64xf32>
    %77 = tpu.matmul %74, %75, %cst_25 {dimension_numbers = #tpu.dot_dimension_numbers<[1], [1], [0], [0], [0, 0, 1, 0], [], []>} : vector<64x32xbf16>, vector<64x32xbf16>, vector<64x64xf32> -> vector<64x64xf32>
    "tpu.trace_stop"() : () -> ()
    %cst_26 = arith.constant 0.176776692 : f32
    %78 = vector.broadcast %cst_26 : f32 to vector<64x64xf32>
    %79 = arith.mulf %77, %78 : vector<64x64xf32>
    %80 = arith.addf %79, %35 : vector<64x64xf32>
    %cst_27 = arith.constant dense<0xFF800000> : vector<64xf32>
    %81 = vector.multi_reduction <maximumf>, %80, %cst_27 [1] : vector<64x64xf32> to vector<64xf32>
    %82 = vector.shape_cast %81 : vector<64xf32> to vector<64x1xf32>
    %83 = vector.broadcast %82 : vector<64x1xf32> to vector<64x64xf32>
    %84 = arith.subf %80, %83 : vector<64x64xf32>
    %85 = math.exp %84 : vector<64x64xf32>
    %cst_28 = arith.constant dense<0.000000e+00> : vector<64xf32>
    %86 = vector.multi_reduction <add>, %85, %cst_28 [1] : vector<64x64xf32> to vector<64xf32>
    %87 = vector.shape_cast %86 : vector<64xf32> to vector<64x1xf32>
    %88 = tpu.reciprocal %87 {approx = true} : vector<64x1xf32> -> vector<64x1xf32>
    %89 = vector.broadcast %88 : vector<64x1xf32> to vector<64x64xf32>
    %90 = arith.mulf %85, %89 : vector<64x64xf32>
    %91 = arith.truncf %90 : vector<64x64xf32> to vector<64x64xbf16>
    %cst_29 = arith.constant dense<0.000000e+00> : vector<64x32xf32>
    %92 = tpu.matmul %91, %76, %cst_29 {dimension_numbers = #tpu.dot_dimension_numbers<[1], [0], [0], [1], [0, 0, 1, 1], [], []>} : vector<64x64xbf16>, vector<64x32xbf16>, vector<64x32xf32> -> vector<64x32xf32>
    %93 = vector.extract_strided_slice %29 {offsets = [0, 96], sizes = [64, 32], strides = [1, 1]} : vector<64x128xbf16> to vector<64x32xbf16>
    %94 = vector.extract_strided_slice %33 {offsets = [0, 96], sizes = [64, 32], strides = [1, 1]} : vector<64x128xbf16> to vector<64x32xbf16>
    %95 = vector.extract_strided_slice %34 {offsets = [0, 96], sizes = [64, 32], strides = [1, 1]} : vector<64x128xbf16> to vector<64x32xbf16>
    "tpu.trace_start"() <{level = 10 : i32, message = "td,sd->ts"}> : () -> ()
    %cst_30 = arith.constant dense<0.000000e+00> : vector<64x64xf32>
    %96 = tpu.matmul %93, %94, %cst_30 {dimension_numbers = #tpu.dot_dimension_numbers<[1], [1], [0], [0], [0, 0, 1, 0], [], []>} : vector<64x32xbf16>, vector<64x32xbf16>, vector<64x64xf32> -> vector<64x64xf32>
    "tpu.trace_stop"() : () -> ()
    %cst_31 = arith.constant 0.176776692 : f32
    %97 = vector.broadcast %cst_31 : f32 to vector<64x64xf32>
    %98 = arith.mulf %96, %97 : vector<64x64xf32>
    %99 = arith.addf %98, %35 : vector<64x64xf32>
    %cst_32 = arith.constant dense<0xFF800000> : vector<64xf32>
    %100 = vector.multi_reduction <maximumf>, %99, %cst_32 [1] : vector<64x64xf32> to vector<64xf32>
    %101 = vector.shape_cast %100 : vector<64xf32> to vector<64x1xf32>
    %102 = vector.broadcast %101 : vector<64x1xf32> to vector<64x64xf32>
    %103 = arith.subf %99, %102 : vector<64x64xf32>
    %104 = math.exp %103 : vector<64x64xf32>
    %cst_33 = arith.constant dense<0.000000e+00> : vector<64xf32>
    %105 = vector.multi_reduction <add>, %104, %cst_33 [1] : vector<64x64xf32> to vector<64xf32>
    %106 = vector.shape_cast %105 : vector<64xf32> to vector<64x1xf32>
    %107 = tpu.reciprocal %106 {approx = true} : vector<64x1xf32> -> vector<64x1xf32>
    %108 = vector.broadcast %107 : vector<64x1xf32> to vector<64x64xf32>
    %109 = arith.mulf %104, %108 : vector<64x64xf32>
    %110 = arith.truncf %109 : vector<64x64xf32> to vector<64x64xbf16>
    %cst_34 = arith.constant dense<0.000000e+00> : vector<64x32xf32>
    %111 = tpu.matmul %110, %95, %cst_34 {dimension_numbers = #tpu.dot_dimension_numbers<[1], [0], [0], [1], [0, 0, 1, 1], [], []>} : vector<64x64xbf16>, vector<64x32xbf16>, vector<64x32xf32> -> vector<64x32xf32>
    %112 = tpu.concatenate %54, %73, %92, %111 in 1 : vector<64x32xf32>, vector<64x32xf32>, vector<64x32xf32>, vector<64x32xf32> -> vector<64x128xf32>
    %113 = arith.truncf %112 : vector<64x128xf32> to vector<64x128xbf16>
    %c0_35 = arith.constant 0 : index
    %c0_36 = arith.constant 0 : index
    %114 = vector.load %arg4[%c0_35, %c0_36] : memref<128x128xbf16, #tpu.memory_space<vmem>>, vector<128x128xbf16>
    %cst_37 = arith.constant dense<0.000000e+00> : vector<64x128xf32>
    %115 = tpu.matmul %113, %114, %cst_37 {dimension_numbers = #tpu.dot_dimension_numbers<[1], [0], [0], [1], [0, 0, 1, 1], [], []>} : vector<64x128xbf16>, vector<128x128xbf16>, vector<64x128xf32> -> vector<64x128xf32>
    %116 = arith.truncf %115 : vector<64x128xf32> to vector<64x128xbf16>
    %117 = arith.addf %1, %116 : vector<64x128xbf16>
    %c0_38 = arith.constant 0 : index
    %c0_39 = arith.constant 0 : index
    %118 = vector.load %arg5[%c0_38, %c0_39] : memref<1x128xf32, #tpu.memory_space<vmem>>, vector<1x128xf32>
    %119 = arith.extf %117 : vector<64x128xbf16> to vector<64x128xf32>
    %120 = arith.mulf %119, %119 : vector<64x128xf32>
    %cst_40 = arith.constant dense<0.000000e+00> : vector<64xf32>
    %121 = vector.multi_reduction <add>, %120, %cst_40 [1] : vector<64x128xf32> to vector<64xf32>
    %122 = vector.shape_cast %121 : vector<64xf32> to vector<64x1xf32>
    %cst_41 = arith.constant 1.280000e+02 : f32
    %123 = vector.broadcast %cst_41 : f32 to vector<64x1xf32>
    %124 = arith.divf %122, %123 : vector<64x1xf32>
    %cst_42 = arith.constant 9.99999974E-6 : f32
    %125 = vector.broadcast %cst_42 : f32 to vector<64x1xf32>
    %126 = arith.addf %124, %125 : vector<64x1xf32>
    %127 = math.rsqrt %126 : vector<64x1xf32>
    %128 = vector.broadcast %127 : vector<64x1xf32> to vector<64x128xf32>
    %129 = arith.mulf %119, %128 : vector<64x128xf32>
    %130 = vector.broadcast %118 : vector<1x128xf32> to vector<64x128xf32>
    %131 = arith.mulf %129, %130 : vector<64x128xf32>
    %132 = arith.truncf %131 : vector<64x128xf32> to vector<64x128xbf16>
    %c0_43 = arith.constant 0 : index
    %c0_44 = arith.constant 0 : index
    %133 = vector.load %arg6[%c0_43, %c0_44] : memref<128x512xbf16, #tpu.memory_space<vmem>>, vector<128x512xbf16>
    %cst_45 = arith.constant dense<0.000000e+00> : vector<64x512xf32>
    %134 = tpu.matmul %132, %133, %cst_45 {dimension_numbers = #tpu.dot_dimension_numbers<[1], [0], [0], [1], [0, 0, 1, 1], [], []>} : vector<64x128xbf16>, vector<128x512xbf16>, vector<64x512xf32> -> vector<64x512xf32>
    %135 = vector.extract_strided_slice %134 {offsets = [0, 0], sizes = [64, 256], strides = [1, 1]} : vector<64x512xf32> to vector<64x256xf32>
    %136 = vector.extract_strided_slice %134 {offsets = [0, 256], sizes = [64, 256], strides = [1, 1]} : vector<64x512xf32> to vector<64x256xf32>
    %137 = arith.negf %135 : vector<64x256xf32>
    %138 = math.exp %137 : vector<64x256xf32>
    %cst_46 = arith.constant 1.000000e+00 : f32
    %139 = vector.broadcast %cst_46 : f32 to vector<64x256xf32>
    %140 = arith.addf %139, %138 : vector<64x256xf32>
    %141 = arith.divf %139, %140 : vector<64x256xf32>
    %142 = arith.mulf %135, %141 : vector<64x256xf32>
    %143 = arith.mulf %142, %136 : vector<64x256xf32>
    %144 = arith.truncf %143 : vector<64x256xf32> to vector<64x256xbf16>
    %c0_47 = arith.constant 0 : index
    %c0_48 = arith.constant 0 : index
    %145 = vector.load %arg7[%c0_47, %c0_48] : memref<256x128xbf16, #tpu.memory_space<vmem>>, vector<256x128xbf16>
    %cst_49 = arith.constant dense<0.000000e+00> : vector<64x128xf32>
    %146 = tpu.matmul %144, %145, %cst_49 {dimension_numbers = #tpu.dot_dimension_numbers<[1], [0], [0], [1], [0, 0, 1, 1], [], []>} : vector<64x256xbf16>, vector<256x128xbf16>, vector<64x128xf32> -> vector<64x128xf32>
    %147 = arith.truncf %146 : vector<64x128xf32> to vector<64x128xbf16>
    %148 = arith.addf %117, %147 : vector<64x128xbf16>
    %149 = vector.shape_cast %148 : vector<64x128xbf16> to vector<1x64x128xbf16>
    %c0_50 = arith.constant 0 : index
    %c0_51 = arith.constant 0 : index
    %c0_52 = arith.constant 0 : index
    %150 = vector.load %arg11[%c0_50, %c0_51, %c0_52] : memref<1x64x128xbf16, #tpu.memory_space<vmem>>, vector<1x64x128xbf16>
    tpu.vector_store %arg11[%c0_50, %c0_51, %c0_52], %149 {strides = array<i32>} : memref<1x64x128xbf16, #tpu.memory_space<vmem>>, vector<1x64x128xbf16>,
    return
  }
  func.func @transform_0(%arg0: i32) -> (i32, i32, i32) {
    %c0_i32 = arith.constant 0 : i32
    %c0_i32_0 = arith.constant 0 : i32
    %c0_i32_1 = arith.constant 0 : i32
    return %arg0, %c0_i32, %c0_i32_0 : i32, i32, i32
  }
  func.func @transform_1(%arg0: i32) -> (i32, i32) {
    %c0_i32 = arith.constant 0 : i32
    %c0_i32_0 = arith.constant 0 : i32
    %c0_i32_1 = arith.constant 0 : i32
    return %c0_i32, %c0_i32_0 : i32, i32
  }
  func.func @transform_2(%arg0: i32) -> (i32, i32) {
    %c0_i32 = arith.constant 0 : i32
    %c0_i32_0 = arith.constant 0 : i32
    %c0_i32_1 = arith.constant 0 : i32
    return %c0_i32, %c0_i32_0 : i32, i32
  }
  func.func @transform_3(%arg0: i32) -> (i32, i32) {
    %c0_i32 = arith.constant 0 : i32
    %c0_i32_0 = arith.constant 0 : i32
    %c0_i32_1 = arith.constant 0 : i32
    return %c0_i32, %c0_i32_0 : i32, i32
  }
  func.func @transform_4(%arg0: i32) -> (i32, i32) {
    %c0_i32 = arith.constant 0 : i32
    %c0_i32_0 = arith.constant 0 : i32
    %c0_i32_1 = arith.constant 0 : i32
    return %c0_i32, %c0_i32_0 : i32, i32
  }
  func.func @transform_5(%arg0: i32) -> (i32, i32) {
    %c0_i32 = arith.constant 0 : i32
    %c0_i32_0 = arith.constant 0 : i32
    %c0_i32_1 = arith.constant 0 : i32
    return %c0_i32, %c0_i32_0 : i32, i32
  }
  func.func @transform_6(%arg0: i32) -> (i32, i32) {
    %c0_i32 = arith.constant 0 : i32
    %c0_i32_0 = arith.constant 0 : i32
    %c0_i32_1 = arith.constant 0 : i32
    return %c0_i32, %c0_i32_0 : i32, i32
  }
  func.func @transform_7(%arg0: i32) -> (i32, i32) {
    %c0_i32 = arith.constant 0 : i32
    %c0_i32_0 = arith.constant 0 : i32
    %c0_i32_1 = arith.constant 0 : i32
    return %c0_i32, %c0_i32_0 : i32, i32
  }
  func.func @transform_8(%arg0: i32) -> (i32, i32) {
    %c0_i32 = arith.constant 0 : i32
    %c0_i32_0 = arith.constant 0 : i32
    %c0_i32_1 = arith.constant 0 : i32
    return %c0_i32, %c0_i32_0 : i32, i32
  }
  func.func @transform_9(%arg0: i32) -> (i32, i32) {
    %c0_i32 = arith.constant 0 : i32
    %c0_i32_0 = arith.constant 0 : i32
    %c0_i32_1 = arith.constant 0 : i32
    return %c0_i32, %c0_i32_0 : i32, i32
  }
  func.func @transform_10(%arg0: i32) -> (i32, i32, i32) {
    %c0_i32 = arith.constant 0 : i32
    %c0_i32_0 = arith.constant 0 : i32
    %c0_i32_1 = arith.constant 0 : i32
    return %arg0, %c0_i32, %c0_i32_0 : i32, i32, i32
  }
}

</mosaic_0001>

<llo_original>
// kernel: tpu_custom_call.1
$region0: #{tpu_custom_call.1}
  #allocation0 [shape = 'u32[]', space=smem, size = 0x4, offset = 0x4, fixed_abs, tag = 'smem constant byte address 0x4 - core index']
  #allocation1 [shape = 'u32[144,128]{1,0:T(1,128)}', space=vmem, size = 0x12000, scoped, tag = 'internal scratch']
  %s0 = inlined_call_operand.hbm [shape: bf16[2,64,128], index: 0, kind: input, shape index: {}]
  %s1 = inlined_call_operand.vmem [shape: f32[1,128], index: 1, kind: input, shape index: {}]
  %s2 = inlined_call_operand.hbm [shape: bf16[128,640], index: 2, kind: input, shape index: {}]
  %s3 = inlined_call_operand.hbm [shape: bf16[128,128], index: 3, kind: input, shape index: {}]
  %s4 = inlined_call_operand.vmem [shape: f32[1,128], index: 4, kind: input, shape index: {}]
  %s5 = inlined_call_operand.hbm [shape: bf16[128,512], index: 5, kind: input, shape index: {}]
  %s6 = inlined_call_operand.hbm [shape: bf16[256,128], index: 6, kind: input, shape index: {}]
  %s7 = inlined_call_operand.hbm [shape: f32[64,128], index: 7, kind: input, shape index: {}]
  %s8 = inlined_call_operand.hbm [shape: f32[64,128], index: 8, kind: input, shape index: {}]
  %s9 = inlined_call_operand.hbm [shape: f32[64,64], index: 9, kind: input, shape index: {}]
  %s10 = inlined_call_operand.hbm [shape: bf16[2,64,128], index: 10, kind: output, shape index: {}]
  %s11 = sld [smem:[#allocation0]]
  $region105: #{tpu_custom_call.1} parent=0
    _
  %s13 = ssub.s32 1, %s11
  %s14 = scalar_select 0, %s13, %s11
  $region1: #{tpu_custom_call.1} parent=0
    #allocation2 [shape = 'u8[32768]{0}', space=vmem, size = 0x8000, scoped, tag = 'input window, operand 0']
    #allocation3 [shape = 's32[2]{0}', space=sflag, size = 0x8, scoped, tag = 'scoped memory for tpu_custom_call.1']
    #allocation4 [shape = 's32[2]{0}', space=sflag, size = 0x8, scoped, tag = 'scoped memory for tpu_custom_call.1']
    #allocation5 [shape = 'u8[163840]{0}', space=vmem, size = 0x28000, scoped, tag = 'input window, operand 2, single buffered']
    #allocation6 [shape = 's32[1]{0}', space=sflag, size = 0x4, scoped, tag = 'scoped memory for tpu_custom_call.1']
    #allocation7 [shape = 'u8[32768]{0}', space=vmem, size = 0x8000, scoped, tag = 'input window, operand 3, single buffered']
    #allocation8 [shape = 'u8[131072]{0}', space=vmem, size = 0x20000, scoped, tag = 'input window, operand 5, single buffered']
    #allocation9 [shape = 's32[1]{0}', space=sflag, size = 0x4, scoped, tag = 'scoped memory for tpu_custom_call.1']
    #allocation10 [shape = 'u8[65536]{0}', space=vmem, size = 0x10000, scoped, tag = 'input window, operand 6, single buffered']
    #allocation11 [shape = 'u8[32768]{0}', space=vmem, size = 0x8000, scoped, tag = 'input window, operand 7, single buffered']
    #allocation12 [shape = 's32[1]{0}', space=sflag, size = 0x4, scoped, tag = 'scoped memory for tpu_custom_call.1']
    #allocation13 [shape = 'u8[32768]{0}', space=vmem, size = 0x8000, scoped, tag = 'input window, operand 8, single buffered']
    #allocation14 [shape = 'u8[32768]{0}', space=vmem, size = 0x8000, scoped, tag = 'input window, operand 9, single buffered']
    #allocation15 [shape = 's32[1]{0}', space=sflag, size = 0x4, scoped, tag = 'scoped memory for tpu_custom_call.1']
    #allocation16 [shape = 'u8[32768]{0}', space=vmem, size = 0x8000, scoped, tag = 'output window, operand 0']
    %15 = vsyncpa [#allocation3], 0
    %s16 = scalar_lea.sflag [#allocation3], 1
    %17 = vsyncpa %s16, 0
    %18 = vsyncpa [#allocation6], 0
    %19 = vsyncpa [#allocation9], 0
    %20 = vsyncpa [#allocation12], 0
    %21 = vsyncpa [#allocation15], 0
    %22 = vsyncpa [#allocation4], 0
    %s23 = scalar_lea.sflag [#allocation4], 1
    %24 = vsyncpa %s23, 0
    loop: start=0, step=1, limit=4
    $region2: #{tpu_custom_call.1} parent=1 // loop_pre_header
      _
    $region3: #{tpu_custom_call.1} parent=1 // loop_header
      %s26 = sphi 0, %s30
      %p27 = scmp.ge.s32.totalorder %s26, 4
      %s36 = sphi 0, %s38
      %s39 = sphi 0, %s36
      %s40 = sphi 0, %s39
      %s56 = sphi 0, %s40
      %s60 = sphi 0, %s60
      %s62 = sphi 0, %s60
      %s63 = sphi 0, %s62
      %s77 = sphi 0, %s63
      %s81 = sphi 0, %s81
      %s83 = sphi 0, %s81
      %s84 = sphi 0, %s83
      %s98 = sphi 0, %s84
      %s102 = sphi 0, %s102
      %s104 = sphi 0, %s102
      %s105 = sphi 0, %s104
      %s119 = sphi 0, %s105
      %s123 = sphi 0, %s123
      %s125 = sphi 0, %s123
      %s126 = sphi 0, %s125
      %s140 = sphi 0, %s126
      %s144 = sphi 0, %s144
      %s146 = sphi 0, %s144
      %s147 = sphi 0, %s146
      %s161 = sphi 0, %s147
      %s165 = sphi 0, %s165
      %s167 = sphi 0, %s165
      %s168 = sphi 0, %s167
      %s182 = sphi 0, %s168
      %s186 = sphi 0, %s186
      %s188 = sphi 0, %s186
      %s189 = sphi 0, %s188
      %s203 = sphi 0, %s189
      %s207 = sphi 0, %s207
      %s209 = sphi 0, %s207
      %s210 = sphi 0, %s209
      %s224 = sphi 0, %s210
      %s228 = sphi 0, %s228
      %s230 = sphi 0, %s228
      %s231 = sphi 0, %s230
      %s245 = sphi 0, %s231
      %s251 = sphi 0, %s253
      %s254 = sphi 0, %s251
      %s255 = sphi 0, %s254
      %s271 = sphi 0, %s255
    $region4: #{tpu_custom_call.1} parent=1 // loop_header_branch
      %29 = sbr.rel (%p27) target = $region8
    $region5: #{tpu_custom_call.1} parent=1 // loop_body
      %s31 = ssub.s32 %s26, 1
      %s32 = ssub.s32 %s26, 2
      %s33 = sadd.s32 %s26, 1
      %s34 = ssub.s32 %s26, %s33
      %p35 = scmp.eq.s32.totalorder %s34, 0
      %s37 = sadd.s32 %s36, 1
      %s38 = scalar_select %p35, %s36, %s37
      %p41 = pneg %p35
      %p42 = scmp.eq.s32.totalorder %s26, 1
      %p43 = por %p41, %p42
      %p44 = scmp.ne.s32.totalorder %s36, %s39
      %p45 = scmp.eq.s32.totalorder %s26, 0
      %p46 = por %p44, %p45
      %p47 = scmp.ne.s32.totalorder %s36, %s39
      %p48 = scmp.eq.s32.totalorder %s31, 1
      %p49 = por %p47, %p48
      %p50 = scmp.ne.s32.totalorder %s39, %s40
      %p51 = scmp.eq.s32.totalorder %s31, 0
      %p52 = por %p50, %p51
      %p53 = scmp.ne.s32.totalorder %s39, %s40
      %p54 = scmp.eq.s32.totalorder %s32, 1
      %p55 = por %p53, %p54
      %p57 = scmp.ne.s32.totalorder %s40, %s56
      %p58 = scmp.eq.s32.totalorder %s32, 0
      %p59 = por %p57, %p58
      %s61 = sadd.s32 %s60, 1
      %p64 = scmp.eq.s32.totalorder %s26, 1
      %p65 = scmp.ne.s32.totalorder %s60, %s62
      %p66 = scmp.eq.s32.totalorder %s26, 0
      %p67 = por %p65, %p66
      %p68 = scmp.ne.s32.totalorder %s60, %s62
      %p69 = scmp.eq.s32.totalorder %s31, 1
      %p70 = por %p68, %p69
      %p71 = scmp.ne.s32.totalorder %s62, %s63
      %p72 = scmp.eq.s32.totalorder %s31, 0
      %p73 = por %p71, %p72
      %p74 = scmp.ne.s32.totalorder %s62, %s63
      %p75 = scmp.eq.s32.totalorder %s32, 1
      %p76 = por %p74, %p75
      %p78 = scmp.ne.s32.totalorder %s63, %s77
      %p79 = scmp.eq.s32.totalorder %s32, 0
      %p80 = por %p78, %p79
      %s82 = sadd.s32 %s81, 1
      %p85 = scmp.eq.s32.totalorder %s26, 1
      %p86 = scmp.ne.s32.totalorder %s81, %s83
      %p87 = scmp.eq.s32.totalorder %s26, 0
      %p88 = por %p86, %p87
      %p89 = scmp.ne.s32.totalorder %s81, %s83
      %p90 = scmp.eq.s32.totalorder %s31, 1
      %p91 = por %p89, %p90
      %p92 = scmp.ne.s32.totalorder %s83, %s84
      %p93 = scmp.eq.s32.totalorder %s31, 0
      %p94 = por %p92, %p93
      %p95 = scmp.ne.s32.totalorder %s83, %s84
      %p96 = scmp.eq.s32.totalorder %s32, 1
      %p97 = por %p95, %p96
      %p99 = scmp.ne.s32.totalorder %s84, %s98
      %p100 = scmp.eq.s32.totalorder %s32, 0
      %p101 = por %p99, %p100
      %s103 = sadd.s32 %s102, 1
      %p106 = scmp.eq.s32.totalorder %s26, 1
      %p107 = scmp.ne.s32.totalorder %s102, %s104
      %p108 = scmp.eq.s32.totalorder %s26, 0
      %p109 = por %p107, %p108
      %p110 = scmp.ne.s32.totalorder %s102, %s104
      %p111 = scmp.eq.s32.totalorder %s31, 1
      %p112 = por %p110, %p111
      %p113 = scmp.ne.s32.totalorder %s104, %s105
      %p114 = scmp.eq.s32.totalorder %s31, 0
      %p115 = por %p113, %p114
      %p116 = scmp.ne.s32.totalorder %s104, %s105
      %p117 = scmp.eq.s32.totalorder %s32, 1
      %p118 = por %p116, %p117
      %p120 = scmp.ne.s32.totalorder %s105, %s119
      %p121 = scmp.eq.s32.totalorder %s32, 0
      %p122 = por %p120, %p121
      %s124 = sadd.s32 %s123, 1
      %p127 = scmp.eq.s32.totalorder %s26, 1
      %p128 = scmp.ne.s32.totalorder %s123, %s125
      %p129 = scmp.eq.s32.totalorder %s26, 0
      %p130 = por %p128, %p129
      %p131 = scmp.ne.s32.totalorder %s123, %s125
      %p132 = scmp.eq.s32.totalorder %s31, 1
      %p133 = por %p131, %p132
      %p134 = scmp.ne.s32.totalorder %s125, %s126
      %p135 = scmp.eq.s32.totalorder %s31, 0
      %p136 = por %p134, %p135
      %p137 = scmp.ne.s32.totalorder %s125, %s126
      %p138 = scmp.eq.s32.totalorder %s32, 1
      %p139 = por %p137, %p138
      %p141 = scmp.ne.s32.totalorder %s126, %s140
      %p142 = scmp.eq.s32.totalorder %s32, 0
      %p143 = por %p141, %p142
      %s145 = sadd.s32 %s144, 1
      %p148 = scmp.eq.s32.totalorder %s26, 1
      %p149 = scmp.ne.s32.totalorder %s144, %s146
      %p150 = scmp.eq.s32.totalorder %s26, 0
      %p151 = por %p149, %p150
      %p152 = scmp.ne.s32.totalorder %s144, %s146
      %p153 = scmp.eq.s32.totalorder %s31, 1
      %p154 = por %p152, %p153
      %p155 = scmp.ne.s32.totalorder %s146, %s147
      %p156 = scmp.eq.s32.totalorder %s31, 0
      %p157 = por %p155, %p156
      %p158 = scmp.ne.s32.totalorder %s146, %s147
      %p159 = scmp.eq.s32.totalorder %s32, 1
      %p160 = por %p158, %p159
      %p162 = scmp.ne.s32.totalorder %s147, %s161
      %p163 = scmp.eq.s32.totalorder %s32, 0
      %p164 = por %p162, %p163
      %s166 = sadd.s32 %s165, 1
      %p169 = scmp.eq.s32.totalorder %s26, 1
      %p170 = scmp.ne.s32.totalorder %s165, %s167
      %p171 = scmp.eq.s32.totalorder %s26, 0
      %p172 = por %p170, %p171
      %p173 = scmp.ne.s32.totalorder %s165, %s167
      %p174 = scmp.eq.s32.totalorder %s31, 1
      %p175 = por %p173, %p174
      %p176 = scmp.ne.s32.totalorder %s167, %s168
      %p177 = scmp.eq.s32.totalorder %s31, 0
      %p178 = por %p176, %p177
      %p179 = scmp.ne.s32.totalorder %s167, %s168
      %p180 = scmp.eq.s32.totalorder %s32, 1
      %p181 = por %p179, %p180
      %p183 = scmp.ne.s32.totalorder %s168, %s182
      %p184 = scmp.eq.s32.totalorder %s32, 0
      %p185 = por %p183, %p184
      %s187 = sadd.s32 %s186, 1
      %p190 = scmp.eq.s32.totalorder %s26, 1
      %p191 = scmp.ne.s32.totalorder %s186, %s188
      %p192 = scmp.eq.s32.totalorder %s26, 0
      %p193 = por %p191, %p192
      %p194 = scmp.ne.s32.totalorder %s186, %s188
      %p195 = scmp.eq.s32.totalorder %s31, 1
      %p196 = por %p194, %p195
      %p197 = scmp.ne.s32.totalorder %s188, %s189
      %p198 = scmp.eq.s32.totalorder %s31, 0
      %p199 = por %p197, %p198
      %p200 = scmp.ne.s32.totalorder %s188, %s189
      %p201 = scmp.eq.s32.totalorder %s32, 1
      %p202 = por %p200, %p201
      %p204 = scmp.ne.s32.totalorder %s189, %s203
      %p205 = scmp.eq.s32.totalorder %s32, 0
      %p206 = por %p204, %p205
      %s208 = sadd.s32 %s207, 1
      %p211 = scmp.eq.s32.totalorder %s26, 1
      %p212 = scmp.ne.s32.totalorder %s207, %s209
      %p213 = scmp.eq.s32.totalorder %s26, 0
      %p214 = por %p212, %p213
      %p215 = scmp.ne.s32.totalorder %s207, %s209
      %p216 = scmp.eq.s32.totalorder %s31, 1
      %p217 = por %p215, %p216
      %p218 = scmp.ne.s32.totalorder %s209, %s210
      %p219 = scmp.eq.s32.totalorder %s31, 0
      %p220 = por %p218, %p219
      %p221 = scmp.ne.s32.totalorder %s209, %s210
      %p222 = scmp.eq.s32.totalorder %s32, 1
      %p223 = por %p221, %p222
      %p225 = scmp.ne.s32.totalorder %s210, %s224
      %p226 = scmp.eq.s32.totalorder %s32, 0
      %p227 = por %p225, %p226
      %s229 = sadd.s32 %s228, 1
      %p232 = scmp.eq.s32.totalorder %s26, 1
      %p233 = scmp.ne.s32.totalorder %s228, %s230
      %p234 = scmp.eq.s32.totalorder %s26, 0
      %p235 = por %p233, %p234
      %p236 = scmp.ne.s32.totalorder %s228, %s230
      %p237 = scmp.eq.s32.totalorder %s31, 1
      %p238 = por %p236, %p237
      %p239 = scmp.ne.s32.totalorder %s230, %s231
      %p240 = scmp.eq.s32.totalorder %s31, 0
      %p241 = por %p239, %p240
      %p242 = scmp.ne.s32.totalorder %s230, %s231
      %p243 = scmp.eq.s32.totalorder %s32, 1
      %p244 = por %p242, %p243
      %p246 = scmp.ne.s32.totalorder %s231, %s245
      %p247 = scmp.eq.s32.totalorder %s32, 0
      %p248 = por %p246, %p247
      %s249 = ssub.s32 %s26, %s33
      %p250 = scmp.eq.s32.totalorder %s249, 0
      %s252 = sadd.s32 %s251, 1
      %s253 = scalar_select %p250, %s251, %s252
      %p256 = pneg %p250
      %p257 = scmp.eq.s32.totalorder %s26, 1
      %p258 = por %p256, %p257
      %p259 = scmp.ne.s32.totalorder %s251, %s254
      %p260 = scmp.eq.s32.totalorder %s26, 0
      %p261 = por %p259, %p260
      %p262 = scmp.ne.s32.totalorder %s251, %s254
      %p263 = scmp.eq.s32.totalorder %s31, 1
      %p264 = por %p262, %p263
      %p265 = scmp.ne.s32.totalorder %s254, %s255
      %p266 = scmp.eq.s32.totalorder %s31, 0
      %p267 = por %p265, %p266
      %p268 = scmp.ne.s32.totalorder %s254, %s255
      %p269 = scmp.eq.s32.totalorder %s32, 1
      %p270 = por %p268, %p269
      %p272 = scmp.ne.s32.totalorder %s255, %s271
      %p273 = scmp.eq.s32.totalorder %s32, 0
      %p274 = por %p272, %p273
      %p275 = scmp.le.s32.totalorder 1, %s26
      %p276 = scmp.lt.s32.totalorder %s26, 3
      %p277 = pnand %p275, %p276
      %p278 = pneg %p277
      // Predicated region
      $region9: #{tpu_custom_call.1} parent=5 // pred_check
        _
      $region10: #{tpu_custom_call.1} parent=5 // pred_check_branch
        %280 = sbr.rel (%p277) target = $region12
      $region11: #{tpu_custom_call.1} parent=5 // pred_region
        %s281 = ssub.s32 %s26, 1
        // Predicated region
        $region13: #{tpu_custom_call.1} parent=11 // pred_check
          %p282 = pneg %p73
        $region14: #{tpu_custom_call.1} parent=11 // pred_check_branch
          %284 = sbr.rel (%p282) target = $region16
        $region15: #{tpu_custom_call.1} parent=11 // pred_region
          _
        $region16: #{tpu_custom_call.1} parent=11 // pred_fallthru
          _
        // Predicated region
        $region17: #{tpu_custom_call.1} parent=11 // pred_check
          %p285 = pneg %p94
        $region18: #{tpu_custom_call.1} parent=11 // pred_check_branch
          %287 = sbr.rel (%p285) target = $region20
        $region19: #{tpu_custom_call.1} parent=11 // pred_region
          %s289 = ssub.s32 5120, 5120
          %290 = vsyncadd [#allocation6], %s289
          %s291 = sshll.u32 [#allocation5], 4
          %s292 = int_to_ptr.vmem [resolvable:$true] %s291
          %297 = dma.hbm_to_vmem [thread:$0]  %s2, 5120, %s292, [#allocation6], 320, 320, 20
        $region20: #{tpu_custom_call.1} parent=11 // pred_fallthru
          _
        // Predicated region
        $region21: #{tpu_custom_call.1} parent=11 // pred_check
          %p298 = pneg %p115
        $region22: #{tpu_custom_call.1} parent=11 // pred_check_branch
          %300 = sbr.rel (%p298) target = $region24
        $region23: #{tpu_custom_call.1} parent=11 // pred_region
          %s302 = ssub.s32 1024, 1024
          %303 = vsyncadd [#allocation6], %s302
          %s304 = sshll.u32 [#allocation7], 4
          %s305 = int_to_ptr.vmem [resolvable:$true] %s304
          %310 = dma.hbm_to_vmem [thread:$0]  %s3, 1024, %s305, [#allocation6], 64, 64, 4
        $region24: #{tpu_custom_call.1} parent=11 // pred_fallthru
          _
        // Predicated region
        $region25: #{tpu_custom_call.1} parent=11 // pred_check
          %p311 = pneg %p136
        $region26: #{tpu_custom_call.1} parent=11 // pred_check_branch
          %313 = sbr.rel (%p311) target = $region28
        $region27: #{tpu_custom_call.1} parent=11 // pred_region
          _
        $region28: #{tpu_custom_call.1} parent=11 // pred_fallthru
          _
        // Predicated region
        $region29: #{tpu_custom_call.1} parent=11 // pred_check
          %p314 = pneg %p157
        $region30: #{tpu_custom_call.1} parent=11 // pred_check_branch
          %316 = sbr.rel (%p314) target = $region32
        $region31: #{tpu_custom_call.1} parent=11 // pred_region
          %s318 = ssub.s32 4096, 4096
          %319 = vsyncadd [#allocation9], %s318
          %s320 = sshll.u32 [#allocation8], 4
          %s321 = int_to_ptr.vmem [resolvable:$true] %s320
          %326 = dma.hbm_to_vmem [thread:$0]  %s5, 4096, %s321, [#allocation9], 256, 256, 16
        $region32: #{tpu_custom_call.1} parent=11 // pred_fallthru
          _
        // Predicated region
        $region33: #{tpu_custom_call.1} parent=11 // pred_check
          %p327 = pneg %p178
        $region34: #{tpu_custom_call.1} parent=11 // pred_check_branch
          %329 = sbr.rel (%p327) target = $region36
        $region35: #{tpu_custom_call.1} parent=11 // pred_region
          %s331 = ssub.s32 2048, 2048
          %332 = vsyncadd [#allocation9], %s331
          %s333 = sshll.u32 [#allocation10], 4
          %s334 = int_to_ptr.vmem [resolvable:$true] %s333
          %339 = dma.hbm_to_vmem [thread:$0]  %s6, 2048, %s334, [#allocation9], 64, 64, 4
        $region36: #{tpu_custom_call.1} parent=11 // pred_fallthru
          _
        // Predicated region
        $region37: #{tpu_custom_call.1} parent=11 // pred_check
          %p340 = pneg %p199
        $region38: #{tpu_custom_call.1} parent=11 // pred_check_branch
          %342 = sbr.rel (%p340) target = $region40
        $region39: #{tpu_custom_call.1} parent=11 // pred_region
          %s344 = ssub.s32 1024, 1024
          %345 = vsyncadd [#allocation12], %s344
          %s346 = sshll.u32 [#allocation11], 4
          %s347 = int_to_ptr.vmem [resolvable:$true] %s346
          %352 = dma.hbm_to_vmem [thread:$0]  %s7, 1024, %s347, [#allocation12], 128, 128, 8
        $region40: #{tpu_custom_call.1} parent=11 // pred_fallthru
          _
        // Predicated region
        $region41: #{tpu_custom_call.1} parent=11 // pred_check
          %p353 = pneg %p220
        $region42: #{tpu_custom_call.1} parent=11 // pred_check_branch
          %355 = sbr.rel (%p353) target = $region44
        $region43: #{tpu_custom_call.1} parent=11 // pred_region
          %s357 = ssub.s32 1024, 1024
          %358 = vsyncadd [#allocation12], %s357
          %s359 = sshll.u32 [#allocation13], 4
          %s360 = int_to_ptr.vmem [resolvable:$true] %s359
          %365 = dma.hbm_to_vmem [thread:$0]  %s8, 1024, %s360, [#allocation12], 128, 128, 8
        $region44: #{tpu_custom_call.1} parent=11 // pred_fallthru
          _
        // Predicated region
        $region45: #{tpu_custom_call.1} parent=11 // pred_check
          %p366 = pneg %p241
        $region46: #{tpu_custom_call.1} parent=11 // pred_check_branch
          %368 = sbr.rel (%p366) target = $region48
        $region47: #{tpu_custom_call.1} parent=11 // pred_region
          %s370 = ssub.s32 1024, 1024
          %371 = vsyncadd [#allocation15], %s370
          %s372 = sshll.u32 [#allocation14], 4
          %s373 = int_to_ptr.vmem [resolvable:$true] %s372
          %378 = dma.hbm_to_vmem [thread:$0]  %s9, 1024, %s373, [#allocation15], 128, 128, 8
        $region48: #{tpu_custom_call.1} parent=11 // pred_fallthru
          _
      $region12: #{tpu_custom_call.1} parent=5 // pred_fallthru
        _
      %p379 = scmp.lt.s32.totalorder %s26, 2
      // Predicated region
      $region49: #{tpu_custom_call.1} parent=5 // pred_check
        %p380 = pneg %p379
      $region50: #{tpu_custom_call.1} parent=5 // pred_check_branch
        %382 = sbr.rel (%p380) target = $region52
      $region51: #{tpu_custom_call.1} parent=5 // pred_region
        // Predicated region
        $region53: #{tpu_custom_call.1} parent=51 // pred_check
          %p383 = pneg %p46
        $region54: #{tpu_custom_call.1} parent=51 // pred_check_branch
          %385 = sbr.rel (%p383) target = $region56
        $region55: #{tpu_custom_call.1} parent=51 // pred_region
          %s386 = sand.u32 %s36, 1
          %s387 = scalar_lea.sflag [#allocation3], %s386
          %s388 = sand.u32 %s36, 1
          %s389 = smul.addr %s388, 32
          %s390 = scalar_lea.vmem [#allocation2], %s389
          %s392 = ssub.s32 512, 512
          %393 = vsyncadd %s387, %s392
          %s394 = smul.addr %s26, 8
          %s395 = smul.addr %s394, 64
          %s396 = scalar_lea.hbm %s0, %s395
          %s397 = sshll.u32 %s390, 4
          %s398 = int_to_ptr.vmem [resolvable:$true] %s397
          %403 = dma.hbm_to_vmem [thread:$0]  %s396, 512, %s398, %s387, 64, 64, 4
        $region56: #{tpu_custom_call.1} parent=51 // pred_fallthru
          _
      $region52: #{tpu_custom_call.1} parent=5 // pred_fallthru
        _
      %p404 = scmp.le.s32.totalorder 1, %s26
      %p405 = scmp.lt.s32.totalorder %s26, 3
      %p406 = pnand %p404, %p405
      %p407 = pneg %p406
      // Predicated region
      $region57: #{tpu_custom_call.1} parent=5 // pred_check
        _
      $region58: #{tpu_custom_call.1} parent=5 // pred_check_branch
        %409 = sbr.rel (%p406) target = $region60
      $region59: #{tpu_custom_call.1} parent=5 // pred_region
        %s410 = ssub.s32 %s26, 1
        %s411 = sand.u32 %s39, 1
        %s412 = scalar_lea.sflag [#allocation3], %s411
        %s413 = sand.u32 %s39, 1
        %s414 = smul.addr %s413, 32
        %s415 = scalar_lea.vmem [#allocation2], %s414
        // Predicated region
        $region61: #{tpu_custom_call.1} parent=59 // pred_check
          %p416 = pneg %p52
        $region62: #{tpu_custom_call.1} parent=59 // pred_check_branch
          %418 = sbr.rel (%p416) target = $region64
        $region63: #{tpu_custom_call.1} parent=59 // pred_region
          %419 = dma.done %s412, 512
        $region64: #{tpu_custom_call.1} parent=59 // pred_fallthru
          _
        // Predicated region
        $region65: #{tpu_custom_call.1} parent=59 // pred_check
          %p420 = pneg %p94
        $region66: #{tpu_custom_call.1} parent=59 // pred_check_branch
          %422 = sbr.rel (%p420) target = $region68
        $region67: #{tpu_custom_call.1} parent=59 // pred_region
          %423 = dma.done [#allocation6], 5120
        $region68: #{tpu_custom_call.1} parent=59 // pred_fallthru
          _
        // Predicated region
        $region69: #{tpu_custom_call.1} parent=59 // pred_check
          %p424 = pneg %p115
        $region70: #{tpu_custom_call.1} parent=59 // pred_check_branch
          %426 = sbr.rel (%p424) target = $region72
        $region71: #{tpu_custom_call.1} parent=59 // pred_region
          %427 = dma.done [#allocation6], 1024
        $region72: #{tpu_custom_call.1} parent=59 // pred_fallthru
          _
        // Predicated region
        $region73: #{tpu_custom_call.1} parent=59 // pred_check
          %p428 = pneg %p157
        $region74: #{tpu_custom_call.1} parent=59 // pred_check_branch
          %430 = sbr.rel (%p428) target = $region76
        $region75: #{tpu_custom_call.1} parent=59 // pred_region
          %431 = dma.done [#allocation9], 4096
        $region76: #{tpu_custom_call.1} parent=59 // pred_fallthru
          _
        // Predicated region
        $region77: #{tpu_custom_call.1} parent=59 // pred_check
          %p432 = pneg %p178
        $region78: #{tpu_custom_call.1} parent=59 // pred_check_branch
          %434 = sbr.rel (%p432) target = $region80
        $region79: #{tpu_custom_call.1} parent=59 // pred_region
          %435 = dma.done [#allocation9], 2048
        $region80: #{tpu_custom_call.1} parent=59 // pred_fallthru
          _
        // Predicated region
        $region81: #{tpu_custom_call.1} parent=59 // pred_check
          %p436 = pneg %p199
        $region82: #{tpu_custom_call.1} parent=59 // pred_check_branch
          %438 = sbr.rel (%p436) target = $region84
        $region83: #{tpu_custom_call.1} parent=59 // pred_region
          %439 = dma.done [#allocation12], 1024
        $region84: #{tpu_custom_call.1} parent=59 // pred_fallthru
          _
        // Predicated region
        $region85: #{tpu_custom_call.1} parent=59 // pred_check
          %p440 = pneg %p220
        $region86: #{tpu_custom_call.1} parent=59 // pred_check_branch
          %442 = sbr.rel (%p440) target = $region88
        $region87: #{tpu_custom_call.1} parent=59 // pred_region
          %443 = dma.done [#allocation12], 1024
        $region88: #{tpu_custom_call.1} parent=59 // pred_fallthru
          _
        // Predicated region
        $region89: #{tpu_custom_call.1} parent=59 // pred_check
          %p444 = pneg %p241
        $region90: #{tpu_custom_call.1} parent=59 // pred_check_branch
          %446 = sbr.rel (%p444) target = $region92
        $region91: #{tpu_custom_call.1} parent=59 // pred_region
          %447 = dma.done [#allocation15], 1024
        $region92: #{tpu_custom_call.1} parent=59 // pred_fallthru
          _
        %s448 = sand.u32 %s39, 1
        %s449 = scalar_lea.sflag [#allocation3], %s448
        %s450 = sand.u32 %s39, 1
        %s451 = smul.addr %s450, 32
        %s452 = scalar_lea.vmem [#allocation2], %s451
        %p453 = pneg %p52
        %p454 = pneg %p49
        %p455 = pneg %p73
        %p456 = pneg %p70
        %p457 = pneg %p94
        %p458 = pneg %p91
        %p459 = pneg %p115
        %p460 = pneg %p112
        %p461 = pneg %p136
        %p462 = pneg %p133
        %p463 = pneg %p157
        %p464 = pneg %p154
        %p465 = pneg %p178
        %p466 = pneg %p175
        %p467 = pneg %p199
        %p468 = pneg %p196
        %p469 = pneg %p220
        %p470 = pneg %p217
        %p471 = pneg %p241
        %p472 = pneg %p238
        %p473 = pneg %p267
        %p474 = pneg %p264
        %s475 = sand.u32 %s254, 1
        %s476 = scalar_lea.sflag [#allocation4], %s475
        %s477 = sand.u32 %s254, 1
        %s478 = smul.addr %s477, 32
        %s479 = scalar_lea.vmem [#allocation16], %s478
        %v481 = vld [vmem:[%s415] sm:$0xf]
        %v482 = vld [vmem:[%s415 + $0x4] sm:$0xf]
        %v483 = vld [vmem:[%s415 + $0x8] sm:$0xf]
        %v484 = vld [vmem:[%s415 + $0xc] sm:$0xf]
        %v485 = vld [vmem:[%s415 + $0x10] sm:$0xf]
        %v486 = vld [vmem:[%s415 + $0x14] sm:$0xf]
        %v487 = vld [vmem:[%s415 + $0x18] sm:$0xf]
        %v488 = vld [vmem:[%s415 + $0x1c] sm:$0xf]
        %v489 = vld [vmem:[%s1] sm:$0x1]
        %v490 = vunpack.c.l.bf16 %v481
        %v491 = vunpack.c.l.bf16 %v482
        %v492 = vunpack.c.l.bf16 %v483
        %v493 = vunpack.c.l.bf16 %v484
        %v494 = vunpack.c.l.bf16 %v485
        %v495 = vunpack.c.l.bf16 %v486
        %v496 = vunpack.c.l.bf16 %v487
        %v497 = vunpack.c.l.bf16 %v488
        %v498 = vmul.f32 %v490, %v490
        %v499 = vmul.f32 %v491, %v491
        %v500 = vmul.f32 %v492, %v492
        %v501 = vmul.f32 %v493, %v493
        %v502 = vmul.f32 %v494, %v494
        %v503 = vmul.f32 %v495, %v495
        %v504 = vmul.f32 %v496, %v496
        %v505 = vmul.f32 %v497, %v497
        %506 = vadd.xlane.f32.xlu0 %v498
        %v507 = vpop.xlane.xlu0 %506
        %508 = vadd.xlane.f32.xlu0 %v499
        %v509 = vpop.xlane.xlu0 %508
        %510 = vadd.xlane.f32.xlu0 %v500
        %v511 = vpop.xlane.xlu0 %510
        %512 = vadd.xlane.f32.xlu0 %v501
        %v513 = vpop.xlane.xlu0 %512
        %514 = vadd.xlane.f32.xlu0 %v502
        %v515 = vpop.xlane.xlu0 %514
        %516 = vadd.xlane.f32.xlu0 %v503
        %v517 = vpop.xlane.xlu0 %516
        %518 = vadd.xlane.f32.xlu0 %v504
        %v519 = vpop.xlane.xlu0 %518
        %520 = vadd.xlane.f32.xlu0 %v505
        %v521 = vpop.xlane.xlu0 %520
        %v522 = vrcp.pop 128.0
        %v523 = vmul.f32 %v507, %v522
        %v524 = vmul.f32 %v509, %v522
        %v525 = vmul.f32 %v511, %v522
        %v526 = vmul.f32 %v513, %v522
        %v527 = vmul.f32 %v515, %v522
        %v528 = vmul.f32 %v517, %v522
        %v529 = vmul.f32 %v519, %v522
        %v530 = vmul.f32 %v521, %v522
        %v531 = vadd.f32 %v523, 1e-05
        %v532 = vadd.f32 %v524, 1e-05
        %v533 = vadd.f32 %v525, 1e-05
        %v534 = vadd.f32 %v526, 1e-05
        %v535 = vadd.f32 %v527, 1e-05
        %v536 = vadd.f32 %v528, 1e-05
        %v537 = vadd.f32 %v529, 1e-05
        %v538 = vadd.f32 %v530, 1e-05
        %v539 = vrsqrt.pop %v531
        %v540 = vrsqrt.pop %v532
        %v541 = vrsqrt.pop %v533
        %v542 = vrsqrt.pop %v534
        %v543 = vrsqrt.pop %v535
        %v544 = vrsqrt.pop %v536
        %v545 = vrsqrt.pop %v537
        %v546 = vrsqrt.pop %v538
        %v547 = vmul.f32 %v490, %v539
        %v548 = vmul.f32 %v491, %v540
        %v549 = vmul.f32 %v492, %v541
        %v550 = vmul.f32 %v493, %v542
        %v551 = vmul.f32 %v494, %v543
        %v552 = vmul.f32 %v495, %v544
        %v553 = vmul.f32 %v496, %v545
        %v554 = vmul.f32 %v497, %v546
        %v556 = vlaneseq
        %v557 = vshrl.u32 %v556, 7
        %v558 = vsub.s32 0, %v557
        %v559 = vrot.slane %v489, %v558
        %v561 = vmul.f32 %v547, %v559
        %v562 = vmul.f32 %v548, %v559
        %v563 = vmul.f32 %v549, %v559
        %v564 = vmul.f32 %v550, %v559
        %v565 = vmul.f32 %v551, %v559
        %v566 = vmul.f32 %v552, %v559
        %v567 = vmul.f32 %v553, %v559
        %v568 = vmul.f32 %v554, %v559
        %v569 = vpack.c.bf16 %v562, %v561
        %v570 = vpack.c.bf16 %v564, %v563
        %v571 = vpack.c.bf16 %v566, %v565
        %v572 = vpack.c.bf16 %v568, %v567
        %v573 = vld [vmem:[#allocation5] sm:$0xff]
        %v574 = vld [vmem:[#allocation5 + $0x8] sm:$0xff]
        %v575 = vld [vmem:[#allocation5 + $0x10] sm:$0xf]
        %v576 = vld [vmem:[#allocation5 + $0x14] sm:$0xff]
        %v577 = vld [vmem:[#allocation5 + $0x1c] sm:$0xff]
        %v578 = vld [vmem:[#allocation5 + $0x24] sm:$0xf]
        %v579 = vld [vmem:[#allocation5 + $0x28] sm:$0xff]
        %v580 = vld [vmem:[#allocation5 + $0x30] sm:$0xff]
        %v581 = vld [vmem:[#allocation5 + $0x38] sm:$0xf]
        %v582 = vld [vmem:[#allocation5 + $0x3c] sm:$0xff]
        %v583 = vld [vmem:[#allocation5 + $0x44] sm:$0xff]
        %v584 = vld [vmem:[#allocation5 + $0x4c] sm:$0xf]
        %v585 = vld [vmem:[#allocation5 + $0x50] sm:$0xff]
        %v586 = vld [vmem:[#allocation5 + $0x58] sm:$0xff]
        %v587 = vld [vmem:[#allocation5 + $0x60] sm:$0xf]
        %v588 = vld [vmem:[#allocation5 + $0x64] sm:$0xff]
        %v589 = vld [vmem:[#allocation5 + $0x6c] sm:$0xff]
        %v590 = vld [vmem:[#allocation5 + $0x74] sm:$0xf]
        %v591 = vld [vmem:[#allocation5 + $0x78] sm:$0xff]
        %v592 = vld [vmem:[#allocation5 + $0x80] sm:$0xff]
        %v593 = vld [vmem:[#allocation5 + $0x88] sm:$0xf]
        %v594 = vld [vmem:[#allocation5 + $0x8c] sm:$0xff]
        %v595 = vld [vmem:[#allocation5 + $0x94] sm:$0xff]
        %v596 = vld [vmem:[#allocation5 + $0x9c] sm:$0xf]
        %v597 = vld [vmem:[#allocation5 + $0xa0] sm:$0xff]
        %v598 = vld [vmem:[#allocation5 + $0xa8] sm:$0xff]
        %v599 = vld [vmem:[#allocation5 + $0xb0] sm:$0xf]
        %v600 = vld [vmem:[#allocation5 + $0xb4] sm:$0xff]
        %v601 = vld [vmem:[#allocation5 + $0xbc] sm:$0xff]
        %v602 = vld [vmem:[#allocation5 + $0xc4] sm:$0xf]
        %v603 = vld [vmem:[#allocation5 + $0xc8] sm:$0xff]
        %v604 = vld [vmem:[#allocation5 + $0xd0] sm:$0xff]
        %v605 = vld [vmem:[#allocation5 + $0xd8] sm:$0xf]
        %v606 = vld [vmem:[#allocation5 + $0xdc] sm:$0xff]
        %v607 = vld [vmem:[#allocation5 + $0xe4] sm:$0xff]
        %v608 = vld [vmem:[#allocation5 + $0xec] sm:$0xf]
        %v609 = vld [vmem:[#allocation5 + $0xf0] sm:$0xff]
        %v610 = vld [vmem:[#allocation5 + $0xf8] sm:$0xff]
        %v611 = vld [vmem:[#allocation5 + $0x100] sm:$0xf]
        %v612 = vld [vmem:[#allocation5 + $0x104] sm:$0xff]
        %v613 = vld [vmem:[#allocation5 + $0x10c] sm:$0xff]
        %v614 = vld [vmem:[#allocation5 + $0x114] sm:$0xf]
        %v615 = vld [vmem:[#allocation5 + $0x118] sm:$0xff]
        %v616 = vld [vmem:[#allocation5 + $0x120] sm:$0xff]
        %v617 = vld [vmem:[#allocation5 + $0x128] sm:$0xf]
        %v618 = vld [vmem:[#allocation5 + $0x12c] sm:$0xff]
        %v619 = vld [vmem:[#allocation5 + $0x134] sm:$0xff]
        %v620 = vld [vmem:[#allocation5 + $0x13c] sm:$0xf]
        %v669 = vunpack.c.l.b16 %v573
        %v670 = vunpack.c.h.b16 %v573
        %v671 = vunpack.c.l.b16 %v574
        %v672 = vunpack.c.h.b16 %v574
        %v673 = vunpack.c.l.b16 %v575
        %v674 = vunpack.c.l.b16 %v576
        %v675 = vunpack.c.h.b16 %v576
        %v676 = vunpack.c.l.b16 %v577
        %v677 = vunpack.c.h.b16 %v577
        %v678 = vunpack.c.l.b16 %v578
        %v679 = vunpack.c.l.b16 %v579
        %v680 = vunpack.c.h.b16 %v579
        %v681 = vunpack.c.l.b16 %v580
        %v682 = vunpack.c.h.b16 %v580
        %v683 = vunpack.c.l.b16 %v581
        %v684 = vunpack.c.l.b16 %v582
        %v685 = vunpack.c.h.b16 %v582
        %v686 = vunpack.c.l.b16 %v583
        %v687 = vunpack.c.h.b16 %v583
        %v688 = vunpack.c.l.b16 %v584
        %v689 = vunpack.c.l.b16 %v585
        %v690 = vunpack.c.h.b16 %v585
        %v691 = vunpack.c.l.b16 %v586
        %v692 = vunpack.c.h.b16 %v586
        %v693 = vunpack.c.l.b16 %v587
        %v694 = vunpack.c.l.b16 %v588
        %v695 = vunpack.c.h.b16 %v588
        %v696 = vunpack.c.l.b16 %v589
        %v697 = vunpack.c.h.b16 %v589
        %v698 = vunpack.c.l.b16 %v590
        %v699 = vunpack.c.l.b16 %v591
        %v700 = vunpack.c.h.b16 %v591
        %v701 = vunpack.c.l.b16 %v592
        %v702 = vunpack.c.h.b16 %v592
        %v703 = vunpack.c.l.b16 %v593
        %v704 = vunpack.c.l.b16 %v594
        %v705 = vunpack.c.h.b16 %v594
        %v706 = vunpack.c.l.b16 %v595
        %v707 = vunpack.c.h.b16 %v595
        %v708 = vunpack.c.l.b16 %v596
        %v709 = vunpack.c.l.b16 %v597
        %v710 = vunpack.c.h.b16 %v597
        %v711 = vunpack.c.l.b16 %v598
        %v712 = vunpack.c.h.b16 %v598
        %v713 = vunpack.c.l.b16 %v599
        %v714 = vunpack.c.l.b16 %v600
        %v715 = vunpack.c.h.b16 %v600
        %v716 = vunpack.c.l.b16 %v601
        %v717 = vunpack.c.h.b16 %v601
        %v718 = vunpack.c.l.b16 %v602
        %v719 = vunpack.c.l.b16 %v603
        %v720 = vunpack.c.h.b16 %v603
        %v721 = vunpack.c.l.b16 %v604
        %v722 = vunpack.c.h.b16 %v604
        %v723 = vunpack.c.l.b16 %v605
        %v724 = vunpack.c.l.b16 %v606
        %v725 = vunpack.c.h.b16 %v606
        %v726 = vunpack.c.l.b16 %v607
        %v727 = vunpack.c.h.b16 %v607
        %v728 = vunpack.c.l.b16 %v608
        %v729 = vunpack.c.l.b16 %v609
        %v730 = vunpack.c.h.b16 %v609
        %v731 = vunpack.c.l.b16 %v610
        %v732 = vunpack.c.h.b16 %v610
        %v733 = vunpack.c.l.b16 %v611
        %v734 = vunpack.c.l.b16 %v612
        %v735 = vunpack.c.h.b16 %v612
        %v736 = vunpack.c.l.b16 %v613
        %v737 = vunpack.c.h.b16 %v613
        %v738 = vunpack.c.l.b16 %v614
        %v739 = vunpack.c.l.b16 %v615
        %v740 = vunpack.c.h.b16 %v615
        %v741 = vunpack.c.l.b16 %v616
        %v742 = vunpack.c.h.b16 %v616
        %v743 = vunpack.c.l.b16 %v617
        %v744 = vunpack.c.l.b16 %v618
        %v745 = vunpack.c.h.b16 %v618
        %v746 = vunpack.c.l.b16 %v619
        %v747 = vunpack.c.h.b16 %v619
        %v748 = vunpack.c.l.b16 %v620
        %v749 = vpack.c.b16 %v674, %v669
        %v750 = vpack.c.b16 %v675, %v670
        %v751 = vpack.c.b16 %v676, %v671
        %v752 = vpack.c.b16 %v677, %v672
        %v753 = vpack.c.b16 %v678, %v673
        %v754 = vpack.c.b16 %v684, %v679
        %v755 = vpack.c.b16 %v685, %v680
        %v756 = vpack.c.b16 %v686, %v681
        %v757 = vpack.c.b16 %v687, %v682
        %v758 = vpack.c.b16 %v688, %v683
        %v759 = vpack.c.b16 %v694, %v689
        %v760 = vpack.c.b16 %v695, %v690
        %v761 = vpack.c.b16 %v696, %v691
        %v762 = vpack.c.b16 %v697, %v692
        %v763 = vpack.c.b16 %v698, %v693
        %v764 = vpack.c.b16 %v704, %v699
        %v765 = vpack.c.b16 %v705, %v700
        %v766 = vpack.c.b16 %v706, %v701
        %v767 = vpack.c.b16 %v707, %v702
        %v768 = vpack.c.b16 %v708, %v703
        %v769 = vpack.c.b16 %v714, %v709
        %v770 = vpack.c.b16 %v715, %v710
        %v771 = vpack.c.b16 %v716, %v711
        %v772 = vpack.c.b16 %v717, %v712
        %v773 = vpack.c.b16 %v718, %v713
        %v774 = vpack.c.b16 %v724, %v719
        %v775 = vpack.c.b16 %v725, %v720
        %v776 = vpack.c.b16 %v726, %v721
        %v777 = vpack.c.b16 %v727, %v722
        %v778 = vpack.c.b16 %v728, %v723
        %v779 = vpack.c.b16 %v734, %v729
        %v780 = vpack.c.b16 %v735, %v730
        %v781 = vpack.c.b16 %v736, %v731
        %v782 = vpack.c.b16 %v737, %v732
        %v783 = vpack.c.b16 %v738, %v733
        %v784 = vpack.c.b16 %v744, %v739
        %v785 = vpack.c.b16 %v745, %v740
        %v786 = vpack.c.b16 %v746, %v741
        %v787 = vpack.c.b16 %v747, %v742
        %v788 = vpack.c.b16 %v748, %v743
        %829 = vmatprep.subr.bf16.mxu0 %v750
        %830 = vmatpush1.bf16.msra.mxu0 %v749
        %831 = vmatprep.subr.bf16.mxu0 %v755
        %832 = vmatpush1.bf16.msra.mxu0 %v754
        %833 = vmatprep.subr.bf16.mxu0 %v760
        %834 = vmatpush1.bf16.msra.mxu0 %v759
        %835 = vmatprep.subr.bf16.mxu0 %v765
        %836 = vmatpush1.bf16.msra.mxu0 %v764
        %837 = vmatprep.subr.bf16.mxu0 %v770
        %838 = vmatpush1.bf16.msra.mxu0 %v769
        %839 = vmatprep.subr.bf16.mxu0 %v775
        %840 = vmatpush1.bf16.msra.mxu0 %v774
        %841 = vmatprep.subr.bf16.mxu0 %v780
        %842 = vmatpush1.bf16.msra.mxu0 %v779
        %843 = vmatprep.subr.bf16.mxu0 %v785
        %844 = vmatpush1.bf16.msra.mxu0 %v784
        %845 = vmatprep.subr.bf16.mxu0 0
        %846 = vmatpush1.bf16.msra.mxu0 0
        %847 = vmatprep.subr.bf16.mxu0 0
        %848 = vmatpush1.bf16.msra.mxu0 0
        %849 = vmatprep.subr.bf16.mxu0 0
        %850 = vmatpush1.bf16.msra.mxu0 0
        %851 = vmatprep.subr.bf16.mxu0 0
        %852 = vmatpush1.bf16.msra.mxu0 0
        %853 = vmatprep.subr.bf16.mxu0 0
        %854 = vmatpush1.bf16.msra.mxu0 0
        %855 = vmatprep.subr.bf16.mxu0 0
        %856 = vmatpush1.bf16.msra.mxu0 0
        %857 = vmatprep.subr.bf16.mxu0 0
        %858 = vmatpush1.bf16.msra.mxu0 0
        %859 = vmatprep.subr.bf16.mxu0 0
        %860 = vmatpush1.bf16.msra.mxu0 0
        %861 = vmatprep.mubr.bf16.mxu0 0
        %862 = vmatmul.mubr.bf16.gmra.mrb[0].mxu0 %v569
        %v863 = vpop.f32.mrb[0].mxu0
        %v864 = vadd.f32 0.0, %v863
        %v865 = vpop.f32.mrb[0].mxu0
        %v866 = vadd.f32 0.0, %v865
        %v867 = vpop.f32.mrb[0].mxu0
        %v868 = vadd.f32 0.0, %v867
        %v869 = vpop.f32.mrb[0].mxu0
        %v870 = vadd.f32 0.0, %v869
        %871 = vmatprep.mubr.bf16.mxu0 0
        %872 = vmatmul.mubr.bf16.gmra.mrb[0].mxu0 %v570
        %v873 = vpop.f32.mrb[0].mxu0
        %v874 = vadd.f32 0.0, %v873
        %v875 = vpop.f32.mrb[0].mxu0
        %v876 = vadd.f32 0.0, %v875
        %v877 = vpop.f32.mrb[0].mxu0
        %v878 = vadd.f32 0.0, %v877
        %v879 = vpop.f32.mrb[0].mxu0
        %v880 = vadd.f32 0.0, %v879
        %881 = vmatprep.mubr.bf16.mxu0 0
        %882 = vmatmul.mubr.bf16.gmra.mrb[0].mxu0 %v571
        %v883 = vpop.f32.mrb[0].mxu0
        %v884 = vadd.f32 0.0, %v883
        %v885 = vpop.f32.mrb[0].mxu0
        %v886 = vadd.f32 0.0, %v885
        %v887 = vpop.f32.mrb[0].mxu0
        %v888 = vadd.f32 0.0, %v887
        %v889 = vpop.f32.mrb[0].mxu0
        %v890 = vadd.f32 0.0, %v889
        %891 = vmatprep.mubr.bf16.mxu0 0
        %892 = vmatmul.mubr.bf16.gmra.mrb[0].mxu0 %v572
        %v893 = vpop.f32.mrb[0].mxu0
        %v894 = vadd.f32 0.0, %v893
        %v895 = vpop.f32.mrb[0].mxu0
        %v896 = vadd.f32 0.0, %v895
        %v897 = vpop.f32.mrb[0].mxu0
        %v898 = vadd.f32 0.0, %v897
        %v899 = vpop.f32.mrb[0].mxu0
        %v900 = vadd.f32 0.0, %v899
        %901 = vdwg.mxu0
        %902 = vmatprep.subr.bf16.mxu0 %v752
        %903 = vmatpush1.bf16.msra.mxu0 %v751
        %904 = vmatprep.subr.bf16.mxu0 %v757
        %905 = vmatpush1.bf16.msra.mxu0 %v756
        %906 = vmatprep.subr.bf16.mxu0 %v762
        %907 = vmatpush1.bf16.msra.mxu0 %v761
        %908 = vmatprep.subr.bf16.mxu0 %v767
        %909 = vmatpush1.bf16.msra.mxu0 %v766
        %910 = vmatprep.subr.bf16.mxu0 %v772
        %911 = vmatpush1.bf16.msra.mxu0 %v771
        %912 = vmatprep.subr.bf16.mxu0 %v777
        %913 = vmatpush1.bf16.msra.mxu0 %v776
        %914 = vmatprep.subr.bf16.mxu0 %v782
        %915 = vmatpush1.bf16.msra.mxu0 %v781
        %916 = vmatprep.subr.bf16.mxu0 %v787
        %917 = vmatpush1.bf16.msra.mxu0 %v786
        %918 = vmatprep.subr.bf16.mxu0 0
        %919 = vmatpush1.bf16.msra.mxu0 0
        %920 = vmatprep.subr.bf16.mxu0 0
        %921 = vmatpush1.bf16.msra.mxu0 0
        %922 = vmatprep.subr.bf16.mxu0 0
        %923 = vmatpush1.bf16.msra.mxu0 0
        %924 = vmatprep.subr.bf16.mxu0 0
        %925 = vmatpush1.bf16.msra.mxu0 0
        %926 = vmatprep.subr.bf16.mxu0 0
        %927 = vmatpush1.bf16.msra.mxu0 0
        %928 = vmatprep.subr.bf16.mxu0 0
        %929 = vmatpush1.bf16.msra.mxu0 0
        %930 = vmatprep.subr.bf16.mxu0 0
        %931 = vmatpush1.bf16.msra.mxu0 0
        %932 = vmatprep.subr.bf16.mxu0 0
        %933 = vmatpush1.bf16.msra.mxu0 0
        %934 = vmatprep.mubr.bf16.mxu0 0
        %935 = vmatmul.mubr.bf16.gmra.mrb[0].mxu0 %v569
        %v936 = vpop.f32.mrb[0].mxu0
        %v937 = vadd.f32 0.0, %v936
        %v938 = vpop.f32.mrb[0].mxu0
        %v939 = vadd.f32 0.0, %v938
        %v940 = vpop.f32.mrb[0].mxu0
        %v941 = vadd.f32 0.0, %v940
        %v942 = vpop.f32.mrb[0].mxu0
        %v943 = vadd.f32 0.0, %v942
        %944 = vmatprep.mubr.bf16.mxu0 0
        %945 = vmatmul.mubr.bf16.gmra.mrb[0].mxu0 %v570
        %v946 = vpop.f32.mrb[0].mxu0
        %v947 = vadd.f32 0.0, %v946
        %v948 = vpop.f32.mrb[0].mxu0
        %v949 = vadd.f32 0.0, %v948
        %v950 = vpop.f32.mrb[0].mxu0
        %v951 = vadd.f32 0.0, %v950
        %v952 = vpop.f32.mrb[0].mxu0
        %v953 = vadd.f32 0.0, %v952
        %954 = vmatprep.mubr.bf16.mxu0 0
        %955 = vmatmul.mubr.bf16.gmra.mrb[0].mxu0 %v571
        %v956 = vpop.f32.mrb[0].mxu0
        %v957 = vadd.f32 0.0, %v956
        %v958 = vpop.f32.mrb[0].mxu0
        %v959 = vadd.f32 0.0, %v958
        %v960 = vpop.f32.mrb[0].mxu0
        %v961 = vadd.f32 0.0, %v960
        %v962 = vpop.f32.mrb[0].mxu0
        %v963 = vadd.f32 0.0, %v962
        %964 = vmatprep.mubr.bf16.mxu0 0
        %965 = vmatmul.mubr.bf16.gmra.mrb[0].mxu0 %v572
        %v966 = vpop.f32.mrb[0].mxu0
        %v967 = vadd.f32 0.0, %v966
        %v968 = vpop.f32.mrb[0].mxu0
        %v969 = vadd.f32 0.0, %v968
        %v970 = vpop.f32.mrb[0].mxu0
        %v971 = vadd.f32 0.0, %v970
        %v972 = vpop.f32.mrb[0].mxu0
        %v973 = vadd.f32 0.0, %v972
        %974 = vdwg.mxu0
        %975 = vmatprep.subr.bf16.mxu0 0
        %976 = vmatpush1.bf16.msra.mxu0 %v753
        %977 = vmatprep.subr.bf16.mxu0 0
        %978 = vmatpush1.bf16.msra.mxu0 %v758
        %979 = vmatprep.subr.bf16.mxu0 0
        %980 = vmatpush1.bf16.msra.mxu0 %v763
        %981 = vmatprep.subr.bf16.mxu0 0
        %982 = vmatpush1.bf16.msra.mxu0 %v768
        %983 = vmatprep.subr.bf16.mxu0 0
        %984 = vmatpush1.bf16.msra.mxu0 %v773
        %985 = vmatprep.subr.bf16.mxu0 0
        %986 = vmatpush1.bf16.msra.mxu0 %v778
        %987 = vmatprep.subr.bf16.mxu0 0
        %988 = vmatpush1.bf16.msra.mxu0 %v783
        %989 = vmatprep.subr.bf16.mxu0 0
        %990 = vmatpush1.bf16.msra.mxu0 %v788
        %991 = vmatprep.subr.bf16.mxu0 0
        %992 = vmatpush1.bf16.msra.mxu0 0
        %993 = vmatprep.subr.bf16.mxu0 0
        %994 = vmatpush1.bf16.msra.mxu0 0
        %995 = vmatprep.subr.bf16.mxu0 0
        %996 = vmatpush1.bf16.msra.mxu0 0
        %997 = vmatprep.subr.bf16.mxu0 0
        %998 = vmatpush1.bf16.msra.mxu0 0
        %999 = vmatprep.subr.bf16.mxu0 0
        %1000 = vmatpush1.bf16.msra.mxu0 0
        %1001 = vmatprep.subr.bf16.mxu0 0
        %1002 = vmatpush1.bf16.msra.mxu0 0
        %1003 = vmatprep.subr.bf16.mxu0 0
        %1004 = vmatpush1.bf16.msra.mxu0 0
        %1005 = vmatprep.subr.bf16.mxu0 0
        %1006 = vmatpush1.bf16.msra.mxu0 0
        %1007 = vmatprep.mubr.bf16.mxu0 0
        %1008 = vmatmul.mubr.bf16.gmra.mrb[0].mxu0 %v569
        %v1009 = vpop.f32.mrb[0].mxu0
        %v1010 = vadd.f32 0.0, %v1009
        %v1011 = vpop.f32.mrb[0].mxu0
        %v1012 = vpop.f32.mrb[0].mxu0
        %v1013 = vadd.f32 0.0, %v1012
        %v1014 = vpop.f32.mrb[0].mxu0
        %1015 = vmatprep.mubr.bf16.mxu0 0
        %1016 = vmatmul.mubr.bf16.gmra.mrb[0].mxu0 %v570
        %v1017 = vpop.f32.mrb[0].mxu0
        %v1018 = vadd.f32 0.0, %v1017
        %v1019 = vpop.f32.mrb[0].mxu0
        %v1020 = vpop.f32.mrb[0].mxu0
        %v1021 = vadd.f32 0.0, %v1020
        %v1022 = vpop.f32.mrb[0].mxu0
        %1023 = vmatprep.mubr.bf16.mxu0 0
        %1024 = vmatmul.mubr.bf16.gmra.mrb[0].mxu0 %v571
        %v1025 = vpop.f32.mrb[0].mxu0
        %v1026 = vadd.f32 0.0, %v1025
        %v1027 = vpop.f32.mrb[0].mxu0
        %v1028 = vpop.f32.mrb[0].mxu0
        %v1029 = vadd.f32 0.0, %v1028
        %v1030 = vpop.f32.mrb[0].mxu0
        %1031 = vmatprep.mubr.bf16.mxu0 0
        %1032 = vmatmul.mubr.bf16.gmra.mrb[0].mxu0 %v572
        %v1033 = vpop.f32.mrb[0].mxu0
        %v1034 = vadd.f32 0.0, %v1033
        %v1035 = vpop.f32.mrb[0].mxu0
        %v1036 = vpop.f32.mrb[0].mxu0
        %v1037 = vadd.f32 0.0, %v1036
        %v1038 = vpop.f32.mrb[0].mxu0
        %1039 = vdwg.mxu0
        %v1040 = vld [vmem:[#allocation11] sm:$0xff]
        %v1041 = vld [vmem:[#allocation11 + $0x8] sm:$0xff]
        %v1042 = vld [vmem:[#allocation11 + $0x10] sm:$0xff]
        %v1043 = vld [vmem:[#allocation11 + $0x18] sm:$0xff]
        %v1044 = vld [vmem:[#allocation11 + $0x20] sm:$0xff]
        %v1045 = vld [vmem:[#allocation11 + $0x28] sm:$0xff]
        %v1046 = vld [vmem:[#allocation11 + $0x30] sm:$0xff]
        %v1047 = vld [vmem:[#allocation11 + $0x38] sm:$0xff]
        %v1048 = vld [vmem:[#allocation13] sm:$0xff]
        %v1049 = vld [vmem:[#allocation13 + $0x8] sm:$0xff]
        %v1050 = vld [vmem:[#allocation13 + $0x10] sm:$0xff]
        %v1051 = vld [vmem:[#allocation13 + $0x18] sm:$0xff]
        %v1052 = vld [vmem:[#allocation13 + $0x20] sm:$0xff]
        %v1053 = vld [vmem:[#allocation13 + $0x28] sm:$0xff]
        %v1054 = vld [vmem:[#allocation13 + $0x30] sm:$0xff]
        %v1055 = vld [vmem:[#allocation13 + $0x38] sm:$0xff]
        %v1056 = vmul.f32 %v864, %v1040
        %v1057 = vmul.f32 %v868, %v1041
        %v1058 = vmul.f32 %v874, %v1042
        %v1059 = vmul.f32 %v878, %v1043
        %v1060 = vmul.f32 %v884, %v1044
        %v1061 = vmul.f32 %v888, %v1045
        %v1062 = vmul.f32 %v894, %v1046
        %v1063 = vmul.f32 %v898, %v1047
        %v1064 = vmul.f32 %v939, %v1048
        %v1065 = vmul.f32 %v943, %v1049
        %v1066 = vmul.f32 %v949, %v1050
        %v1067 = vmul.f32 %v953, %v1051
        %v1068 = vmul.f32 %v959, %v1052
        %v1069 = vmul.f32 %v963, %v1053
        %v1070 = vmul.f32 %v969, %v1054
        %v1071 = vmul.f32 %v973, %v1055
        %v1072 = vadd.f32 %v1056, %v1064
        %v1073 = vadd.f32 %v1057, %v1065
        %v1074 = vadd.f32 %v1058, %v1066
        %v1075 = vadd.f32 %v1059, %v1067
        %v1076 = vadd.f32 %v1060, %v1068
        %v1077 = vadd.f32 %v1061, %v1069
        %v1078 = vadd.f32 %v1062, %v1070
        %v1079 = vadd.f32 %v1063, %v1071
        %v1080 = vpack.c.bf16 %v1073, %v1072
        %v1081 = vpack.c.bf16 %v1075, %v1074
        %v1082 = vpack.c.bf16 %v1077, %v1076
        %v1083 = vpack.c.bf16 %v1079, %v1078
        %v1084 = vmul.f32 %v866, %v1040
        %v1085 = vmul.f32 %v870, %v1041
        %v1086 = vmul.f32 %v876, %v1042
        %v1087 = vmul.f32 %v880, %v1043
        %v1088 = vmul.f32 %v886, %v1044
        %v1089 = vmul.f32 %v890, %v1045
        %v1090 = vmul.f32 %v896, %v1046
        %v1091 = vmul.f32 %v900, %v1047
        %v1092 = vmul.f32 %v1010, %v1048
        %v1093 = vmul.f32 %v1013, %v1049
        %v1094 = vmul.f32 %v1018, %v1050
        %v1095 = vmul.f32 %v1021, %v1051
        %v1096 = vmul.f32 %v1026, %v1052
        %v1097 = vmul.f32 %v1029, %v1053
        %v1098 = vmul.f32 %v1034, %v1054
        %v1099 = vmul.f32 %v1037, %v1055
        %v1100 = vadd.f32 %v1084, %v1092
        %v1101 = vadd.f32 %v1085, %v1093
        %v1102 = vadd.f32 %v1086, %v1094
        %v1103 = vadd.f32 %v1087, %v1095
        %v1104 = vadd.f32 %v1088, %v1096
        %v1105 = vadd.f32 %v1089, %v1097
        %v1106 = vadd.f32 %v1090, %v1098
        %v1107 = vadd.f32 %v1091, %v1099
        %v1108 = vpack.c.bf16 %v1101, %v1100
        %v1109 = vpack.c.bf16 %v1103, %v1102
        %v1110 = vpack.c.bf16 %v1105, %v1104
        %v1111 = vpack.c.bf16 %v1107, %v1106
        %v1112 = vpack.c.bf16 %v941, %v937
        %v1113 = vpack.c.bf16 %v951, %v947
        %v1114 = vpack.c.bf16 %v961, %v957
        %v1115 = vpack.c.bf16 %v971, %v967
        %v1116 = vld [vmem:[#allocation14] sm:$0xff]
        %v1117 = vld [vmem:[#allocation14 + $0x8] sm:$0xff]
        %v1118 = vld [vmem:[#allocation14 + $0x10] sm:$0xff]
        %v1119 = vld [vmem:[#allocation14 + $0x18] sm:$0xff]
        %v1120 = vld [vmem:[#allocation14 + $0x20] sm:$0xff]
        %v1121 = vld [vmem:[#allocation14 + $0x28] sm:$0xff]
        %v1122 = vld [vmem:[#allocation14 + $0x30] sm:$0xff]
        %v1123 = vld [vmem:[#allocation14 + $0x38] sm:$0xff]
        %vm1124 = vcmask 261120
        %v1126 = vsel %vm1124, %v1080, 0
        %v1129 = vsel %vm1124, %v1081, 0
        %v1132 = vsel %vm1124, %v1082, 0
        %v1135 = vsel %vm1124, %v1083, 0
        %v1138 = vsel %vm1124, %v1108, 0
        %v1141 = vsel %vm1124, %v1109, 0
        %v1144 = vsel %vm1124, %v1110, 0
        %v1147 = vsel %vm1124, %v1111, 0
        %1149 = vmatprep.subr.bf16.mxu0 0
        %1150 = vmatpush1.bf16.xpose.msra.mxu0 %v1138
        %1151 = vmatprep.subr.bf16.mxu0 0
        %1152 = vmatpush1.bf16.xpose.msra.mxu0 %v1141
        %1153 = vmatprep.subr.bf16.mxu0 0
        %1154 = vmatpush1.bf16.xpose.msra.mxu0 %v1144
        %1155 = vmatprep.subr.bf16.mxu0 0
        %1156 = vmatpush1.bf16.xpose.msra.mxu0 %v1147
        %1157 = vmatprep.subr.bf16.mxu0 0
        %1158 = vmatpush1.bf16.xpose.msra.mxu0 0
        %1159 = vmatprep.subr.bf16.mxu0 0
        %1160 = vmatpush1.bf16.xpose.msra.mxu0 0
        %1161 = vmatprep.subr.bf16.mxu0 0
        %1162 = vmatpush1.bf16.xpose.msra.mxu0 0
        %1163 = vmatprep.subr.bf16.mxu0 0
        %1164 = vmatpush1.bf16.xpose.msra.mxu0 0
        %1165 = vmatprep.subr.bf16.mxu0 0
        %1166 = vmatpush1.bf16.xpose.msra.mxu0 0
        %1167 = vmatprep.subr.bf16.mxu0 0
        %1168 = vmatpush1.bf16.xpose.msra.mxu0 0
        %1169 = vmatprep.subr.bf16.mxu0 0
        %1170 = vmatpush1.bf16.xpose.msra.mxu0 0
        %1171 = vmatprep.subr.bf16.mxu0 0
        %1172 = vmatpush1.bf16.xpose.msra.mxu0 0
        %1173 = vmatprep.subr.bf16.mxu0 0
        %1174 = vmatpush1.bf16.xpose.msra.mxu0 0
        %1175 = vmatprep.subr.bf16.mxu0 0
        %1176 = vmatpush1.bf16.xpose.msra.mxu0 0
        %1177 = vmatprep.subr.bf16.mxu0 0
        %1178 = vmatpush1.bf16.xpose.msra.mxu0 0
        %1179 = vmatprep.subr.bf16.mxu0 0
        %1180 = vmatpush1.bf16.xpose.msra.mxu0 0
        %1181 = vmatprep.mubr.bf16.mxu0 0
        %1182 = vmatmul.mubr.bf16.gmra.mrb[0].mxu0 %v1126
        %v1183 = vpop.f32.mrb[0].mxu0
        %v1184 = vadd.f32 0.0, %v1183
        %v1185 = vpop.f32.mrb[0].mxu0
        %v1186 = vpop.f32.mrb[0].mxu0
        %v1187 = vadd.f32 0.0, %v1186
        %v1188 = vpop.f32.mrb[0].mxu0
        %1189 = vmatprep.mubr.bf16.mxu0 0
        %1190 = vmatmul.mubr.bf16.gmra.mrb[0].mxu0 %v1129
        %v1191 = vpop.f32.mrb[0].mxu0
        %v1192 = vadd.f32 0.0, %v1191
        %v1193 = vpop.f32.mrb[0].mxu0
        %v1194 = vpop.f32.mrb[0].mxu0
        %v1195 = vadd.f32 0.0, %v1194
        %v1196 = vpop.f32.mrb[0].mxu0
        %1197 = vmatprep.mubr.bf16.mxu0 0
        %1198 = vmatmul.mubr.bf16.gmra.mrb[0].mxu0 %v1132
        %v1199 = vpop.f32.mrb[0].mxu0
        %v1200 = vadd.f32 0.0, %v1199
        %v1201 = vpop.f32.mrb[0].mxu0
        %v1202 = vpop.f32.mrb[0].mxu0
        %v1203 = vadd.f32 0.0, %v1202
        %v1204 = vpop.f32.mrb[0].mxu0
        %1205 = vmatprep.mubr.bf16.mxu0 0
        %1206 = vmatmul.mubr.bf16.gmra.mrb[0].mxu0 %v1135
        %v1207 = vpop.f32.mrb[0].mxu0
        %v1208 = vadd.f32 0.0, %v1207
        %v1209 = vpop.f32.mrb[0].mxu0
        %v1210 = vpop.f32.mrb[0].mxu0
        %v1211 = vadd.f32 0.0, %v1210
        %v1212 = vpop.f32.mrb[0].mxu0
        %1213 = vdwg.mxu0
        %v1214 = vmul.f32 %v1184, 0.17677669
        %v1215 = vmul.f32 %v1187, 0.17677669
        %v1216 = vmul.f32 %v1192, 0.17677669
        %v1217 = vmul.f32 %v1195, 0.17677669
        %v1218 = vmul.f32 %v1200, 0.17677669
        %v1219 = vmul.f32 %v1203, 0.17677669
        %v1220 = vmul.f32 %v1208, 0.17677669
        %v1221 = vmul.f32 %v1211, 0.17677669
        %v1222 = vadd.f32 %v1214, %v1116
        %v1223 = vadd.f32 %v1215, %v1117
        %v1224 = vadd.f32 %v1216, %v1118
        %v1225 = vadd.f32 %v1217, %v1119
        %v1226 = vadd.f32 %v1218, %v1120
        %v1227 = vadd.f32 %v1219, %v1121
        %v1228 = vadd.f32 %v1220, %v1122
        %v1229 = vadd.f32 %v1221, %v1123
        %vm1230 = vcmask 523264
        %v1231 = vsel %vm1230, %v1222, -inf
        %1232 = vmax.xlane.f32.xlu0 %v1231
        %v1233 = vpop.xlane.xlu0 %1232
        %v1234 = vsel %vm1230, %v1223, -inf
        %1235 = vmax.xlane.f32.xlu0 %v1234
        %v1236 = vpop.xlane.xlu0 %1235
        %v1237 = vsel %vm1230, %v1224, -inf
        %1238 = vmax.xlane.f32.xlu0 %v1237
        %v1239 = vpop.xlane.xlu0 %1238
        %v1240 = vsel %vm1230, %v1225, -inf
        %1241 = vmax.xlane.f32.xlu0 %v1240
        %v1242 = vpop.xlane.xlu0 %1241
        %v1243 = vsel %vm1230, %v1226, -inf
        %1244 = vmax.xlane.f32.xlu0 %v1243
        %v1245 = vpop.xlane.xlu0 %1244
        %v1246 = vsel %vm1230, %v1227, -inf
        %1247 = vmax.xlane.f32.xlu0 %v1246
        %v1248 = vpop.xlane.xlu0 %1247
        %v1249 = vsel %vm1230, %v1228, -inf
        %1250 = vmax.xlane.f32.xlu0 %v1249
        %v1251 = vpop.xlane.xlu0 %1250
        %v1252 = vsel %vm1230, %v1229, -inf
        %1253 = vmax.xlane.f32.xlu0 %v1252
        %v1254 = vpop.xlane.xlu0 %1253
        %v1255 = vsub.f32 %v1222, %v1233
        %v1256 = vsub.f32 %v1223, %v1236
        %v1257 = vsub.f32 %v1224, %v1239
        %v1258 = vsub.f32 %v1225, %v1242
        %v1259 = vsub.f32 %v1226, %v1245
        %v1260 = vsub.f32 %v1227, %v1248
        %v1261 = vsub.f32 %v1228, %v1251
        %v1262 = vsub.f32 %v1229, %v1254
        %v1263 = vmul.f32 %v1255, 1.442695
        %v1264 = vpow.pop %v1263
        %v1265 = vmul.f32 %v1256, 1.442695
        %v1266 = vpow.pop %v1265
        %v1267 = vmul.f32 %v1257, 1.442695
        %v1268 = vpow.pop %v1267
        %v1269 = vmul.f32 %v1258, 1.442695
        %v1270 = vpow.pop %v1269
        %v1271 = vmul.f32 %v1259, 1.442695
        %v1272 = vpow.pop %v1271
        %v1273 = vmul.f32 %v1260, 1.442695
        %v1274 = vpow.pop %v1273
        %v1275 = vmul.f32 %v1261, 1.442695
        %v1276 = vpow.pop %v1275
        %v1277 = vmul.f32 %v1262, 1.442695
        %v1278 = vpow.pop %v1277
        %v1279 = vsel %vm1230, %v1264, 0.0
        %1280 = vadd.xlane.f32.xlu0 %v1279
        %v1281 = vpop.xlane.xlu0 %1280
        %v1282 = vsel %vm1230, %v1266, 0.0
        %1283 = vadd.xlane.f32.xlu0 %v1282
        %v1284 = vpop.xlane.xlu0 %1283
        %v1285 = vsel %vm1230, %v1268, 0.0
        %1286 = vadd.xlane.f32.xlu0 %v1285
        %v1287 = vpop.xlane.xlu0 %1286
        %v1288 = vsel %vm1230, %v1270, 0.0
        %1289 = vadd.xlane.f32.xlu0 %v1288
        %v1290 = vpop.xlane.xlu0 %1289
        %v1291 = vsel %vm1230, %v1272, 0.0
        %1292 = vadd.xlane.f32.xlu0 %v1291
        %v1293 = vpop.xlane.xlu0 %1292
        %v1294 = vsel %vm1230, %v1274, 0.0
        %1295 = vadd.xlane.f32.xlu0 %v1294
        %v1296 = vpop.xlane.xlu0 %1295
        %v1297 = vsel %vm1230, %v1276, 0.0
        %1298 = vadd.xlane.f32.xlu0 %v1297
        %v1299 = vpop.xlane.xlu0 %1298
        %v1300 = vsel %vm1230, %v1278, 0.0
        %1301 = vadd.xlane.f32.xlu0 %v1300
        %v1302 = vpop.xlane.xlu0 %1301
        %v1303 = vrcp.pop %v1281
        %v1304 = vrcp.pop %v1284
        %v1305 = vrcp.pop %v1287
        %v1306 = vrcp.pop %v1290
        %v1307 = vrcp.pop %v1293
        %v1308 = vrcp.pop %v1296
        %v1309 = vrcp.pop %v1299
        %v1310 = vrcp.pop %v1302
        %v1311 = vmul.f32 %v1264, %v1303
        %v1312 = vmul.f32 %v1266, %v1304
        %v1313 = vmul.f32 %v1268, %v1305
        %v1314 = vmul.f32 %v1270, %v1306
        %v1315 = vmul.f32 %v1272, %v1307
        %v1316 = vmul.f32 %v1274, %v1308
        %v1317 = vmul.f32 %v1276, %v1309
        %v1318 = vmul.f32 %v1278, %v1310
        %v1319 = vpack.c.bf16 %v1312, %v1311
        %v1320 = vpack.c.bf16 %v1314, %v1313
        %v1321 = vpack.c.bf16 %v1316, %v1315
        %v1322 = vpack.c.bf16 %v1318, %v1317
        %v1324 = vsel %vm1230, %v1319, 0
        %v1327 = vsel %vm1230, %v1320, 0
        %v1330 = vsel %vm1230, %v1321, 0
        %v1333 = vsel %vm1230, %v1322, 0
        %1335 = vmatprep.subr.bf16.mxu0 0
        %1336 = vmatpush1.bf16.msra.mxu0 %v1112
        %1337 = vmatprep.subr.bf16.mxu0 0
        %1338 = vmatpush1.bf16.msra.mxu0 %v1113
        %1339 = vmatprep.subr.bf16.mxu0 0
        %1340 = vmatpush1.bf16.msra.mxu0 %v1114
        %1341 = vmatprep.subr.bf16.mxu0 0
        %1342 = vmatpush1.bf16.msra.mxu0 %v1115
        %1343 = vmatprep.subr.bf16.mxu0 0
        %1344 = vmatpush1.bf16.msra.mxu0 0
        %1345 = vmatprep.subr.bf16.mxu0 0
        %1346 = vmatpush1.bf16.msra.mxu0 0
        %1347 = vmatprep.subr.bf16.mxu0 0
        %1348 = vmatpush1.bf16.msra.mxu0 0
        %1349 = vmatprep.subr.bf16.mxu0 0
        %1350 = vmatpush1.bf16.msra.mxu0 0
        %1351 = vmatprep.subr.bf16.mxu0 0
        %1352 = vmatpush1.bf16.msra.mxu0 0
        %1353 = vmatprep.subr.bf16.mxu0 0
        %1354 = vmatpush1.bf16.msra.mxu0 0
        %1355 = vmatprep.subr.bf16.mxu0 0
        %1356 = vmatpush1.bf16.msra.mxu0 0
        %1357 = vmatprep.subr.bf16.mxu0 0
        %1358 = vmatpush1.bf16.msra.mxu0 0
        %1359 = vmatprep.subr.bf16.mxu0 0
        %1360 = vmatpush1.bf16.msra.mxu0 0
        %1361 = vmatprep.subr.bf16.mxu0 0
        %1362 = vmatpush1.bf16.msra.mxu0 0
        %1363 = vmatprep.subr.bf16.mxu0 0
        %1364 = vmatpush1.bf16.msra.mxu0 0
        %1365 = vmatprep.subr.bf16.mxu0 0
        %1366 = vmatpush1.bf16.msra.mxu0 0
        %1367 = vmatprep.mubr.bf16.mxu0 0
        %1368 = vmatmul.mubr.bf16.gmra.mrb[0].mxu0 %v1324
        %v1369 = vpop.f32.mrb[0].mxu0
        %v1370 = vadd.f32 0.0, %v1369
        %v1371 = vpop.f32.mrb[0].mxu0
        %v1372 = vpop.f32.mrb[0].mxu0
        %v1373 = vadd.f32 0.0, %v1372
        %v1374 = vpop.f32.mrb[0].mxu0
        %1375 = vmatprep.mubr.bf16.mxu0 0
        %1376 = vmatmul.mubr.bf16.gmra.mrb[0].mxu0 %v1327
        %v1377 = vpop.f32.mrb[0].mxu0
        %v1378 = vadd.f32 0.0, %v1377
        %v1379 = vpop.f32.mrb[0].mxu0
        %v1380 = vpop.f32.mrb[0].mxu0
        %v1381 = vadd.f32 0.0, %v1380
        %v1382 = vpop.f32.mrb[0].mxu0
        %1383 = vmatprep.mubr.bf16.mxu0 0
        %1384 = vmatmul.mubr.bf16.gmra.mrb[0].mxu0 %v1330
        %v1385 = vpop.f32.mrb[0].mxu0
        %v1386 = vadd.f32 0.0, %v1385
        %v1387 = vpop.f32.mrb[0].mxu0
        %v1388 = vpop.f32.mrb[0].mxu0
        %v1389 = vadd.f32 0.0, %v1388
        %v1390 = vpop.f32.mrb[0].mxu0
        %1391 = vmatprep.mubr.bf16.mxu0 0
        %1392 = vmatmul.mubr.bf16.gmra.mrb[0].mxu0 %v1333
        %v1393 = vpop.f32.mrb[0].mxu0
        %v1394 = vadd.f32 0.0, %v1393
        %v1395 = vpop.f32.mrb[0].mxu0
        %v1396 = vpop.f32.mrb[0].mxu0
        %v1397 = vadd.f32 0.0, %v1396
        %v1398 = vpop.f32.mrb[0].mxu0
        %1399 = vdwg.mxu0
        %1404 = vrot.lane.b32.xlu0 %v1080, 96
        %v1405 = vpop.permute.xlu0 %1404
        %1406 = vrot.lane.b32.xlu0 %v1081, 96
        %v1407 = vpop.permute.xlu0 %1406
        %1408 = vrot.lane.b32.xlu0 %v1082, 96
        %v1409 = vpop.permute.xlu0 %1408
        %1410 = vrot.lane.b32.xlu0 %v1083, 96
        %v1411 = vpop.permute.xlu0 %1410
        %1416 = vrot.lane.b32.xlu0 %v1108, 96
        %v1417 = vpop.permute.xlu0 %1416
        %1418 = vrot.lane.b32.xlu0 %v1109, 96
        %v1419 = vpop.permute.xlu0 %1418
        %1420 = vrot.lane.b32.xlu0 %v1110, 96
        %v1421 = vpop.permute.xlu0 %1420
        %1422 = vrot.lane.b32.xlu0 %v1111, 96
        %v1423 = vpop.permute.xlu0 %1422
        %v1425 = vsel %vm1124, %v1405, 0
        %v1428 = vsel %vm1124, %v1407, 0
        %v1431 = vsel %vm1124, %v1409, 0
        %v1434 = vsel %vm1124, %v1411, 0
        %v1437 = vsel %vm1124, %v1417, 0
        %v1440 = vsel %vm1124, %v1419, 0
        %v1443 = vsel %vm1124, %v1421, 0
        %v1446 = vsel %vm1124, %v1423, 0
        %1448 = vmatprep.subr.bf16.mxu0 0
        %1449 = vmatpush1.bf16.xpose.msra.mxu0 %v1437
        %1450 = vmatprep.subr.bf16.mxu0 0
        %1451 = vmatpush1.bf16.xpose.msra.mxu0 %v1440
        %1452 = vmatprep.subr.bf16.mxu0 0
        %1453 = vmatpush1.bf16.xpose.msra.mxu0 %v1443
        %1454 = vmatprep.subr.bf16.mxu0 0
        %1455 = vmatpush1.bf16.xpose.msra.mxu0 %v1446
        %1456 = vmatprep.subr.bf16.mxu0 0
        %1457 = vmatpush1.bf16.xpose.msra.mxu0 0
        %1458 = vmatprep.subr.bf16.mxu0 0
        %1459 = vmatpush1.bf16.xpose.msra.mxu0 0
        %1460 = vmatprep.subr.bf16.mxu0 0
        %1461 = vmatpush1.bf16.xpose.msra.mxu0 0
        %1462 = vmatprep.subr.bf16.mxu0 0
        %1463 = vmatpush1.bf16.xpose.msra.mxu0 0
        %1464 = vmatprep.subr.bf16.mxu0 0
        %1465 = vmatpush1.bf16.xpose.msra.mxu0 0
        %1466 = vmatprep.subr.bf16.mxu0 0
        %1467 = vmatpush1.bf16.xpose.msra.mxu0 0
        %1468 = vmatprep.subr.bf16.mxu0 0
        %1469 = vmatpush1.bf16.xpose.msra.mxu0 0
        %1470 = vmatprep.subr.bf16.mxu0 0
        %1471 = vmatpush1.bf16.xpose.msra.mxu0 0
        %1472 = vmatprep.subr.bf16.mxu0 0
        %1473 = vmatpush1.bf16.xpose.msra.mxu0 0
        %1474 = vmatprep.subr.bf16.mxu0 0
        %1475 = vmatpush1.bf16.xpose.msra.mxu0 0
        %1476 = vmatprep.subr.bf16.mxu0 0
        %1477 = vmatpush1.bf16.xpose.msra.mxu0 0
        %1478 = vmatprep.subr.bf16.mxu0 0
        %1479 = vmatpush1.bf16.xpose.msra.mxu0 0
        %1480 = vmatprep.mubr.bf16.mxu0 0
        %1481 = vmatmul.mubr.bf16.gmra.mrb[0].mxu0 %v1425
        %v1482 = vpop.f32.mrb[0].mxu0
        %v1483 = vadd.f32 0.0, %v1482
        %v1484 = vpop.f32.mrb[0].mxu0
        %v1485 = vpop.f32.mrb[0].mxu0
        %v1486 = vadd.f32 0.0, %v1485
        %v1487 = vpop.f32.mrb[0].mxu0
        %1488 = vmatprep.mubr.bf16.mxu0 0
        %1489 = vmatmul.mubr.bf16.gmra.mrb[0].mxu0 %v1428
        %v1490 = vpop.f32.mrb[0].mxu0
        %v1491 = vadd.f32 0.0, %v1490
        %v1492 = vpop.f32.mrb[0].mxu0
        %v1493 = vpop.f32.mrb[0].mxu0
        %v1494 = vadd.f32 0.0, %v1493
        %v1495 = vpop.f32.mrb[0].mxu0
        %1496 = vmatprep.mubr.bf16.mxu0 0
        %1497 = vmatmul.mubr.bf16.gmra.mrb[0].mxu0 %v1431
        %v1498 = vpop.f32.mrb[0].mxu0
        %v1499 = vadd.f32 0.0, %v1498
        %v1500 = vpop.f32.mrb[0].mxu0
        %v1501 = vpop.f32.mrb[0].mxu0
        %v1502 = vadd.f32 0.0, %v1501
        %v1503 = vpop.f32.mrb[0].mxu0
        %1504 = vmatprep.mubr.bf16.mxu0 0
        %1505 = vmatmul.mubr.bf16.gmra.mrb[0].mxu0 %v1434
        %v1506 = vpop.f32.mrb[0].mxu0
        %v1507 = vadd.f32 0.0, %v1506
        %v1508 = vpop.f32.mrb[0].mxu0
        %v1509 = vpop.f32.mrb[0].mxu0
        %v1510 = vadd.f32 0.0, %v1509
        %v1511 = vpop.f32.mrb[0].mxu0
        %1512 = vdwg.mxu0
        %v1513 = vmul.f32 %v1483, 0.17677669
        %v1514 = vmul.f32 %v1486, 0.17677669
        %v1515 = vmul.f32 %v1491, 0.17677669
        %v1516 = vmul.f32 %v1494, 0.17677669
        %v1517 = vmul.f32 %v1499, 0.17677669
        %v1518 = vmul.f32 %v1502, 0.17677669
        %v1519 = vmul.f32 %v1507, 0.17677669
        %v1520 = vmul.f32 %v1510, 0.17677669
        %v1521 = vadd.f32 %v1513, %v1116
        %v1522 = vadd.f32 %v1514, %v1117
        %v1523 = vadd.f32 %v1515, %v1118
        %v1524 = vadd.f32 %v1516, %v1119
        %v1525 = vadd.f32 %v1517, %v1120
        %v1526 = vadd.f32 %v1518, %v1121
        %v1527 = vadd.f32 %v1519, %v1122
        %v1528 = vadd.f32 %v1520, %v1123
        %v1529 = vsel %vm1230, %v1521, -inf
        %1530 = vmax.xlane.f32.xlu0 %v1529
        %v1531 = vpop.xlane.xlu0 %1530
        %v1532 = vsel %vm1230, %v1522, -inf
        %1533 = vmax.xlane.f32.xlu0 %v1532
        %v1534 = vpop.xlane.xlu0 %1533
        %v1535 = vsel %vm1230, %v1523, -inf
        %1536 = vmax.xlane.f32.xlu0 %v1535
        %v1537 = vpop.xlane.xlu0 %1536
        %v1538 = vsel %vm1230, %v1524, -inf
        %1539 = vmax.xlane.f32.xlu0 %v1538
        %v1540 = vpop.xlane.xlu0 %1539
        %v1541 = vsel %vm1230, %v1525, -inf
        %1542 = vmax.xlane.f32.xlu0 %v1541
        %v1543 = vpop.xlane.xlu0 %1542
        %v1544 = vsel %vm1230, %v1526, -inf
        %1545 = vmax.xlane.f32.xlu0 %v1544
        %v1546 = vpop.xlane.xlu0 %1545
        %v1547 = vsel %vm1230, %v1527, -inf
        %1548 = vmax.xlane.f32.xlu0 %v1547
        %v1549 = vpop.xlane.xlu0 %1548
        %v1550 = vsel %vm1230, %v1528, -inf
        %1551 = vmax.xlane.f32.xlu0 %v1550
        %v1552 = vpop.xlane.xlu0 %1551
        %v1553 = vsub.f32 %v1521, %v1531
        %v1554 = vsub.f32 %v1522, %v1534
        %v1555 = vsub.f32 %v1523, %v1537
        %v1556 = vsub.f32 %v1524, %v1540
        %v1557 = vsub.f32 %v1525, %v1543
        %v1558 = vsub.f32 %v1526, %v1546
        %v1559 = vsub.f32 %v1527, %v1549
        %v1560 = vsub.f32 %v1528, %v1552
        %v1561 = vmul.f32 %v1553, 1.442695
        %v1562 = vpow.pop %v1561
        %v1563 = vmul.f32 %v1554, 1.442695
        %v1564 = vpow.pop %v1563
        %v1565 = vmul.f32 %v1555, 1.442695
        %v1566 = vpow.pop %v1565
        %v1567 = vmul.f32 %v1556, 1.442695
        %v1568 = vpow.pop %v1567
        %v1569 = vmul.f32 %v1557, 1.442695
        %v1570 = vpow.pop %v1569
        %v1571 = vmul.f32 %v1558, 1.442695
        %v1572 = vpow.pop %v1571
        %v1573 = vmul.f32 %v1559, 1.442695
        %v1574 = vpow.pop %v1573
        %v1575 = vmul.f32 %v1560, 1.442695
        %v1576 = vpow.pop %v1575
        %v1577 = vsel %vm1230, %v1562, 0.0
        %1578 = vadd.xlane.f32.xlu0 %v1577
        %v1579 = vpop.xlane.xlu0 %1578
        %v1580 = vsel %vm1230, %v1564, 0.0
        %1581 = vadd.xlane.f32.xlu0 %v1580
        %v1582 = vpop.xlane.xlu0 %1581
        %v1583 = vsel %vm1230, %v1566, 0.0
        %1584 = vadd.xlane.f32.xlu0 %v1583
        %v1585 = vpop.xlane.xlu0 %1584
        %v1586 = vsel %vm1230, %v1568, 0.0
        %1587 = vadd.xlane.f32.xlu0 %v1586
        %v1588 = vpop.xlane.xlu0 %1587
        %v1589 = vsel %vm1230, %v1570, 0.0
        %1590 = vadd.xlane.f32.xlu0 %v1589
        %v1591 = vpop.xlane.xlu0 %1590
        %v1592 = vsel %vm1230, %v1572, 0.0
        %1593 = vadd.xlane.f32.xlu0 %v1592
        %v1594 = vpop.xlane.xlu0 %1593
        %v1595 = vsel %vm1230, %v1574, 0.0
        %1596 = vadd.xlane.f32.xlu0 %v1595
        %v1597 = vpop.xlane.xlu0 %1596
        %v1598 = vsel %vm1230, %v1576, 0.0
        %1599 = vadd.xlane.f32.xlu0 %v1598
        %v1600 = vpop.xlane.xlu0 %1599
        %v1601 = vrcp.pop %v1579
        %v1602 = vrcp.pop %v1582
        %v1603 = vrcp.pop %v1585
        %v1604 = vrcp.pop %v1588
        %v1605 = vrcp.pop %v1591
        %v1606 = vrcp.pop %v1594
        %v1607 = vrcp.pop %v1597
        %v1608 = vrcp.pop %v1600
        %v1609 = vmul.f32 %v1562, %v1601
        %v1610 = vmul.f32 %v1564, %v1602
        %v1611 = vmul.f32 %v1566, %v1603
        %v1612 = vmul.f32 %v1568, %v1604
        %v1613 = vmul.f32 %v1570, %v1605
        %v1614 = vmul.f32 %v1572, %v1606
        %v1615 = vmul.f32 %v1574, %v1607
        %v1616 = vmul.f32 %v1576, %v1608
        %v1617 = vpack.c.bf16 %v1610, %v1609
        %v1618 = vpack.c.bf16 %v1612, %v1611
        %v1619 = vpack.c.bf16 %v1614, %v1613
        %v1620 = vpack.c.bf16 %v1616, %v1615
        %1625 = vrot.lane.b32.xlu0 %v1112, 96
        %v1626 = vpop.permute.xlu0 %1625
        %1627 = vrot.lane.b32.xlu0 %v1113, 96
        %v1628 = vpop.permute.xlu0 %1627
        %1629 = vrot.lane.b32.xlu0 %v1114, 96
        %v1630 = vpop.permute.xlu0 %1629
        %1631 = vrot.lane.b32.xlu0 %v1115, 96
        %v1632 = vpop.permute.xlu0 %1631
        %v1638 = vsel %vm1230, %v1617, 0
        %v1641 = vsel %vm1230, %v1618, 0
        %v1644 = vsel %vm1230, %v1619, 0
        %v1647 = vsel %vm1230, %v1620, 0
        %1649 = vmatprep.subr.bf16.mxu0 0
        %1650 = vmatpush1.bf16.msra.mxu0 %v1626
        %1651 = vmatprep.subr.bf16.mxu0 0
        %1652 = vmatpush1.bf16.msra.mxu0 %v1628
        %1653 = vmatprep.subr.bf16.mxu0 0
        %1654 = vmatpush1.bf16.msra.mxu0 %v1630
        %1655 = vmatprep.subr.bf16.mxu0 0
        %1656 = vmatpush1.bf16.msra.mxu0 %v1632
        %1657 = vmatprep.subr.bf16.mxu0 0
        %1658 = vmatpush1.bf16.msra.mxu0 0
        %1659 = vmatprep.subr.bf16.mxu0 0
        %1660 = vmatpush1.bf16.msra.mxu0 0
        %1661 = vmatprep.subr.bf16.mxu0 0
        %1662 = vmatpush1.bf16.msra.mxu0 0
        %1663 = vmatprep.subr.bf16.mxu0 0
        %1664 = vmatpush1.bf16.msra.mxu0 0
        %1665 = vmatprep.subr.bf16.mxu0 0
        %1666 = vmatpush1.bf16.msra.mxu0 0
        %1667 = vmatprep.subr.bf16.mxu0 0
        %1668 = vmatpush1.bf16.msra.mxu0 0
        %1669 = vmatprep.subr.bf16.mxu0 0
        %1670 = vmatpush1.bf16.msra.mxu0 0
        %1671 = vmatprep.subr.bf16.mxu0 0
        %1672 = vmatpush1.bf16.msra.mxu0 0
        %1673 = vmatprep.subr.bf16.mxu0 0
        %1674 = vmatpush1.bf16.msra.mxu0 0
        %1675 = vmatprep.subr.bf16.mxu0 0
        %1676 = vmatpush1.bf16.msra.mxu0 0
        %1677 = vmatprep.subr.bf16.mxu0 0
        %1678 = vmatpush1.bf16.msra.mxu0 0
        %1679 = vmatprep.subr.bf16.mxu0 0
        %1680 = vmatpush1.bf16.msra.mxu0 0
        %1681 = vmatprep.mubr.bf16.mxu0 0
        %1682 = vmatmul.mubr.bf16.gmra.mrb[0].mxu0 %v1638
        %v1683 = vpop.f32.mrb[0].mxu0
        %v1684 = vadd.f32 0.0, %v1683
        %v1685 = vpop.f32.mrb[0].mxu0
        %v1686 = vpop.f32.mrb[0].mxu0
        %v1687 = vadd.f32 0.0, %v1686
        %v1688 = vpop.f32.mrb[0].mxu0
        %1689 = vmatprep.mubr.bf16.mxu0 0
        %1690 = vmatmul.mubr.bf16.gmra.mrb[0].mxu0 %v1641
        %v1691 = vpop.f32.mrb[0].mxu0
        %v1692 = vadd.f32 0.0, %v1691
        %v1693 = vpop.f32.mrb[0].mxu0
        %v1694 = vpop.f32.mrb[0].mxu0
        %v1695 = vadd.f32 0.0, %v1694
        %v1696 = vpop.f32.mrb[0].mxu0
        %1697 = vmatprep.mubr.bf16.mxu0 0
        %1698 = vmatmul.mubr.bf16.gmra.mrb[0].mxu0 %v1644
        %v1699 = vpop.f32.mrb[0].mxu0
        %v1700 = vadd.f32 0.0, %v1699
        %v1701 = vpop.f32.mrb[0].mxu0
        %v1702 = vpop.f32.mrb[0].mxu0
        %v1703 = vadd.f32 0.0, %v1702
        %v1704 = vpop.f32.mrb[0].mxu0
        %1705 = vmatprep.mubr.bf16.mxu0 0
        %1706 = vmatmul.mubr.bf16.gmra.mrb[0].mxu0 %v1647
        %v1707 = vpop.f32.mrb[0].mxu0
        %v1708 = vadd.f32 0.0, %v1707
        %v1709 = vpop.f32.mrb[0].mxu0
        %v1710 = vpop.f32.mrb[0].mxu0
        %v1711 = vadd.f32 0.0, %v1710
        %v1712 = vpop.f32.mrb[0].mxu0
        %1713 = vdwg.mxu0
        %1714 = vrot.lane.b32.xlu0 %v1080, 64
        %v1715 = vpop.permute.xlu0 %1714
        %1716 = vrot.lane.b32.xlu0 %v1081, 64
        %v1717 = vpop.permute.xlu0 %1716
        %1718 = vrot.lane.b32.xlu0 %v1082, 64
        %v1719 = vpop.permute.xlu0 %1718
        %1720 = vrot.lane.b32.xlu0 %v1083, 64
        %v1721 = vpop.permute.xlu0 %1720
        %1722 = vrot.lane.b32.xlu0 %v1108, 64
        %v1723 = vpop.permute.xlu0 %1722
        %1724 = vrot.lane.b32.xlu0 %v1109, 64
        %v1725 = vpop.permute.xlu0 %1724
        %1726 = vrot.lane.b32.xlu0 %v1110, 64
        %v1727 = vpop.permute.xlu0 %1726
        %1728 = vrot.lane.b32.xlu0 %v1111, 64
        %v1729 = vpop.permute.xlu0 %1728
        %v1731 = vsel %vm1124, %v1715, 0
        %v1734 = vsel %vm1124, %v1717, 0
        %v1737 = vsel %vm1124, %v1719, 0
        %v1740 = vsel %vm1124, %v1721, 0
        %v1743 = vsel %vm1124, %v1723, 0
        %v1746 = vsel %vm1124, %v1725, 0
        %v1749 = vsel %vm1124, %v1727, 0
        %v1752 = vsel %vm1124, %v1729, 0
        %1754 = vmatprep.subr.bf16.mxu0 0
        %1755 = vmatpush1.bf16.xpose.msra.mxu0 %v1743
        %1756 = vmatprep.subr.bf16.mxu0 0
        %1757 = vmatpush1.bf16.xpose.msra.mxu0 %v1746
        %1758 = vmatprep.subr.bf16.mxu0 0
        %1759 = vmatpush1.bf16.xpose.msra.mxu0 %v1749
        %1760 = vmatprep.subr.bf16.mxu0 0
        %1761 = vmatpush1.bf16.xpose.msra.mxu0 %v1752
        %1762 = vmatprep.subr.bf16.mxu0 0
        %1763 = vmatpush1.bf16.xpose.msra.mxu0 0
        %1764 = vmatprep.subr.bf16.mxu0 0
        %1765 = vmatpush1.bf16.xpose.msra.mxu0 0
        %1766 = vmatprep.subr.bf16.mxu0 0
        %1767 = vmatpush1.bf16.xpose.msra.mxu0 0
        %1768 = vmatprep.subr.bf16.mxu0 0
        %1769 = vmatpush1.bf16.xpose.msra.mxu0 0
        %1770 = vmatprep.subr.bf16.mxu0 0
        %1771 = vmatpush1.bf16.xpose.msra.mxu0 0
        %1772 = vmatprep.subr.bf16.mxu0 0
        %1773 = vmatpush1.bf16.xpose.msra.mxu0 0
        %1774 = vmatprep.subr.bf16.mxu0 0
        %1775 = vmatpush1.bf16.xpose.msra.mxu0 0
        %1776 = vmatprep.subr.bf16.mxu0 0
        %1777 = vmatpush1.bf16.xpose.msra.mxu0 0
        %1778 = vmatprep.subr.bf16.mxu0 0
        %1779 = vmatpush1.bf16.xpose.msra.mxu0 0
        %1780 = vmatprep.subr.bf16.mxu0 0
        %1781 = vmatpush1.bf16.xpose.msra.mxu0 0
        %1782 = vmatprep.subr.bf16.mxu0 0
        %1783 = vmatpush1.bf16.xpose.msra.mxu0 0
        %1784 = vmatprep.subr.bf16.mxu0 0
        %1785 = vmatpush1.bf16.xpose.msra.mxu0 0
        %1786 = vmatprep.mubr.bf16.mxu0 0
        %1787 = vmatmul.mubr.bf16.gmra.mrb[0].mxu0 %v1731
        %v1788 = vpop.f32.mrb[0].mxu0
        %v1789 = vadd.f32 0.0, %v1788
        %v1790 = vpop.f32.mrb[0].mxu0
        %v1791 = vpop.f32.mrb[0].mxu0
        %v1792 = vadd.f32 0.0, %v1791
        %v1793 = vpop.f32.mrb[0].mxu0
        %1794 = vmatprep.mubr.bf16.mxu0 0
        %1795 = vmatmul.mubr.bf16.gmra.mrb[0].mxu0 %v1734
        %v1796 = vpop.f32.mrb[0].mxu0
        %v1797 = vadd.f32 0.0, %v1796
        %v1798 = vpop.f32.mrb[0].mxu0
        %v1799 = vpop.f32.mrb[0].mxu0
        %v1800 = vadd.f32 0.0, %v1799
        %v1801 = vpop.f32.mrb[0].mxu0
        %1802 = vmatprep.mubr.bf16.mxu0 0
        %1803 = vmatmul.mubr.bf16.gmra.mrb[0].mxu0 %v1737
        %v1804 = vpop.f32.mrb[0].mxu0
        %v1805 = vadd.f32 0.0, %v1804
        %v1806 = vpop.f32.mrb[0].mxu0
        %v1807 = vpop.f32.mrb[0].mxu0
        %v1808 = vadd.f32 0.0, %v1807
        %v1809 = vpop.f32.mrb[0].mxu0
        %1810 = vmatprep.mubr.bf16.mxu0 0
        %1811 = vmatmul.mubr.bf16.gmra.mrb[0].mxu0 %v1740
        %v1812 = vpop.f32.mrb[0].mxu0
        %v1813 = vadd.f32 0.0, %v1812
        %v1814 = vpop.f32.mrb[0].mxu0
        %v1815 = vpop.f32.mrb[0].mxu0
        %v1816 = vadd.f32 0.0, %v1815
        %v1817 = vpop.f32.mrb[0].mxu0
        %1818 = vdwg.mxu0
        %v1819 = vmul.f32 %v1789, 0.17677669
        %v1820 = vmul.f32 %v1792, 0.17677669
        %v1821 = vmul.f32 %v1797, 0.17677669
        %v1822 = vmul.f32 %v1800, 0.17677669
        %v1823 = vmul.f32 %v1805, 0.17677669
        %v1824 = vmul.f32 %v1808, 0.17677669
        %v1825 = vmul.f32 %v1813, 0.17677669
        %v1826 = vmul.f32 %v1816, 0.17677669
        %v1827 = vadd.f32 %v1819, %v1116
        %v1828 = vadd.f32 %v1820, %v1117
        %v1829 = vadd.f32 %v1821, %v1118
        %v1830 = vadd.f32 %v1822, %v1119
        %v1831 = vadd.f32 %v1823, %v1120
        %v1832 = vadd.f32 %v1824, %v1121
        %v1833 = vadd.f32 %v1825, %v1122
        %v1834 = vadd.f32 %v1826, %v1123
        %v1835 = vsel %vm1230, %v1827, -inf
        %1836 = vmax.xlane.f32.xlu0 %v1835
        %v1837 = vpop.xlane.xlu0 %1836
        %v1838 = vsel %vm1230, %v1828, -inf
        %1839 = vmax.xlane.f32.xlu0 %v1838
        %v1840 = vpop.xlane.xlu0 %1839
        %v1841 = vsel %vm1230, %v1829, -inf
        %1842 = vmax.xlane.f32.xlu0 %v1841
        %v1843 = vpop.xlane.xlu0 %1842
        %v1844 = vsel %vm1230, %v1830, -inf
        %1845 = vmax.xlane.f32.xlu0 %v1844
        %v1846 = vpop.xlane.xlu0 %1845
        %v1847 = vsel %vm1230, %v1831, -inf
        %1848 = vmax.xlane.f32.xlu0 %v1847
        %v1849 = vpop.xlane.xlu0 %1848
        %v1850 = vsel %vm1230, %v1832, -inf
        %1851 = vmax.xlane.f32.xlu0 %v1850
        %v1852 = vpop.xlane.xlu0 %1851
        %v1853 = vsel %vm1230, %v1833, -inf
        %1854 = vmax.xlane.f32.xlu0 %v1853
        %v1855 = vpop.xlane.xlu0 %1854
        %v1856 = vsel %vm1230, %v1834, -inf
        %1857 = vmax.xlane.f32.xlu0 %v1856
        %v1858 = vpop.xlane.xlu0 %1857
        %v1859 = vsub.f32 %v1827, %v1837
        %v1860 = vsub.f32 %v1828, %v1840
        %v1861 = vsub.f32 %v1829, %v1843
        %v1862 = vsub.f32 %v1830, %v1846
        %v1863 = vsub.f32 %v1831, %v1849
        %v1864 = vsub.f32 %v1832, %v1852
        %v1865 = vsub.f32 %v1833, %v1855
        %v1866 = vsub.f32 %v1834, %v1858
        %v1867 = vmul.f32 %v1859, 1.442695
        %v1868 = vpow.pop %v1867
        %v1869 = vmul.f32 %v1860, 1.442695
        %v1870 = vpow.pop %v1869
        %v1871 = vmul.f32 %v1861, 1.442695
        %v1872 = vpow.pop %v1871
        %v1873 = vmul.f32 %v1862, 1.442695
        %v1874 = vpow.pop %v1873
        %v1875 = vmul.f32 %v1863, 1.442695
        %v1876 = vpow.pop %v1875
        %v1877 = vmul.f32 %v1864, 1.442695
        %v1878 = vpow.pop %v1877
        %v1879 = vmul.f32 %v1865, 1.442695
        %v1880 = vpow.pop %v1879
        %v1881 = vmul.f32 %v1866, 1.442695
        %v1882 = vpow.pop %v1881
        %v1883 = vsel %vm1230, %v1868, 0.0
        %1884 = vadd.xlane.f32.xlu0 %v1883
        %v1885 = vpop.xlane.xlu0 %1884
        %v1886 = vsel %vm1230, %v1870, 0.0
        %1887 = vadd.xlane.f32.xlu0 %v1886
        %v1888 = vpop.xlane.xlu0 %1887
        %v1889 = vsel %vm1230, %v1872, 0.0
        %1890 = vadd.xlane.f32.xlu0 %v1889
        %v1891 = vpop.xlane.xlu0 %1890
        %v1892 = vsel %vm1230, %v1874, 0.0
        %1893 = vadd.xlane.f32.xlu0 %v1892
        %v1894 = vpop.xlane.xlu0 %1893
        %v1895 = vsel %vm1230, %v1876, 0.0
        %1896 = vadd.xlane.f32.xlu0 %v1895
        %v1897 = vpop.xlane.xlu0 %1896
        %v1898 = vsel %vm1230, %v1878, 0.0
        %1899 = vadd.xlane.f32.xlu0 %v1898
        %v1900 = vpop.xlane.xlu0 %1899
        %v1901 = vsel %vm1230, %v1880, 0.0
        %1902 = vadd.xlane.f32.xlu0 %v1901
        %v1903 = vpop.xlane.xlu0 %1902
        %v1904 = vsel %vm1230, %v1882, 0.0
        %1905 = vadd.xlane.f32.xlu0 %v1904
        %v1906 = vpop.xlane.xlu0 %1905
        %v1907 = vrcp.pop %v1885
        %v1908 = vrcp.pop %v1888
        %v1909 = vrcp.pop %v1891
        %v1910 = vrcp.pop %v1894
        %v1911 = vrcp.pop %v1897
        %v1912 = vrcp.pop %v1900
        %v1913 = vrcp.pop %v1903
        %v1914 = vrcp.pop %v1906
        %v1915 = vmul.f32 %v1868, %v1907
        %v1916 = vmul.f32 %v1870, %v1908
        %v1917 = vmul.f32 %v1872, %v1909
        %v1918 = vmul.f32 %v1874, %v1910
        %v1919 = vmul.f32 %v1876, %v1911
        %v1920 = vmul.f32 %v1878, %v1912
        %v1921 = vmul.f32 %v1880, %v1913
        %v1922 = vmul.f32 %v1882, %v1914
        %v1923 = vpack.c.bf16 %v1916, %v1915
        %v1924 = vpack.c.bf16 %v1918, %v1917
        %v1925 = vpack.c.bf16 %v1920, %v1919
        %v1926 = vpack.c.bf16 %v1922, %v1921
        %1927 = vrot.lane.b32.xlu0 %v1112, 64
        %v1928 = vpop.permute.xlu0 %1927
        %1929 = vrot.lane.b32.xlu0 %v1113, 64
        %v1930 = vpop.permute.xlu0 %1929
        %1931 = vrot.lane.b32.xlu0 %v1114, 64
        %v1932 = vpop.permute.xlu0 %1931
        %1933 = vrot.lane.b32.xlu0 %v1115, 64
        %v1934 = vpop.permute.xlu0 %1933
        %v1940 = vsel %vm1230, %v1923, 0
        %v1943 = vsel %vm1230, %v1924, 0
        %v1946 = vsel %vm1230, %v1925, 0
        %v1949 = vsel %vm1230, %v1926, 0
        %1951 = vmatprep.subr.bf16.mxu0 0
        %1952 = vmatpush1.bf16.msra.mxu0 %v1928
        %1953 = vmatprep.subr.bf16.mxu0 0
        %1954 = vmatpush1.bf16.msra.mxu0 %v1930
        %1955 = vmatprep.subr.bf16.mxu0 0
        %1956 = vmatpush1.bf16.msra.mxu0 %v1932
        %1957 = vmatprep.subr.bf16.mxu0 0
        %1958 = vmatpush1.bf16.msra.mxu0 %v1934
        %1959 = vmatprep.subr.bf16.mxu0 0
        %1960 = vmatpush1.bf16.msra.mxu0 0
        %1961 = vmatprep.subr.bf16.mxu0 0
        %1962 = vmatpush1.bf16.msra.mxu0 0
        %1963 = vmatprep.subr.bf16.mxu0 0
        %1964 = vmatpush1.bf16.msra.mxu0 0
        %1965 = vmatprep.subr.bf16.mxu0 0
        %1966 = vmatpush1.bf16.msra.mxu0 0
        %1967 = vmatprep.subr.bf16.mxu0 0
        %1968 = vmatpush1.bf16.msra.mxu0 0
        %1969 = vmatprep.subr.bf16.mxu0 0
        %1970 = vmatpush1.bf16.msra.mxu0 0
        %1971 = vmatprep.subr.bf16.mxu0 0
        %1972 = vmatpush1.bf16.msra.mxu0 0
        %1973 = vmatprep.subr.bf16.mxu0 0
        %1974 = vmatpush1.bf16.msra.mxu0 0
        %1975 = vmatprep.subr.bf16.mxu0 0
        %1976 = vmatpush1.bf16.msra.mxu0 0
        %1977 = vmatprep.subr.bf16.mxu0 0
        %1978 = vmatpush1.bf16.msra.mxu0 0
        %1979 = vmatprep.subr.bf16.mxu0 0
        %1980 = vmatpush1.bf16.msra.mxu0 0
        %1981 = vmatprep.subr.bf16.mxu0 0
        %1982 = vmatpush1.bf16.msra.mxu0 0
        %1983 = vmatprep.mubr.bf16.mxu0 0
        %1984 = vmatmul.mubr.bf16.gmra.mrb[0].mxu0 %v1940
        %v1985 = vpop.f32.mrb[0].mxu0
        %v1986 = vadd.f32 0.0, %v1985
        %v1987 = vpop.f32.mrb[0].mxu0
        %v1988 = vpop.f32.mrb[0].mxu0
        %v1989 = vadd.f32 0.0, %v1988
        %v1990 = vpop.f32.mrb[0].mxu0
        %1991 = vmatprep.mubr.bf16.mxu0 0
        %1992 = vmatmul.mubr.bf16.gmra.mrb[0].mxu0 %v1943
        %v1993 = vpop.f32.mrb[0].mxu0
        %v1994 = vadd.f32 0.0, %v1993
        %v1995 = vpop.f32.mrb[0].mxu0
        %v1996 = vpop.f32.mrb[0].mxu0
        %v1997 = vadd.f32 0.0, %v1996
        %v1998 = vpop.f32.mrb[0].mxu0
        %1999 = vmatprep.mubr.bf16.mxu0 0
        %2000 = vmatmul.mubr.bf16.gmra.mrb[0].mxu0 %v1946
        %v2001 = vpop.f32.mrb[0].mxu0
        %v2002 = vadd.f32 0.0, %v2001
        %v2003 = vpop.f32.mrb[0].mxu0
        %v2004 = vpop.f32.mrb[0].mxu0
        %v2005 = vadd.f32 0.0, %v2004
        %v2006 = vpop.f32.mrb[0].mxu0
        %2007 = vmatprep.mubr.bf16.mxu0 0
        %2008 = vmatmul.mubr.bf16.gmra.mrb[0].mxu0 %v1949
        %v2009 = vpop.f32.mrb[0].mxu0
        %v2010 = vadd.f32 0.0, %v2009
        %v2011 = vpop.f32.mrb[0].mxu0
        %v2012 = vpop.f32.mrb[0].mxu0
        %v2013 = vadd.f32 0.0, %v2012
        %v2014 = vpop.f32.mrb[0].mxu0
        %2015 = vdwg.mxu0
        %2016 = vrot.lane.b32.xlu0 %v1080, 32
        %v2017 = vpop.permute.xlu0 %2016
        %2018 = vrot.lane.b32.xlu0 %v1081, 32
        %v2019 = vpop.permute.xlu0 %2018
        %2020 = vrot.lane.b32.xlu0 %v1082, 32
        %v2021 = vpop.permute.xlu0 %2020
        %2022 = vrot.lane.b32.xlu0 %v1083, 32
        %v2023 = vpop.permute.xlu0 %2022
        %2024 = vrot.lane.b32.xlu0 %v1108, 32
        %v2025 = vpop.permute.xlu0 %2024
        %2026 = vrot.lane.b32.xlu0 %v1109, 32
        %v2027 = vpop.permute.xlu0 %2026
        %2028 = vrot.lane.b32.xlu0 %v1110, 32
        %v2029 = vpop.permute.xlu0 %2028
        %2030 = vrot.lane.b32.xlu0 %v1111, 32
        %v2031 = vpop.permute.xlu0 %2030
        %v2033 = vsel %vm1124, %v2017, 0
        %v2036 = vsel %vm1124, %v2019, 0
        %v2039 = vsel %vm1124, %v2021, 0
        %v2042 = vsel %vm1124, %v2023, 0
        %v2045 = vsel %vm1124, %v2025, 0
        %v2048 = vsel %vm1124, %v2027, 0
        %v2051 = vsel %vm1124, %v2029, 0
        %v2054 = vsel %vm1124, %v2031, 0
        %2056 = vmatprep.subr.bf16.mxu0 0
        %2057 = vmatpush1.bf16.xpose.msra.mxu0 %v2045
        %2058 = vmatprep.subr.bf16.mxu0 0
        %2059 = vmatpush1.bf16.xpose.msra.mxu0 %v2048
        %2060 = vmatprep.subr.bf16.mxu0 0
        %2061 = vmatpush1.bf16.xpose.msra.mxu0 %v2051
        %2062 = vmatprep.subr.bf16.mxu0 0
        %2063 = vmatpush1.bf16.xpose.msra.mxu0 %v2054
        %2064 = vmatprep.subr.bf16.mxu0 0
        %2065 = vmatpush1.bf16.xpose.msra.mxu0 0
        %2066 = vmatprep.subr.bf16.mxu0 0
        %2067 = vmatpush1.bf16.xpose.msra.mxu0 0
        %2068 = vmatprep.subr.bf16.mxu0 0
        %2069 = vmatpush1.bf16.xpose.msra.mxu0 0
        %2070 = vmatprep.subr.bf16.mxu0 0
        %2071 = vmatpush1.bf16.xpose.msra.mxu0 0
        %2072 = vmatprep.subr.bf16.mxu0 0
        %2073 = vmatpush1.bf16.xpose.msra.mxu0 0
        %2074 = vmatprep.subr.bf16.mxu0 0
        %2075 = vmatpush1.bf16.xpose.msra.mxu0 0
        %2076 = vmatprep.subr.bf16.mxu0 0
        %2077 = vmatpush1.bf16.xpose.msra.mxu0 0
        %2078 = vmatprep.subr.bf16.mxu0 0
        %2079 = vmatpush1.bf16.xpose.msra.mxu0 0
        %2080 = vmatprep.subr.bf16.mxu0 0
        %2081 = vmatpush1.bf16.xpose.msra.mxu0 0
        %2082 = vmatprep.subr.bf16.mxu0 0
        %2083 = vmatpush1.bf16.xpose.msra.mxu0 0
        %2084 = vmatprep.subr.bf16.mxu0 0
        %2085 = vmatpush1.bf16.xpose.msra.mxu0 0
        %2086 = vmatprep.subr.bf16.mxu0 0
        %2087 = vmatpush1.bf16.xpose.msra.mxu0 0
        %2088 = vmatprep.mubr.bf16.mxu0 0
        %2089 = vmatmul.mubr.bf16.gmra.mrb[0].mxu0 %v2033
        %v2090 = vpop.f32.mrb[0].mxu0
        %v2091 = vadd.f32 0.0, %v2090
        %v2092 = vpop.f32.mrb[0].mxu0
        %v2093 = vpop.f32.mrb[0].mxu0
        %v2094 = vadd.f32 0.0, %v2093
        %v2095 = vpop.f32.mrb[0].mxu0
        %2096 = vmatprep.mubr.bf16.mxu0 0
        %2097 = vmatmul.mubr.bf16.gmra.mrb[0].mxu0 %v2036
        %v2098 = vpop.f32.mrb[0].mxu0
        %v2099 = vadd.f32 0.0, %v2098
        %v2100 = vpop.f32.mrb[0].mxu0
        %v2101 = vpop.f32.mrb[0].mxu0
        %v2102 = vadd.f32 0.0, %v2101
        %v2103 = vpop.f32.mrb[0].mxu0
        %2104 = vmatprep.mubr.bf16.mxu0 0
        %2105 = vmatmul.mubr.bf16.gmra.mrb[0].mxu0 %v2039
        %v2106 = vpop.f32.mrb[0].mxu0
        %v2107 = vadd.f32 0.0, %v2106
        %v2108 = vpop.f32.mrb[0].mxu0
        %v2109 = vpop.f32.mrb[0].mxu0
        %v2110 = vadd.f32 0.0, %v2109
        %v2111 = vpop.f32.mrb[0].mxu0
        %2112 = vmatprep.mubr.bf16.mxu0 0
        %2113 = vmatmul.mubr.bf16.gmra.mrb[0].mxu0 %v2042
        %v2114 = vpop.f32.mrb[0].mxu0
        %v2115 = vadd.f32 0.0, %v2114
        %v2116 = vpop.f32.mrb[0].mxu0
        %v2117 = vpop.f32.mrb[0].mxu0
        %v2118 = vadd.f32 0.0, %v2117
        %v2119 = vpop.f32.mrb[0].mxu0
        %2120 = vdwg.mxu0
        %v2121 = vmul.f32 %v2091, 0.17677669
        %v2122 = vmul.f32 %v2094, 0.17677669
        %v2123 = vmul.f32 %v2099, 0.17677669
        %v2124 = vmul.f32 %v2102, 0.17677669
        %v2125 = vmul.f32 %v2107, 0.17677669
        %v2126 = vmul.f32 %v2110, 0.17677669
        %v2127 = vmul.f32 %v2115, 0.17677669
        %v2128 = vmul.f32 %v2118, 0.17677669
        %v2129 = vadd.f32 %v2121, %v1116
        %v2130 = vadd.f32 %v2122, %v1117
        %v2131 = vadd.f32 %v2123, %v1118
        %v2132 = vadd.f32 %v2124, %v1119
        %v2133 = vadd.f32 %v2125, %v1120
        %v2134 = vadd.f32 %v2126, %v1121
        %v2135 = vadd.f32 %v2127, %v1122
        %v2136 = vadd.f32 %v2128, %v1123
        %v2137 = vsel %vm1230, %v2129, -inf
        %2138 = vmax.xlane.f32.xlu0 %v2137
        %v2139 = vpop.xlane.xlu0 %2138
        %v2140 = vsel %vm1230, %v2130, -inf
        %2141 = vmax.xlane.f32.xlu0 %v2140
        %v2142 = vpop.xlane.xlu0 %2141
        %v2143 = vsel %vm1230, %v2131, -inf
        %2144 = vmax.xlane.f32.xlu0 %v2143
        %v2145 = vpop.xlane.xlu0 %2144
        %v2146 = vsel %vm1230, %v2132, -inf
        %2147 = vmax.xlane.f32.xlu0 %v2146
        %v2148 = vpop.xlane.xlu0 %2147
        %v2149 = vsel %vm1230, %v2133, -inf
        %2150 = vmax.xlane.f32.xlu0 %v2149
        %v2151 = vpop.xlane.xlu0 %2150
        %v2152 = vsel %vm1230, %v2134, -inf
        %2153 = vmax.xlane.f32.xlu0 %v2152
        %v2154 = vpop.xlane.xlu0 %2153
        %v2155 = vsel %vm1230, %v2135, -inf
        %2156 = vmax.xlane.f32.xlu0 %v2155
        %v2157 = vpop.xlane.xlu0 %2156
        %v2158 = vsel %vm1230, %v2136, -inf
        %2159 = vmax.xlane.f32.xlu0 %v2158
        %v2160 = vpop.xlane.xlu0 %2159
        %v2161 = vsub.f32 %v2129, %v2139
        %v2162 = vsub.f32 %v2130, %v2142
        %v2163 = vsub.f32 %v2131, %v2145
        %v2164 = vsub.f32 %v2132, %v2148
        %v2165 = vsub.f32 %v2133, %v2151
        %v2166 = vsub.f32 %v2134, %v2154
        %v2167 = vsub.f32 %v2135, %v2157
        %v2168 = vsub.f32 %v2136, %v2160
        %v2169 = vmul.f32 %v2161, 1.442695
        %v2170 = vpow.pop %v2169
        %v2171 = vmul.f32 %v2162, 1.442695
        %v2172 = vpow.pop %v2171
        %v2173 = vmul.f32 %v2163, 1.442695
        %v2174 = vpow.pop %v2173
        %v2175 = vmul.f32 %v2164, 1.442695
        %v2176 = vpow.pop %v2175
        %v2177 = vmul.f32 %v2165, 1.442695
        %v2178 = vpow.pop %v2177
        %v2179 = vmul.f32 %v2166, 1.442695
        %v2180 = vpow.pop %v2179
        %v2181 = vmul.f32 %v2167, 1.442695
        %v2182 = vpow.pop %v2181
        %v2183 = vmul.f32 %v2168, 1.442695
        %v2184 = vpow.pop %v2183
        %v2185 = vsel %vm1230, %v2170, 0.0
        %2186 = vadd.xlane.f32.xlu0 %v2185
        %v2187 = vpop.xlane.xlu0 %2186
        %v2188 = vsel %vm1230, %v2172, 0.0
        %2189 = vadd.xlane.f32.xlu0 %v2188
        %v2190 = vpop.xlane.xlu0 %2189
        %v2191 = vsel %vm1230, %v2174, 0.0
        %2192 = vadd.xlane.f32.xlu0 %v2191
        %v2193 = vpop.xlane.xlu0 %2192
        %v2194 = vsel %vm1230, %v2176, 0.0
        %2195 = vadd.xlane.f32.xlu0 %v2194
        %v2196 = vpop.xlane.xlu0 %2195
        %v2197 = vsel %vm1230, %v2178, 0.0
        %2198 = vadd.xlane.f32.xlu0 %v2197
        %v2199 = vpop.xlane.xlu0 %2198
        %v2200 = vsel %vm1230, %v2180, 0.0
        %2201 = vadd.xlane.f32.xlu0 %v2200
        %v2202 = vpop.xlane.xlu0 %2201
        %v2203 = vsel %vm1230, %v2182, 0.0
        %2204 = vadd.xlane.f32.xlu0 %v2203
        %v2205 = vpop.xlane.xlu0 %2204
        %v2206 = vsel %vm1230, %v2184, 0.0
        %2207 = vadd.xlane.f32.xlu0 %v2206
        %v2208 = vpop.xlane.xlu0 %2207
        %v2209 = vrcp.pop %v2187
        %v2210 = vrcp.pop %v2190
        %v2211 = vrcp.pop %v2193
        %v2212 = vrcp.pop %v2196
        %v2213 = vrcp.pop %v2199
        %v2214 = vrcp.pop %v2202
        %v2215 = vrcp.pop %v2205
        %v2216 = vrcp.pop %v2208
        %v2217 = vmul.f32 %v2170, %v2209
        %v2218 = vmul.f32 %v2172, %v2210
        %v2219 = vmul.f32 %v2174, %v2211
        %v2220 = vmul.f32 %v2176, %v2212
        %v2221 = vmul.f32 %v2178, %v2213
        %v2222 = vmul.f32 %v2180, %v2214
        %v2223 = vmul.f32 %v2182, %v2215
        %v2224 = vmul.f32 %v2184, %v2216
        %v2225 = vpack.c.bf16 %v2218, %v2217
        %v2226 = vpack.c.bf16 %v2220, %v2219
        %v2227 = vpack.c.bf16 %v2222, %v2221
        %v2228 = vpack.c.bf16 %v2224, %v2223
        %2229 = vrot.lane.b32.xlu0 %v1112, 32
        %v2230 = vpop.permute.xlu0 %2229
        %2231 = vrot.lane.b32.xlu0 %v1113, 32
        %v2232 = vpop.permute.xlu0 %2231
        %2233 = vrot.lane.b32.xlu0 %v1114, 32
        %v2234 = vpop.permute.xlu0 %2233
        %2235 = vrot.lane.b32.xlu0 %v1115, 32
        %v2236 = vpop.permute.xlu0 %2235
        %v2242 = vsel %vm1230, %v2225, 0
        %v2245 = vsel %vm1230, %v2226, 0
        %v2248 = vsel %vm1230, %v2227, 0
        %v2251 = vsel %vm1230, %v2228, 0
        %2253 = vmatprep.subr.bf16.mxu0 0
        %2254 = vmatpush1.bf16.msra.mxu0 %v2230
        %2255 = vmatprep.subr.bf16.mxu0 0
        %2256 = vmatpush1.bf16.msra.mxu0 %v2232
        %2257 = vmatprep.subr.bf16.mxu0 0
        %2258 = vmatpush1.bf16.msra.mxu0 %v2234
        %2259 = vmatprep.subr.bf16.mxu0 0
        %2260 = vmatpush1.bf16.msra.mxu0 %v2236
        %2261 = vmatprep.subr.bf16.mxu0 0
        %2262 = vmatpush1.bf16.msra.mxu0 0
        %2263 = vmatprep.subr.bf16.mxu0 0
        %2264 = vmatpush1.bf16.msra.mxu0 0
        %2265 = vmatprep.subr.bf16.mxu0 0
        %2266 = vmatpush1.bf16.msra.mxu0 0
        %2267 = vmatprep.subr.bf16.mxu0 0
        %2268 = vmatpush1.bf16.msra.mxu0 0
        %2269 = vmatprep.subr.bf16.mxu0 0
        %2270 = vmatpush1.bf16.msra.mxu0 0
        %2271 = vmatprep.subr.bf16.mxu0 0
        %2272 = vmatpush1.bf16.msra.mxu0 0
        %2273 = vmatprep.subr.bf16.mxu0 0
        %2274 = vmatpush1.bf16.msra.mxu0 0
        %2275 = vmatprep.subr.bf16.mxu0 0
        %2276 = vmatpush1.bf16.msra.mxu0 0
        %2277 = vmatprep.subr.bf16.mxu0 0
        %2278 = vmatpush1.bf16.msra.mxu0 0
        %2279 = vmatprep.subr.bf16.mxu0 0
        %2280 = vmatpush1.bf16.msra.mxu0 0
        %2281 = vmatprep.subr.bf16.mxu0 0
        %2282 = vmatpush1.bf16.msra.mxu0 0
        %2283 = vmatprep.subr.bf16.mxu0 0
        %2284 = vmatpush1.bf16.msra.mxu0 0
        %2285 = vmatprep.mubr.bf16.mxu0 0
        %2286 = vmatmul.mubr.bf16.gmra.mrb[0].mxu0 %v2242
        %v2287 = vpop.f32.mrb[0].mxu0
        %v2288 = vadd.f32 0.0, %v2287
        %v2289 = vpop.f32.mrb[0].mxu0
        %v2290 = vpop.f32.mrb[0].mxu0
        %v2291 = vadd.f32 0.0, %v2290
        %v2292 = vpop.f32.mrb[0].mxu0
        %2293 = vmatprep.mubr.bf16.mxu0 0
        %2294 = vmatmul.mubr.bf16.gmra.mrb[0].mxu0 %v2245
        %v2295 = vpop.f32.mrb[0].mxu0
        %v2296 = vadd.f32 0.0, %v2295
        %v2297 = vpop.f32.mrb[0].mxu0
        %v2298 = vpop.f32.mrb[0].mxu0
        %v2299 = vadd.f32 0.0, %v2298
        %v2300 = vpop.f32.mrb[0].mxu0
        %2301 = vmatprep.mubr.bf16.mxu0 0
        %2302 = vmatmul.mubr.bf16.gmra.mrb[0].mxu0 %v2248
        %v2303 = vpop.f32.mrb[0].mxu0
        %v2304 = vadd.f32 0.0, %v2303
        %v2305 = vpop.f32.mrb[0].mxu0
        %v2306 = vpop.f32.mrb[0].mxu0
        %v2307 = vadd.f32 0.0, %v2306
        %v2308 = vpop.f32.mrb[0].mxu0
        %2309 = vmatprep.mubr.bf16.mxu0 0
        %2310 = vmatmul.mubr.bf16.gmra.mrb[0].mxu0 %v2251
        %v2311 = vpop.f32.mrb[0].mxu0
        %v2312 = vadd.f32 0.0, %v2311
        %v2313 = vpop.f32.mrb[0].mxu0
        %v2314 = vpop.f32.mrb[0].mxu0
        %v2315 = vadd.f32 0.0, %v2314
        %v2316 = vpop.f32.mrb[0].mxu0
        %2317 = vdwg.mxu0
        %2326 = vrot.lane.b32.xlu0 %v1684, 32
        %v2327 = vpop.permute.xlu0 %2326
        %2328 = vrot.lane.b32.xlu0 %v1687, 32
        %v2329 = vpop.permute.xlu0 %2328
        %2330 = vrot.lane.b32.xlu0 %v1692, 32
        %v2331 = vpop.permute.xlu0 %2330
        %2332 = vrot.lane.b32.xlu0 %v1695, 32
        %v2333 = vpop.permute.xlu0 %2332
        %2334 = vrot.lane.b32.xlu0 %v1700, 32
        %v2335 = vpop.permute.xlu0 %2334
        %2336 = vrot.lane.b32.xlu0 %v1703, 32
        %v2337 = vpop.permute.xlu0 %2336
        %2338 = vrot.lane.b32.xlu0 %v1708, 32
        %v2339 = vpop.permute.xlu0 %2338
        %2340 = vrot.lane.b32.xlu0 %v1711, 32
        %v2341 = vpop.permute.xlu0 %2340
        %2358 = vrot.lane.b32.xlu0 %v1986, 64
        %v2359 = vpop.permute.xlu0 %2358
        %2360 = vrot.lane.b32.xlu0 %v1989, 64
        %v2361 = vpop.permute.xlu0 %2360
        %2362 = vrot.lane.b32.xlu0 %v1994, 64
        %v2363 = vpop.permute.xlu0 %2362
        %2364 = vrot.lane.b32.xlu0 %v1997, 64
        %v2365 = vpop.permute.xlu0 %2364
        %2366 = vrot.lane.b32.xlu0 %v2002, 64
        %v2367 = vpop.permute.xlu0 %2366
        %2368 = vrot.lane.b32.xlu0 %v2005, 64
        %v2369 = vpop.permute.xlu0 %2368
        %2370 = vrot.lane.b32.xlu0 %v2010, 64
        %v2371 = vpop.permute.xlu0 %2370
        %2372 = vrot.lane.b32.xlu0 %v2013, 64
        %v2373 = vpop.permute.xlu0 %2372
        %2390 = vrot.lane.b32.xlu0 %v2288, 96
        %v2391 = vpop.permute.xlu0 %2390
        %2392 = vrot.lane.b32.xlu0 %v2291, 96
        %v2393 = vpop.permute.xlu0 %2392
        %2394 = vrot.lane.b32.xlu0 %v2296, 96
        %v2395 = vpop.permute.xlu0 %2394
        %2396 = vrot.lane.b32.xlu0 %v2299, 96
        %v2397 = vpop.permute.xlu0 %2396
        %2398 = vrot.lane.b32.xlu0 %v2304, 96
        %v2399 = vpop.permute.xlu0 %2398
        %2400 = vrot.lane.b32.xlu0 %v2307, 96
        %v2401 = vpop.permute.xlu0 %2400
        %2402 = vrot.lane.b32.xlu0 %v2312, 96
        %v2403 = vpop.permute.xlu0 %2402
        %2404 = vrot.lane.b32.xlu0 %v2315, 96
        %v2405 = vpop.permute.xlu0 %2404
        %v2414 = vsel %vm1124, %v1370, %v2327
        %v2415 = vsel %vm1124, %v1373, %v2329
        %v2416 = vsel %vm1124, %v1378, %v2331
        %v2417 = vsel %vm1124, %v1381, %v2333
        %v2418 = vsel %vm1124, %v1386, %v2335
        %v2419 = vsel %vm1124, %v1389, %v2337
        %v2420 = vsel %vm1124, %v1394, %v2339
        %v2421 = vsel %vm1124, %v1397, %v2341
        %v2422 = vsel %vm1230, %v2414, %v2359
        %v2423 = vsel %vm1230, %v2415, %v2361
        %v2424 = vsel %vm1230, %v2416, %v2363
        %v2425 = vsel %vm1230, %v2417, %v2365
        %v2426 = vsel %vm1230, %v2418, %v2367
        %v2427 = vsel %vm1230, %v2419, %v2369
        %v2428 = vsel %vm1230, %v2420, %v2371
        %v2429 = vsel %vm1230, %v2421, %v2373
        %vm2430 = vcmask 785408
        %v2431 = vsel %vm2430, %v2422, %v2391
        %v2432 = vsel %vm2430, %v2423, %v2393
        %v2433 = vsel %vm2430, %v2424, %v2395
        %v2434 = vsel %vm2430, %v2425, %v2397
        %v2435 = vsel %vm2430, %v2426, %v2399
        %v2436 = vsel %vm2430, %v2427, %v2401
        %v2437 = vsel %vm2430, %v2428, %v2403
        %v2438 = vsel %vm2430, %v2429, %v2405
        %v2439 = vpack.c.bf16 %v2432, %v2431
        %v2440 = vpack.c.bf16 %v2434, %v2433
        %v2441 = vpack.c.bf16 %v2436, %v2435
        %v2442 = vpack.c.bf16 %v2438, %v2437
        %v2443 = vld [vmem:[#allocation7] sm:$0xf]
        %v2444 = vld [vmem:[#allocation7 + $0x4] sm:$0xf]
        %v2445 = vld [vmem:[#allocation7 + $0x8] sm:$0xf]
        %v2446 = vld [vmem:[#allocation7 + $0xc] sm:$0xf]
        %v2447 = vld [vmem:[#allocation7 + $0x10] sm:$0xf]
        %v2448 = vld [vmem:[#allocation7 + $0x14] sm:$0xf]
        %v2449 = vld [vmem:[#allocation7 + $0x18] sm:$0xf]
        %v2450 = vld [vmem:[#allocation7 + $0x1c] sm:$0xf]
        %v2451 = vld [vmem:[#allocation7 + $0x20] sm:$0xf]
        %v2452 = vld [vmem:[#allocation7 + $0x24] sm:$0xf]
        %v2453 = vld [vmem:[#allocation7 + $0x28] sm:$0xf]
        %v2454 = vld [vmem:[#allocation7 + $0x2c] sm:$0xf]
        %v2455 = vld [vmem:[#allocation7 + $0x30] sm:$0xf]
        %v2456 = vld [vmem:[#allocation7 + $0x34] sm:$0xf]
        %v2457 = vld [vmem:[#allocation7 + $0x38] sm:$0xf]
        %v2458 = vld [vmem:[#allocation7 + $0x3c] sm:$0xf]
        %v2475 = vunpack.c.l.b16 %v2443
        %v2476 = vunpack.c.l.b16 %v2444
        %v2477 = vunpack.c.l.b16 %v2445
        %v2478 = vunpack.c.l.b16 %v2446
        %v2479 = vunpack.c.l.b16 %v2447
        %v2480 = vunpack.c.l.b16 %v2448
        %v2481 = vunpack.c.l.b16 %v2449
        %v2482 = vunpack.c.l.b16 %v2450
        %v2483 = vunpack.c.l.b16 %v2451
        %v2484 = vunpack.c.l.b16 %v2452
        %v2485 = vunpack.c.l.b16 %v2453
        %v2486 = vunpack.c.l.b16 %v2454
        %v2487 = vunpack.c.l.b16 %v2455
        %v2488 = vunpack.c.l.b16 %v2456
        %v2489 = vunpack.c.l.b16 %v2457
        %v2490 = vunpack.c.l.b16 %v2458
        %v2491 = vpack.c.b16 %v2476, %v2475
        %v2492 = vpack.c.b16 %v2478, %v2477
        %v2493 = vpack.c.b16 %v2480, %v2479
        %v2494 = vpack.c.b16 %v2482, %v2481
        %v2495 = vpack.c.b16 %v2484, %v2483
        %v2496 = vpack.c.b16 %v2486, %v2485
        %v2497 = vpack.c.b16 %v2488, %v2487
        %v2498 = vpack.c.b16 %v2490, %v2489
        %2507 = vmatprep.subr.bf16.mxu0 0
        %2508 = vmatpush1.bf16.msra.mxu0 %v2491
        %2509 = vmatprep.subr.bf16.mxu0 0
        %2510 = vmatpush1.bf16.msra.mxu0 %v2492
        %2511 = vmatprep.subr.bf16.mxu0 0
        %2512 = vmatpush1.bf16.msra.mxu0 %v2493
        %2513 = vmatprep.subr.bf16.mxu0 0
        %2514 = vmatpush1.bf16.msra.mxu0 %v2494
        %2515 = vmatprep.subr.bf16.mxu0 0
        %2516 = vmatpush1.bf16.msra.mxu0 %v2495
        %2517 = vmatprep.subr.bf16.mxu0 0
        %2518 = vmatpush1.bf16.msra.mxu0 %v2496
        %2519 = vmatprep.subr.bf16.mxu0 0
        %2520 = vmatpush1.bf16.msra.mxu0 %v2497
        %2521 = vmatprep.subr.bf16.mxu0 0
        %2522 = vmatpush1.bf16.msra.mxu0 %v2498
        %2523 = vmatprep.subr.bf16.mxu0 0
        %2524 = vmatpush1.bf16.msra.mxu0 0
        %2525 = vmatprep.subr.bf16.mxu0 0
        %2526 = vmatpush1.bf16.msra.mxu0 0
        %2527 = vmatprep.subr.bf16.mxu0 0
        %2528 = vmatpush1.bf16.msra.mxu0 0
        %2529 = vmatprep.subr.bf16.mxu0 0
        %2530 = vmatpush1.bf16.msra.mxu0 0
        %2531 = vmatprep.subr.bf16.mxu0 0
        %2532 = vmatpush1.bf16.msra.mxu0 0
        %2533 = vmatprep.subr.bf16.mxu0 0
        %2534 = vmatpush1.bf16.msra.mxu0 0
        %2535 = vmatprep.subr.bf16.mxu0 0
        %2536 = vmatpush1.bf16.msra.mxu0 0
        %2537 = vmatprep.subr.bf16.mxu0 0
        %2538 = vmatpush1.bf16.msra.mxu0 0
        %2539 = vmatprep.mubr.bf16.mxu0 0
        %2540 = vmatmul.mubr.bf16.gmra.mrb[0].mxu0 %v2439
        %v2541 = vpop.f32.mrb[0].mxu0
        %v2542 = vadd.f32 0.0, %v2541
        %v2543 = vpop.f32.mrb[0].mxu0
        %v2544 = vpop.f32.mrb[0].mxu0
        %v2545 = vadd.f32 0.0, %v2544
        %v2546 = vpop.f32.mrb[0].mxu0
        %2547 = vmatprep.mubr.bf16.mxu0 0
        %2548 = vmatmul.mubr.bf16.gmra.mrb[0].mxu0 %v2440
        %v2549 = vpop.f32.mrb[0].mxu0
        %v2550 = vadd.f32 0.0, %v2549
        %v2551 = vpop.f32.mrb[0].mxu0
        %v2552 = vpop.f32.mrb[0].mxu0
        %v2553 = vadd.f32 0.0, %v2552
        %v2554 = vpop.f32.mrb[0].mxu0
        %2555 = vmatprep.mubr.bf16.mxu0 0
        %2556 = vmatmul.mubr.bf16.gmra.mrb[0].mxu0 %v2441
        %v2557 = vpop.f32.mrb[0].mxu0
        %v2558 = vadd.f32 0.0, %v2557
        %v2559 = vpop.f32.mrb[0].mxu0
        %v2560 = vpop.f32.mrb[0].mxu0
        %v2561 = vadd.f32 0.0, %v2560
        %v2562 = vpop.f32.mrb[0].mxu0
        %2563 = vmatprep.mubr.bf16.mxu0 0
        %2564 = vmatmul.mubr.bf16.gmra.mrb[0].mxu0 %v2442
        %v2565 = vpop.f32.mrb[0].mxu0
        %v2566 = vadd.f32 0.0, %v2565
        %v2567 = vpop.f32.mrb[0].mxu0
        %v2568 = vpop.f32.mrb[0].mxu0
        %v2569 = vadd.f32 0.0, %v2568
        %v2570 = vpop.f32.mrb[0].mxu0
        %2571 = vdwg.mxu0
        %v2572 = vpack.c.bf16 %v2545, %v2542
        %v2573 = vpack.c.bf16 %v2553, %v2550
        %v2574 = vpack.c.bf16 %v2561, %v2558
        %v2575 = vpack.c.bf16 %v2569, %v2566
        %v2580 = vunpack.c.l.b16 %v2572
        %v2581 = vunpack.c.h.b16 %v2572
        %v2582 = vunpack.c.l.b16 %v2573
        %v2583 = vunpack.c.h.b16 %v2573
        %v2584 = vunpack.c.l.b16 %v2574
        %v2585 = vunpack.c.h.b16 %v2574
        %v2586 = vunpack.c.l.b16 %v2575
        %v2587 = vunpack.c.h.b16 %v2575
        %v2588 = vpack.c.b16 %v2580, %v2580
        %v2589 = vpack.c.b16 %v2581, %v2581
        %v2590 = vpack.c.b16 %v2582, %v2582
        %v2591 = vpack.c.b16 %v2583, %v2583
        %v2592 = vpack.c.b16 %v2584, %v2584
        %v2593 = vpack.c.b16 %v2585, %v2585
        %v2594 = vpack.c.b16 %v2586, %v2586
        %v2595 = vpack.c.b16 %v2587, %v2587
        %v2604 = vadd.bf16 %v481, %v2588
        %v2605 = vadd.bf16 %v482, %v2589
        %v2606 = vadd.bf16 %v483, %v2590
        %v2607 = vadd.bf16 %v484, %v2591
        %v2608 = vadd.bf16 %v485, %v2592
        %v2609 = vadd.bf16 %v486, %v2593
        %v2610 = vadd.bf16 %v487, %v2594
        %v2611 = vadd.bf16 %v488, %v2595
        %v2612 = vld [vmem:[%s4] sm:$0x1]
        %v2613 = vunpack.c.l.bf16 %v2604
        %v2614 = vunpack.c.l.bf16 %v2605
        %v2615 = vunpack.c.l.bf16 %v2606
        %v2616 = vunpack.c.l.bf16 %v2607
        %v2617 = vunpack.c.l.bf16 %v2608
        %v2618 = vunpack.c.l.bf16 %v2609
        %v2619 = vunpack.c.l.bf16 %v2610
        %v2620 = vunpack.c.l.bf16 %v2611
        %v2621 = vmul.f32 %v2613, %v2613
        %v2622 = vmul.f32 %v2614, %v2614
        %v2623 = vmul.f32 %v2615, %v2615
        %v2624 = vmul.f32 %v2616, %v2616
        %v2625 = vmul.f32 %v2617, %v2617
        %v2626 = vmul.f32 %v2618, %v2618
        %v2627 = vmul.f32 %v2619, %v2619
        %v2628 = vmul.f32 %v2620, %v2620
        %2629 = vadd.xlane.f32.xlu0 %v2621
        %v2630 = vpop.xlane.xlu0 %2629
        %2631 = vadd.xlane.f32.xlu0 %v2622
        %v2632 = vpop.xlane.xlu0 %2631
        %2633 = vadd.xlane.f32.xlu0 %v2623
        %v2634 = vpop.xlane.xlu0 %2633
        %2635 = vadd.xlane.f32.xlu0 %v2624
        %v2636 = vpop.xlane.xlu0 %2635
        %2637 = vadd.xlane.f32.xlu0 %v2625
        %v2638 = vpop.xlane.xlu0 %2637
        %2639 = vadd.xlane.f32.xlu0 %v2626
        %v2640 = vpop.xlane.xlu0 %2639
        %2641 = vadd.xlane.f32.xlu0 %v2627
        %v2642 = vpop.xlane.xlu0 %2641
        %2643 = vadd.xlane.f32.xlu0 %v2628
        %v2644 = vpop.xlane.xlu0 %2643
        %v2645 = vmul.f32 %v2630, %v522
        %v2646 = vmul.f32 %v2632, %v522
        %v2647 = vmul.f32 %v2634, %v522
        %v2648 = vmul.f32 %v2636, %v522
        %v2649 = vmul.f32 %v2638, %v522
        %v2650 = vmul.f32 %v2640, %v522
        %v2651 = vmul.f32 %v2642, %v522
        %v2652 = vmul.f32 %v2644, %v522
        %v2653 = vadd.f32 %v2645, 1e-05
        %v2654 = vadd.f32 %v2646, 1e-05
        %v2655 = vadd.f32 %v2647, 1e-05
        %v2656 = vadd.f32 %v2648, 1e-05
        %v2657 = vadd.f32 %v2649, 1e-05
        %v2658 = vadd.f32 %v2650, 1e-05
        %v2659 = vadd.f32 %v2651, 1e-05
        %v2660 = vadd.f32 %v2652, 1e-05
        %v2661 = vrsqrt.pop %v2653
        %v2662 = vrsqrt.pop %v2654
        %v2663 = vrsqrt.pop %v2655
        %v2664 = vrsqrt.pop %v2656
        %v2665 = vrsqrt.pop %v2657
        %v2666 = vrsqrt.pop %v2658
        %v2667 = vrsqrt.pop %v2659
        %v2668 = vrsqrt.pop %v2660
        %v2669 = vmul.f32 %v2613, %v2661
        %v2670 = vmul.f32 %v2614, %v2662
        %v2671 = vmul.f32 %v2615, %v2663
        %v2672 = vmul.f32 %v2616, %v2664
        %v2673 = vmul.f32 %v2617, %v2665
        %v2674 = vmul.f32 %v2618, %v2666
        %v2675 = vmul.f32 %v2619, %v2667
        %v2676 = vmul.f32 %v2620, %v2668
        %v2678 = vlaneseq
        %v2679 = vshrl.u32 %v2678, 7
        %v2680 = vsub.s32 0, %v2679
        %v2681 = vrot.slane %v2612, %v2680
        %v2683 = vmul.f32 %v2669, %v2681
        %v2684 = vmul.f32 %v2670, %v2681
        %v2685 = vmul.f32 %v2671, %v2681
        %v2686 = vmul.f32 %v2672, %v2681
        %v2687 = vmul.f32 %v2673, %v2681
        %v2688 = vmul.f32 %v2674, %v2681
        %v2689 = vmul.f32 %v2675, %v2681
        %v2690 = vmul.f32 %v2676, %v2681
        %v2691 = vpack.c.bf16 %v2684, %v2683
        %v2692 = vpack.c.bf16 %v2686, %v2685
        %v2693 = vpack.c.bf16 %v2688, %v2687
        %v2694 = vpack.c.bf16 %v2690, %v2689
        %v2695 = vld [vmem:[#allocation8] sm:$0xff]
        %v2696 = vld [vmem:[#allocation8 + $0x8] sm:$0xff]
        %v2697 = vld [vmem:[#allocation8 + $0x10] sm:$0xff]
        %v2698 = vld [vmem:[#allocation8 + $0x18] sm:$0xff]
        %v2699 = vld [vmem:[#allocation8 + $0x20] sm:$0xff]
        %v2700 = vld [vmem:[#allocation8 + $0x28] sm:$0xff]
        %v2701 = vld [vmem:[#allocation8 + $0x30] sm:$0xff]
        %v2702 = vld [vmem:[#allocation8 + $0x38] sm:$0xff]
        %v2703 = vld [vmem:[#allocation8 + $0x40] sm:$0xff]
        %v2704 = vld [vmem:[#allocation8 + $0x48] sm:$0xff]
        %v2705 = vld [vmem:[#allocation8 + $0x50] sm:$0xff]
        %v2706 = vld [vmem:[#allocation8 + $0x58] sm:$0xff]
        %v2707 = vld [vmem:[#allocation8 + $0x60] sm:$0xff]
        %v2708 = vld [vmem:[#allocation8 + $0x68] sm:$0xff]
        %v2709 = vld [vmem:[#allocation8 + $0x70] sm:$0xff]
        %v2710 = vld [vmem:[#allocation8 + $0x78] sm:$0xff]
        %v2711 = vld [vmem:[#allocation8 + $0x80] sm:$0xff]
        %v2712 = vld [vmem:[#allocation8 + $0x88] sm:$0xff]
        %v2713 = vld [vmem:[#allocation8 + $0x90] sm:$0xff]
        %v2714 = vld [vmem:[#allocation8 + $0x98] sm:$0xff]
        %v2715 = vld [vmem:[#allocation8 + $0xa0] sm:$0xff]
        %v2716 = vld [vmem:[#allocation8 + $0xa8] sm:$0xff]
        %v2717 = vld [vmem:[#allocation8 + $0xb0] sm:$0xff]
        %v2718 = vld [vmem:[#allocation8 + $0xb8] sm:$0xff]
        %v2719 = vld [vmem:[#allocation8 + $0xc0] sm:$0xff]
        %v2720 = vld [vmem:[#allocation8 + $0xc8] sm:$0xff]
        %v2721 = vld [vmem:[#allocation8 + $0xd0] sm:$0xff]
        %v2722 = vld [vmem:[#allocation8 + $0xd8] sm:$0xff]
        %v2723 = vld [vmem:[#allocation8 + $0xe0] sm:$0xff]
        %v2724 = vld [vmem:[#allocation8 + $0xe8] sm:$0xff]
        %v2725 = vld [vmem:[#allocation8 + $0xf0] sm:$0xff]
        %v2726 = vld [vmem:[#allocation8 + $0xf8] sm:$0xff]
        %v2759 = vunpack.c.l.b16 %v2695
        %v2760 = vunpack.c.h.b16 %v2695
        %v2761 = vunpack.c.l.b16 %v2696
        %v2762 = vunpack.c.h.b16 %v2696
        %v2763 = vunpack.c.l.b16 %v2697
        %v2764 = vunpack.c.h.b16 %v2697
        %v2765 = vunpack.c.l.b16 %v2698
        %v2766 = vunpack.c.h.b16 %v2698
        %v2767 = vunpack.c.l.b16 %v2699
        %v2768 = vunpack.c.h.b16 %v2699
        %v2769 = vunpack.c.l.b16 %v2700
        %v2770 = vunpack.c.h.b16 %v2700
        %v2771 = vunpack.c.l.b16 %v2701
        %v2772 = vunpack.c.h.b16 %v2701
        %v2773 = vunpack.c.l.b16 %v2702
        %v2774 = vunpack.c.h.b16 %v2702
        %v2775 = vunpack.c.l.b16 %v2703
        %v2776 = vunpack.c.h.b16 %v2703
        %v2777 = vunpack.c.l.b16 %v2704
        %v2778 = vunpack.c.h.b16 %v2704
        %v2779 = vunpack.c.l.b16 %v2705
        %v2780 = vunpack.c.h.b16 %v2705
        %v2781 = vunpack.c.l.b16 %v2706
        %v2782 = vunpack.c.h.b16 %v2706
        %v2783 = vunpack.c.l.b16 %v2707
        %v2784 = vunpack.c.h.b16 %v2707
        %v2785 = vunpack.c.l.b16 %v2708
        %v2786 = vunpack.c.h.b16 %v2708
        %v2787 = vunpack.c.l.b16 %v2709
        %v2788 = vunpack.c.h.b16 %v2709
        %v2789 = vunpack.c.l.b16 %v2710
        %v2790 = vunpack.c.h.b16 %v2710
        %v2791 = vunpack.c.l.b16 %v2711
        %v2792 = vunpack.c.h.b16 %v2711
        %v2793 = vunpack.c.l.b16 %v2712
        %v2794 = vunpack.c.h.b16 %v2712
        %v2795 = vunpack.c.l.b16 %v2713
        %v2796 = vunpack.c.h.b16 %v2713
        %v2797 = vunpack.c.l.b16 %v2714
        %v2798 = vunpack.c.h.b16 %v2714
        %v2799 = vunpack.c.l.b16 %v2715
        %v2800 = vunpack.c.h.b16 %v2715
        %v2801 = vunpack.c.l.b16 %v2716
        %v2802 = vunpack.c.h.b16 %v2716
        %v2803 = vunpack.c.l.b16 %v2717
        %v2804 = vunpack.c.h.b16 %v2717
        %v2805 = vunpack.c.l.b16 %v2718
        %v2806 = vunpack.c.h.b16 %v2718
        %v2807 = vunpack.c.l.b16 %v2719
        %v2808 = vunpack.c.h.b16 %v2719
        %v2809 = vunpack.c.l.b16 %v2720
        %v2810 = vunpack.c.h.b16 %v2720
        %v2811 = vunpack.c.l.b16 %v2721
        %v2812 = vunpack.c.h.b16 %v2721
        %v2813 = vunpack.c.l.b16 %v2722
        %v2814 = vunpack.c.h.b16 %v2722
        %v2815 = vunpack.c.l.b16 %v2723
        %v2816 = vunpack.c.h.b16 %v2723
        %v2817 = vunpack.c.l.b16 %v2724
        %v2818 = vunpack.c.h.b16 %v2724
        %v2819 = vunpack.c.l.b16 %v2725
        %v2820 = vunpack.c.h.b16 %v2725
        %v2821 = vunpack.c.l.b16 %v2726
        %v2822 = vunpack.c.h.b16 %v2726
        %v2823 = vpack.c.b16 %v2763, %v2759
        %v2824 = vpack.c.b16 %v2764, %v2760
        %v2825 = vpack.c.b16 %v2765, %v2761
        %v2826 = vpack.c.b16 %v2766, %v2762
        %v2827 = vpack.c.b16 %v2771, %v2767
        %v2828 = vpack.c.b16 %v2772, %v2768
        %v2829 = vpack.c.b16 %v2773, %v2769
        %v2830 = vpack.c.b16 %v2774, %v2770
        %v2831 = vpack.c.b16 %v2779, %v2775
        %v2832 = vpack.c.b16 %v2780, %v2776
        %v2833 = vpack.c.b16 %v2781, %v2777
        %v2834 = vpack.c.b16 %v2782, %v2778
        %v2835 = vpack.c.b16 %v2787, %v2783
        %v2836 = vpack.c.b16 %v2788, %v2784
        %v2837 = vpack.c.b16 %v2789, %v2785
        %v2838 = vpack.c.b16 %v2790, %v2786
        %v2839 = vpack.c.b16 %v2795, %v2791
        %v2840 = vpack.c.b16 %v2796, %v2792
        %v2841 = vpack.c.b16 %v2797, %v2793
        %v2842 = vpack.c.b16 %v2798, %v2794
        %v2843 = vpack.c.b16 %v2803, %v2799
        %v2844 = vpack.c.b16 %v2804, %v2800
        %v2845 = vpack.c.b16 %v2805, %v2801
        %v2846 = vpack.c.b16 %v2806, %v2802
        %v2847 = vpack.c.b16 %v2811, %v2807
        %v2848 = vpack.c.b16 %v2812, %v2808
        %v2849 = vpack.c.b16 %v2813, %v2809
        %v2850 = vpack.c.b16 %v2814, %v2810
        %v2851 = vpack.c.b16 %v2819, %v2815
        %v2852 = vpack.c.b16 %v2820, %v2816
        %v2853 = vpack.c.b16 %v2821, %v2817
        %v2854 = vpack.c.b16 %v2822, %v2818
        %2887 = vmatprep.subr.bf16.mxu0 %v2824
        %2888 = vmatpush1.bf16.msra.mxu0 %v2823
        %2889 = vmatprep.subr.bf16.mxu0 %v2828
        %2890 = vmatpush1.bf16.msra.mxu0 %v2827
        %2891 = vmatprep.subr.bf16.mxu0 %v2832
        %2892 = vmatpush1.bf16.msra.mxu0 %v2831
        %2893 = vmatprep.subr.bf16.mxu0 %v2836
        %2894 = vmatpush1.bf16.msra.mxu0 %v2835
        %2895 = vmatprep.subr.bf16.mxu0 %v2840
        %2896 = vmatpush1.bf16.msra.mxu0 %v2839
        %2897 = vmatprep.subr.bf16.mxu0 %v2844
        %2898 = vmatpush1.bf16.msra.mxu0 %v2843
        %2899 = vmatprep.subr.bf16.mxu0 %v2848
        %2900 = vmatpush1.bf16.msra.mxu0 %v2847
        %2901 = vmatprep.subr.bf16.mxu0 %v2852
        %2902 = vmatpush1.bf16.msra.mxu0 %v2851
        %2903 = vmatprep.subr.bf16.mxu0 0
        %2904 = vmatpush1.bf16.msra.mxu0 0
        %2905 = vmatprep.subr.bf16.mxu0 0
        %2906 = vmatpush1.bf16.msra.mxu0 0
        %2907 = vmatprep.subr.bf16.mxu0 0
        %2908 = vmatpush1.bf16.msra.mxu0 0
        %2909 = vmatprep.subr.bf16.mxu0 0
        %2910 = vmatpush1.bf16.msra.mxu0 0
        %2911 = vmatprep.subr.bf16.mxu0 0
        %2912 = vmatpush1.bf16.msra.mxu0 0
        %2913 = vmatprep.subr.bf16.mxu0 0
        %2914 = vmatpush1.bf16.msra.mxu0 0
        %2915 = vmatprep.subr.bf16.mxu0 0
        %2916 = vmatpush1.bf16.msra.mxu0 0
        %2917 = vmatprep.subr.bf16.mxu0 0
        %2918 = vmatpush1.bf16.msra.mxu0 0
        %2919 = vmatprep.mubr.bf16.mxu0 0
        %2920 = vmatmul.mubr.bf16.gmra.mrb[0].mxu0 %v2691
        %v2921 = vpop.f32.mrb[0].mxu0
        %v2922 = vadd.f32 0.0, %v2921
        %v2923 = vpop.f32.mrb[0].mxu0
        %v2924 = vadd.f32 0.0, %v2923
        %v2925 = vpop.f32.mrb[0].mxu0
        %v2926 = vadd.f32 0.0, %v2925
        %v2927 = vpop.f32.mrb[0].mxu0
        %v2928 = vadd.f32 0.0, %v2927
        %2929 = vmatprep.mubr.bf16.mxu0 0
        %2930 = vmatmul.mubr.bf16.gmra.mrb[0].mxu0 %v2692
        %v2931 = vpop.f32.mrb[0].mxu0
        %v2932 = vadd.f32 0.0, %v2931
        %v2933 = vpop.f32.mrb[0].mxu0
        %v2934 = vadd.f32 0.0, %v2933
        %v2935 = vpop.f32.mrb[0].mxu0
        %v2936 = vadd.f32 0.0, %v2935
        %v2937 = vpop.f32.mrb[0].mxu0
        %v2938 = vadd.f32 0.0, %v2937
        %2939 = vmatprep.mubr.bf16.mxu0 0
        %2940 = vmatmul.mubr.bf16.gmra.mrb[0].mxu0 %v2693
        %v2941 = vpop.f32.mrb[0].mxu0
        %v2942 = vadd.f32 0.0, %v2941
        %v2943 = vpop.f32.mrb[0].mxu0
        %v2944 = vadd.f32 0.0, %v2943
        %v2945 = vpop.f32.mrb[0].mxu0
        %v2946 = vadd.f32 0.0, %v2945
        %v2947 = vpop.f32.mrb[0].mxu0
        %v2948 = vadd.f32 0.0, %v2947
        %2949 = vmatprep.mubr.bf16.mxu0 0
        %2950 = vmatmul.mubr.bf16.gmra.mrb[0].mxu0 %v2694
        %v2951 = vpop.f32.mrb[0].mxu0
        %v2952 = vadd.f32 0.0, %v2951
        %v2953 = vpop.f32.mrb[0].mxu0
        %v2954 = vadd.f32 0.0, %v2953
        %v2955 = vpop.f32.mrb[0].mxu0
        %v2956 = vadd.f32 0.0, %v2955
        %v2957 = vpop.f32.mrb[0].mxu0
        %v2958 = vadd.f32 0.0, %v2957
        %2959 = vdwg.mxu0
        %2960 = vmatprep.subr.bf16.mxu0 %v2826
        %2961 = vmatpush1.bf16.msra.mxu0 %v2825
        %2962 = vmatprep.subr.bf16.mxu0 %v2830
        %2963 = vmatpush1.bf16.msra.mxu0 %v2829
        %2964 = vmatprep.subr.bf16.mxu0 %v2834
        %2965 = vmatpush1.bf16.msra.mxu0 %v2833
        %2966 = vmatprep.subr.bf16.mxu0 %v2838
        %2967 = vmatpush1.bf16.msra.mxu0 %v2837
        %2968 = vmatprep.subr.bf16.mxu0 %v2842
        %2969 = vmatpush1.bf16.msra.mxu0 %v2841
        %2970 = vmatprep.subr.bf16.mxu0 %v2846
        %2971 = vmatpush1.bf16.msra.mxu0 %v2845
        %2972 = vmatprep.subr.bf16.mxu0 %v2850
        %2973 = vmatpush1.bf16.msra.mxu0 %v2849
        %2974 = vmatprep.subr.bf16.mxu0 %v2854
        %2975 = vmatpush1.bf16.msra.mxu0 %v2853
        %2976 = vmatprep.subr.bf16.mxu0 0
        %2977 = vmatpush1.bf16.msra.mxu0 0
        %2978 = vmatprep.subr.bf16.mxu0 0
        %2979 = vmatpush1.bf16.msra.mxu0 0
        %2980 = vmatprep.subr.bf16.mxu0 0
        %2981 = vmatpush1.bf16.msra.mxu0 0
        %2982 = vmatprep.subr.bf16.mxu0 0
        %2983 = vmatpush1.bf16.msra.mxu0 0
        %2984 = vmatprep.subr.bf16.mxu0 0
        %2985 = vmatpush1.bf16.msra.mxu0 0
        %2986 = vmatprep.subr.bf16.mxu0 0
        %2987 = vmatpush1.bf16.msra.mxu0 0
        %2988 = vmatprep.subr.bf16.mxu0 0
        %2989 = vmatpush1.bf16.msra.mxu0 0
        %2990 = vmatprep.subr.bf16.mxu0 0
        %2991 = vmatpush1.bf16.msra.mxu0 0
        %2992 = vmatprep.mubr.bf16.mxu0 0
        %2993 = vmatmul.mubr.bf16.gmra.mrb[0].mxu0 %v2691
        %v2994 = vpop.f32.mrb[0].mxu0
        %v2995 = vadd.f32 0.0, %v2994
        %v2996 = vpop.f32.mrb[0].mxu0
        %v2997 = vadd.f32 0.0, %v2996
        %v2998 = vpop.f32.mrb[0].mxu0
        %v2999 = vadd.f32 0.0, %v2998
        %v3000 = vpop.f32.mrb[0].mxu0
        %v3001 = vadd.f32 0.0, %v3000
        %3002 = vmatprep.mubr.bf16.mxu0 0
        %3003 = vmatmul.mubr.bf16.gmra.mrb[0].mxu0 %v2692
        %v3004 = vpop.f32.mrb[0].mxu0
        %v3005 = vadd.f32 0.0, %v3004
        %v3006 = vpop.f32.mrb[0].mxu0
        %v3007 = vadd.f32 0.0, %v3006
        %v3008 = vpop.f32.mrb[0].mxu0
        %v3009 = vadd.f32 0.0, %v3008
        %v3010 = vpop.f32.mrb[0].mxu0
        %v3011 = vadd.f32 0.0, %v3010
        %3012 = vmatprep.mubr.bf16.mxu0 0
        %3013 = vmatmul.mubr.bf16.gmra.mrb[0].mxu0 %v2693
        %v3014 = vpop.f32.mrb[0].mxu0
        %v3015 = vadd.f32 0.0, %v3014
        %v3016 = vpop.f32.mrb[0].mxu0
        %v3017 = vadd.f32 0.0, %v3016
        %v3018 = vpop.f32.mrb[0].mxu0
        %v3019 = vadd.f32 0.0, %v3018
        %v3020 = vpop.f32.mrb[0].mxu0
        %v3021 = vadd.f32 0.0, %v3020
        %3022 = vmatprep.mubr.bf16.mxu0 0
        %3023 = vmatmul.mubr.bf16.gmra.mrb[0].mxu0 %v2694
        %v3024 = vpop.f32.mrb[0].mxu0
        %v3025 = vadd.f32 0.0, %v3024
        %v3026 = vpop.f32.mrb[0].mxu0
        %v3027 = vadd.f32 0.0, %v3026
        %v3028 = vpop.f32.mrb[0].mxu0
        %v3029 = vadd.f32 0.0, %v3028
        %v3030 = vpop.f32.mrb[0].mxu0
        %v3031 = vadd.f32 0.0, %v3030
        %3032 = vdwg.mxu0
        %v3033 = vxor.u32 %v2922, 2147483648
        %v3034 = vxor.u32 %v2924, 2147483648
        %v3035 = vxor.u32 %v2926, 2147483648
        %v3036 = vxor.u32 %v2928, 2147483648
        %v3037 = vxor.u32 %v2932, 2147483648
        %v3038 = vxor.u32 %v2934, 2147483648
        %v3039 = vxor.u32 %v2936, 2147483648
        %v3040 = vxor.u32 %v2938, 2147483648
        %v3041 = vxor.u32 %v2942, 2147483648
        %v3042 = vxor.u32 %v2944, 2147483648
        %v3043 = vxor.u32 %v2946, 2147483648
        %v3044 = vxor.u32 %v2948, 2147483648
        %v3045 = vxor.u32 %v2952, 2147483648
        %v3046 = vxor.u32 %v2954, 2147483648
        %v3047 = vxor.u32 %v2956, 2147483648
        %v3048 = vxor.u32 %v2958, 2147483648
        %v3049 = vmul.f32 %v3033, 1.442695
        %v3050 = vpow.pop %v3049
        %v3051 = vmul.f32 %v3034, 1.442695
        %v3052 = vpow.pop %v3051
        %v3053 = vmul.f32 %v3035, 1.442695
        %v3054 = vpow.pop %v3053
        %v3055 = vmul.f32 %v3036, 1.442695
        %v3056 = vpow.pop %v3055
        %v3057 = vmul.f32 %v3037, 1.442695
        %v3058 = vpow.pop %v3057
        %v3059 = vmul.f32 %v3038, 1.442695
        %v3060 = vpow.pop %v3059
        %v3061 = vmul.f32 %v3039, 1.442695
        %v3062 = vpow.pop %v3061
        %v3063 = vmul.f32 %v3040, 1.442695
        %v3064 = vpow.pop %v3063
        %v3065 = vmul.f32 %v3041, 1.442695
        %v3066 = vpow.pop %v3065
        %v3067 = vmul.f32 %v3042, 1.442695
        %v3068 = vpow.pop %v3067
        %v3069 = vmul.f32 %v3043, 1.442695
        %v3070 = vpow.pop %v3069
        %v3071 = vmul.f32 %v3044, 1.442695
        %v3072 = vpow.pop %v3071
        %v3073 = vmul.f32 %v3045, 1.442695
        %v3074 = vpow.pop %v3073
        %v3075 = vmul.f32 %v3046, 1.442695
        %v3076 = vpow.pop %v3075
        %v3077 = vmul.f32 %v3047, 1.442695
        %v3078 = vpow.pop %v3077
        %v3079 = vmul.f32 %v3048, 1.442695
        %v3080 = vpow.pop %v3079
        %v3081 = vadd.f32 %v3050, 1.0
        %v3082 = vadd.f32 %v3052, 1.0
        %v3083 = vadd.f32 %v3054, 1.0
        %v3084 = vadd.f32 %v3056, 1.0
        %v3085 = vadd.f32 %v3058, 1.0
        %v3086 = vadd.f32 %v3060, 1.0
        %v3087 = vadd.f32 %v3062, 1.0
        %v3088 = vadd.f32 %v3064, 1.0
        %v3089 = vadd.f32 %v3066, 1.0
        %v3090 = vadd.f32 %v3068, 1.0
        %v3091 = vadd.f32 %v3070, 1.0
        %v3092 = vadd.f32 %v3072, 1.0
        %v3093 = vadd.f32 %v3074, 1.0
        %v3094 = vadd.f32 %v3076, 1.0
        %v3095 = vadd.f32 %v3078, 1.0
        %v3096 = vadd.f32 %v3080, 1.0
        %v3097 = vrcp.pop %v3081
        %v3098 = vmul.f32 1.0, %v3097
        %v3099 = vrcp.pop %v3082
        %v3100 = vmul.f32 1.0, %v3099
        %v3101 = vrcp.pop %v3083
        %v3102 = vmul.f32 1.0, %v3101
        %v3103 = vrcp.pop %v3084
        %v3104 = vmul.f32 1.0, %v3103
        %v3105 = vrcp.pop %v3085
        %v3106 = vmul.f32 1.0, %v3105
        %v3107 = vrcp.pop %v3086
        %v3108 = vmul.f32 1.0, %v3107
        %v3109 = vrcp.pop %v3087
        %v3110 = vmul.f32 1.0, %v3109
        %v3111 = vrcp.pop %v3088
        %v3112 = vmul.f32 1.0, %v3111
        %v3113 = vrcp.pop %v3089
        %v3114 = vmul.f32 1.0, %v3113
        %v3115 = vrcp.pop %v3090
        %v3116 = vmul.f32 1.0, %v3115
        %v3117 = vrcp.pop %v3091
        %v3118 = vmul.f32 1.0, %v3117
        %v3119 = vrcp.pop %v3092
        %v3120 = vmul.f32 1.0, %v3119
        %v3121 = vrcp.pop %v3093
        %v3122 = vmul.f32 1.0, %v3121
        %v3123 = vrcp.pop %v3094
        %v3124 = vmul.f32 1.0, %v3123
        %v3125 = vrcp.pop %v3095
        %v3126 = vmul.f32 1.0, %v3125
        %v3127 = vrcp.pop %v3096
        %v3128 = vmul.f32 1.0, %v3127
        %v3129 = vmul.f32 %v2922, %v3098
        %v3130 = vmul.f32 %v2924, %v3100
        %v3131 = vmul.f32 %v2926, %v3102
        %v3132 = vmul.f32 %v2928, %v3104
        %v3133 = vmul.f32 %v2932, %v3106
        %v3134 = vmul.f32 %v2934, %v3108
        %v3135 = vmul.f32 %v2936, %v3110
        %v3136 = vmul.f32 %v2938, %v3112
        %v3137 = vmul.f32 %v2942, %v3114
        %v3138 = vmul.f32 %v2944, %v3116
        %v3139 = vmul.f32 %v2946, %v3118
        %v3140 = vmul.f32 %v2948, %v3120
        %v3141 = vmul.f32 %v2952, %v3122
        %v3142 = vmul.f32 %v2954, %v3124
        %v3143 = vmul.f32 %v2956, %v3126
        %v3144 = vmul.f32 %v2958, %v3128
        %v3145 = vmul.f32 %v3129, %v2995
        %v3146 = vmul.f32 %v3130, %v2997
        %v3147 = vmul.f32 %v3131, %v2999
        %v3148 = vmul.f32 %v3132, %v3001
        %v3149 = vmul.f32 %v3133, %v3005
        %v3150 = vmul.f32 %v3134, %v3007
        %v3151 = vmul.f32 %v3135, %v3009
        %v3152 = vmul.f32 %v3136, %v3011
        %v3153 = vmul.f32 %v3137, %v3015
        %v3154 = vmul.f32 %v3138, %v3017
        %v3155 = vmul.f32 %v3139, %v3019
        %v3156 = vmul.f32 %v3140, %v3021
        %v3157 = vmul.f32 %v3141, %v3025
        %v3158 = vmul.f32 %v3142, %v3027
        %v3159 = vmul.f32 %v3143, %v3029
        %v3160 = vmul.f32 %v3144, %v3031
        %v3161 = vpack.c.bf16 %v3147, %v3145
        %v3162 = vpack.c.bf16 %v3148, %v3146
        %v3163 = vpack.c.bf16 %v3151, %v3149
        %v3164 = vpack.c.bf16 %v3152, %v3150
        %v3165 = vpack.c.bf16 %v3155, %v3153
        %v3166 = vpack.c.bf16 %v3156, %v3154
        %v3167 = vpack.c.bf16 %v3159, %v3157
        %v3168 = vpack.c.bf16 %v3160, %v3158
        %v3169 = vld [vmem:[#allocation10] sm:$0xf]
        %v3170 = vld [vmem:[#allocation10 + $0x4] sm:$0xf]
        %v3171 = vld [vmem:[#allocation10 + $0x8] sm:$0xf]
        %v3172 = vld [vmem:[#allocation10 + $0xc] sm:$0xf]
        %v3173 = vld [vmem:[#allocation10 + $0x10] sm:$0xf]
        %v3174 = vld [vmem:[#allocation10 + $0x14] sm:$0xf]
        %v3175 = vld [vmem:[#allocation10 + $0x18] sm:$0xf]
        %v3176 = vld [vmem:[#allocation10 + $0x1c] sm:$0xf]
        %v3177 = vld [vmem:[#allocation10 + $0x20] sm:$0xf]
        %v3178 = vld [vmem:[#allocation10 + $0x24] sm:$0xf]
        %v3179 = vld [vmem:[#allocation10 + $0x28] sm:$0xf]
        %v3180 = vld [vmem:[#allocation10 + $0x2c] sm:$0xf]
        %v3181 = vld [vmem:[#allocation10 + $0x30] sm:$0xf]
        %v3182 = vld [vmem:[#allocation10 + $0x34] sm:$0xf]
        %v3183 = vld [vmem:[#allocation10 + $0x38] sm:$0xf]
        %v3184 = vld [vmem:[#allocation10 + $0x3c] sm:$0xf]
        %v3185 = vld [vmem:[#allocation10 + $0x40] sm:$0xf]
        %v3186 = vld [vmem:[#allocation10 + $0x44] sm:$0xf]
        %v3187 = vld [vmem:[#allocation10 + $0x48] sm:$0xf]
        %v3188 = vld [vmem:[#allocation10 + $0x4c] sm:$0xf]
        %v3189 = vld [vmem:[#allocation10 + $0x50] sm:$0xf]
        %v3190 = vld [vmem:[#allocation10 + $0x54] sm:$0xf]
        %v3191 = vld [vmem:[#allocation10 + $0x58] sm:$0xf]
        %v3192 = vld [vmem:[#allocation10 + $0x5c] sm:$0xf]
        %v3193 = vld [vmem:[#allocation10 + $0x60] sm:$0xf]
        %v3194 = vld [vmem:[#allocation10 + $0x64] sm:$0xf]
        %v3195 = vld [vmem:[#allocation10 + $0x68] sm:$0xf]
        %v3196 = vld [vmem:[#allocation10 + $0x6c] sm:$0xf]
        %v3197 = vld [vmem:[#allocation10 + $0x70] sm:$0xf]
        %v3198 = vld [vmem:[#allocation10 + $0x74] sm:$0xf]
        %v3199 = vld [vmem:[#allocation10 + $0x78] sm:$0xf]
        %v3200 = vld [vmem:[#allocation10 + $0x7c] sm:$0xf]
        %v3233 = vunpack.c.l.b16 %v3169
        %v3234 = vunpack.c.l.b16 %v3170
        %v3235 = vunpack.c.l.b16 %v3171
        %v3236 = vunpack.c.l.b16 %v3172
        %v3237 = vunpack.c.l.b16 %v3173
        %v3238 = vunpack.c.l.b16 %v3174
        %v3239 = vunpack.c.l.b16 %v3175
        %v3240 = vunpack.c.l.b16 %v3176
        %v3241 = vunpack.c.l.b16 %v3177
        %v3242 = vunpack.c.l.b16 %v3178
        %v3243 = vunpack.c.l.b16 %v3179
        %v3244 = vunpack.c.l.b16 %v3180
        %v3245 = vunpack.c.l.b16 %v3181
        %v3246 = vunpack.c.l.b16 %v3182
        %v3247 = vunpack.c.l.b16 %v3183
        %v3248 = vunpack.c.l.b16 %v3184
        %v3249 = vunpack.c.l.b16 %v3185
        %v3250 = vunpack.c.l.b16 %v3186
        %v3251 = vunpack.c.l.b16 %v3187
        %v3252 = vunpack.c.l.b16 %v3188
        %v3253 = vunpack.c.l.b16 %v3189
        %v3254 = vunpack.c.l.b16 %v3190
        %v3255 = vunpack.c.l.b16 %v3191
        %v3256 = vunpack.c.l.b16 %v3192
        %v3257 = vunpack.c.l.b16 %v3193
        %v3258 = vunpack.c.l.b16 %v3194
        %v3259 = vunpack.c.l.b16 %v3195
        %v3260 = vunpack.c.l.b16 %v3196
        %v3261 = vunpack.c.l.b16 %v3197
        %v3262 = vunpack.c.l.b16 %v3198
        %v3263 = vunpack.c.l.b16 %v3199
        %v3264 = vunpack.c.l.b16 %v3200
        %v3265 = vpack.c.b16 %v3234, %v3233
        %v3266 = vpack.c.b16 %v3236, %v3235
        %v3267 = vpack.c.b16 %v3238, %v3237
        %v3268 = vpack.c.b16 %v3240, %v3239
        %v3269 = vpack.c.b16 %v3242, %v3241
        %v3270 = vpack.c.b16 %v3244, %v3243
        %v3271 = vpack.c.b16 %v3246, %v3245
        %v3272 = vpack.c.b16 %v3248, %v3247
        %v3273 = vpack.c.b16 %v3250, %v3249
        %v3274 = vpack.c.b16 %v3252, %v3251
        %v3275 = vpack.c.b16 %v3254, %v3253
        %v3276 = vpack.c.b16 %v3256, %v3255
        %v3277 = vpack.c.b16 %v3258, %v3257
        %v3278 = vpack.c.b16 %v3260, %v3259
        %v3279 = vpack.c.b16 %v3262, %v3261
        %v3280 = vpack.c.b16 %v3264, %v3263
        %3297 = vmatprep.subr.bf16.mxu0 0
        %3298 = vmatpush1.bf16.msra.mxu0 %v3265
        %3299 = vmatprep.subr.bf16.mxu0 0
        %3300 = vmatpush1.bf16.msra.mxu0 %v3266
        %3301 = vmatprep.subr.bf16.mxu0 0
        %3302 = vmatpush1.bf16.msra.mxu0 %v3267
        %3303 = vmatprep.subr.bf16.mxu0 0
        %3304 = vmatpush1.bf16.msra.mxu0 %v3268
        %3305 = vmatprep.subr.bf16.mxu0 0
        %3306 = vmatpush1.bf16.msra.mxu0 %v3269
        %3307 = vmatprep.subr.bf16.mxu0 0
        %3308 = vmatpush1.bf16.msra.mxu0 %v3270
        %3309 = vmatprep.subr.bf16.mxu0 0
        %3310 = vmatpush1.bf16.msra.mxu0 %v3271
        %3311 = vmatprep.subr.bf16.mxu0 0
        %3312 = vmatpush1.bf16.msra.mxu0 %v3272
        %3313 = vmatprep.subr.bf16.mxu0 0
        %3314 = vmatpush1.bf16.msra.mxu0 %v3273
        %3315 = vmatprep.subr.bf16.mxu0 0
        %3316 = vmatpush1.bf16.msra.mxu0 %v3274
        %3317 = vmatprep.subr.bf16.mxu0 0
        %3318 = vmatpush1.bf16.msra.mxu0 %v3275
        %3319 = vmatprep.subr.bf16.mxu0 0
        %3320 = vmatpush1.bf16.msra.mxu0 %v3276
        %3321 = vmatprep.subr.bf16.mxu0 0
        %3322 = vmatpush1.bf16.msra.mxu0 %v3277
        %3323 = vmatprep.subr.bf16.mxu0 0
        %3324 = vmatpush1.bf16.msra.mxu0 %v3278
        %3325 = vmatprep.subr.bf16.mxu0 0
        %3326 = vmatpush1.bf16.msra.mxu0 %v3279
        %3327 = vmatprep.subr.bf16.mxu0 0
        %3328 = vmatpush1.bf16.msra.mxu0 %v3280
        %3329 = vmatprep.mubr.bf16.mxu0 %v3162
        %3330 = vmatmul.mubr.bf16.gmra.mrb[0].mxu0 %v3161
        %v3331 = vpop.f32.mrb[0].mxu0
        %v3332 = vadd.f32 0.0, %v3331
        %v3333 = vpop.f32.mrb[0].mxu0
        %v3334 = vpop.f32.mrb[0].mxu0
        %v3335 = vadd.f32 0.0, %v3334
        %v3336 = vpop.f32.mrb[0].mxu0
        %3337 = vmatprep.mubr.bf16.mxu0 %v3164
        %3338 = vmatmul.mubr.bf16.gmra.mrb[0].mxu0 %v3163
        %v3339 = vpop.f32.mrb[0].mxu0
        %v3340 = vadd.f32 0.0, %v3339
        %v3341 = vpop.f32.mrb[0].mxu0
        %v3342 = vpop.f32.mrb[0].mxu0
        %v3343 = vadd.f32 0.0, %v3342
        %v3344 = vpop.f32.mrb[0].mxu0
        %3345 = vmatprep.mubr.bf16.mxu0 %v3166
        %3346 = vmatmul.mubr.bf16.gmra.mrb[0].mxu0 %v3165
        %v3347 = vpop.f32.mrb[0].mxu0
        %v3348 = vadd.f32 0.0, %v3347
        %v3349 = vpop.f32.mrb[0].mxu0
        %v3350 = vpop.f32.mrb[0].mxu0
        %v3351 = vadd.f32 0.0, %v3350
        %v3352 = vpop.f32.mrb[0].mxu0
        %3353 = vmatprep.mubr.bf16.mxu0 %v3168
        %3354 = vmatmul.mubr.bf16.gmra.mrb[0].mxu0 %v3167
        %v3355 = vpop.f32.mrb[0].mxu0
        %v3356 = vadd.f32 0.0, %v3355
        %v3357 = vpop.f32.mrb[0].mxu0
        %v3358 = vpop.f32.mrb[0].mxu0
        %v3359 = vadd.f32 0.0, %v3358
        %v3360 = vpop.f32.mrb[0].mxu0
        %3361 = vdwg.mxu0
        %v3362 = vpack.c.bf16 %v3335, %v3332
        %v3363 = vpack.c.bf16 %v3343, %v3340
        %v3364 = vpack.c.bf16 %v3351, %v3348
        %v3365 = vpack.c.bf16 %v3359, %v3356
        %v3370 = vunpack.c.l.b16 %v3362
        %v3371 = vunpack.c.h.b16 %v3362
        %v3372 = vunpack.c.l.b16 %v3363
        %v3373 = vunpack.c.h.b16 %v3363
        %v3374 = vunpack.c.l.b16 %v3364
        %v3375 = vunpack.c.h.b16 %v3364
        %v3376 = vunpack.c.l.b16 %v3365
        %v3377 = vunpack.c.h.b16 %v3365
        %v3378 = vpack.c.b16 %v3370, %v3370
        %v3379 = vpack.c.b16 %v3371, %v3371
        %v3380 = vpack.c.b16 %v3372, %v3372
        %v3381 = vpack.c.b16 %v3373, %v3373
        %v3382 = vpack.c.b16 %v3374, %v3374
        %v3383 = vpack.c.b16 %v3375, %v3375
        %v3384 = vpack.c.b16 %v3376, %v3376
        %v3385 = vpack.c.b16 %v3377, %v3377
        %v3394 = vadd.bf16 %v2604, %v3378
        %v3395 = vadd.bf16 %v2605, %v3379
        %v3396 = vadd.bf16 %v2606, %v3380
        %v3397 = vadd.bf16 %v2607, %v3381
        %v3398 = vadd.bf16 %v2608, %v3382
        %v3399 = vadd.bf16 %v2609, %v3383
        %v3400 = vadd.bf16 %v2610, %v3384
        %v3401 = vadd.bf16 %v2611, %v3385
        %3402 = vst [vmem:[%s479] sm:$0xf] %v3394
        %3403 = vst [vmem:[%s479 + $0x4] sm:$0xf] %v3395
        %3404 = vst [vmem:[%s479 + $0x8] sm:$0xf] %v3396
        %3405 = vst [vmem:[%s479 + $0xc] sm:$0xf] %v3397
        %3406 = vst [vmem:[%s479 + $0x10] sm:$0xf] %v3398
        %3407 = vst [vmem:[%s479 + $0x14] sm:$0xf] %v3399
        %3408 = vst [vmem:[%s479 + $0x18] sm:$0xf] %v3400
        %3409 = vst [vmem:[%s479 + $0x1c] sm:$0xf] %v3401
        %s3410 = sand.u32 %s254, 1
        %s3411 = scalar_lea.sflag [#allocation4], %s3410
        %s3412 = sand.u32 %s254, 1
        %s3413 = smul.addr %s3412, 32
        %s3414 = scalar_lea.vmem [#allocation16], %s3413
        // Predicated region
        $region93: #{tpu_custom_call.1} parent=59 // pred_check
          %p3415 = pneg %p264
        $region94: #{tpu_custom_call.1} parent=59 // pred_check_branch
          %3417 = sbr.rel (%p3415) target = $region96
        $region95: #{tpu_custom_call.1} parent=59 // pred_region
          %s3419 = ssub.s32 512, 512
          %3420 = vsyncadd %s3411, %s3419
          %s3421 = smul.addr %s31, 8
          %s3422 = smul.addr %s3421, 64
          %s3423 = scalar_lea.hbm %s10, %s3422
          %s3424 = sshll.u32 %s3414, 4
          %s3425 = int_to_ptr.vmem [resolvable:$true] %s3424
          %3430 = dma.vmem_to_hbm [thread:$0]  %s3425, 512, %s3423, %s3411, 64, 64, 4
        $region96: #{tpu_custom_call.1} parent=59 // pred_fallthru
          _
      $region60: #{tpu_custom_call.1} parent=5 // pred_fallthru
        _
      %p3431 = scmp.le.s32.totalorder 2, %s26
      // Predicated region
      $region97: #{tpu_custom_call.1} parent=5 // pred_check
        %p3432 = pneg %p3431
      $region98: #{tpu_custom_call.1} parent=5 // pred_check_branch
        %3434 = sbr.rel (%p3432) target = $region100
      $region99: #{tpu_custom_call.1} parent=5 // pred_region
        %s3435 = ssub.s32 %s26, 2
        // Predicated region
        $region101: #{tpu_custom_call.1} parent=99 // pred_check
          %p3436 = pneg %p270
        $region102: #{tpu_custom_call.1} parent=99 // pred_check_branch
          %3438 = sbr.rel (%p3436) target = $region104
        $region103: #{tpu_custom_call.1} parent=99 // pred_region
          %s3439 = sand.u32 %s255, 1
          %s3440 = scalar_lea.sflag [#allocation4], %s3439
          %s3441 = sand.u32 %s255, 1
          %s3442 = smul.addr %s3441, 32
          %s3443 = scalar_lea.vmem [#allocation16], %s3442
          %3444 = dma.done %s3440, 512
        $region104: #{tpu_custom_call.1} parent=99 // pred_fallthru
          _
      $region100: #{tpu_custom_call.1} parent=5 // pred_fallthru
        _
    $region6: #{tpu_custom_call.1} parent=1 // loop_footer
      %s30 = sadd.s32 1, %s26
    $region7: #{tpu_custom_call.1} parent=1 // loop_footer_branch
      %25 = sbr.rel target = $region3
    $region8: #{tpu_custom_call.1} parent=1 // loop_exit
      _
    %3445 = vsyncpa [#allocation3], 1
    %s3446 = scalar_lea.sflag [#allocation3], 1
    %3447 = vsyncpa %s3446, 1
    %3448 = vsyncpa [#allocation6], 1
    %3449 = vsyncpa [#allocation9], 1
    %3450 = vsyncpa [#allocation12], 1
    %3451 = vsyncpa [#allocation15], 1
    %3452 = vsyncpa [#allocation4], 1
    %s3453 = scalar_lea.sflag [#allocation4], 1
    %3454 = vsyncpa %s3453, 1

</llo_original>
